<compile_context>
chip_gen: v7x
topology: tpu7x:2x2x1
jax: 0.10.0
libtpu: 0.0.40
codegen_flags: <defaults>
</compile_context>

<pallas_src>
import math
import jax
import jax.numpy as jnp
from jax.experimental import pallas as pl
from jax.experimental.pallas import tpu as pltpu

PI = math.pi

# ----- module-consistent small shapes -----
N = 16            # number of graph nodes
FIN = 8           # num_features
NHID = 8          # nhid
NCLASS = 4        # num_classes
HEADS = 2         # GAT heads
LAYER = 3
J = 3
NUM_GAT = 2 ** LAYER - 1            # 7 GATConv / MLP pairs
HC = HEADS * NHID                   # GAT concat width (16)
BN_EPS = 1e-5
LEVEL_GATS = [[0], [1, 2], [3, 4, 5, 6]]   # GAT indices per tree level
MAXB = 2 ** (LAYER - 1)             # max branches in a level (4)
MAXBH = MAXB * HEADS                # max (branch, head) blocks (8)

VMEM_SPEC = pl.BlockSpec(memory_space=pltpu.MemorySpace.VMEM)


# ---------------------------------------------------------------------------
# Haar spectral filters (host-side precompute; lamb/V are model constants)
# ---------------------------------------------------------------------------
def phi(lamb):
    l = jnp.where(lamb == 0, 1e-7, lamb)
    y = 2.0 * PI * l
    return jnp.sin(y) / y


def psi(lamb):
    l = jnp.where(lamb == 0, 1e-8, lamb)
    y = PI * l
    return jnp.sin(l) / y * (1.0 - jnp.cos(l))


def haar_filters(lamb):
    hs = []
    for k in range(J):
        j = J - k
        if j == J:
            hs.append(phi((2.0 ** j) * lamb))
        else:
            hs.append(psi((2.0 ** (-j)) * lamb))
    return jnp.stack(hs, axis=0).astype(jnp.float32)   # [J, N]


# ---------------------------------------------------------------------------
# Single fused kernel: scattering tree (3 levels) + GAT/MLP per level + head
# ---------------------------------------------------------------------------
def fused_net_kernel(
        x_ref, v_ref, vt_ref, h_ref, adjt_ref, r_ref, rt_ref, hm_ref,
        w1g_ref, a1g_ref, d1g_ref, wm1g_ref, vec1g_ref,
        w2g_ref, a2g_ref, d2g_ref, wm2g_ref, vec2g_ref,
        w3g_ref, a3g_ref, d3g_ref, wm3g_ref, vec3g_ref,
        hv1_ref, w1_ref, wl_ref, hv2_ref, w3_ref,
        out_ref):
    x = x_ref[...]                       # [N, FIN]
    V = v_ref[...]                       # [N, N]
    VT = vt_ref[...]                     # [N, N]
    hcols = h_ref[...]                   # [N, J]   Haar filters, column per filter
    adjt = adjt_ref[...]                 # [N, MAXBH*N]  adj tiled along lanes
    R8 = r_ref[...]                      # [MAXBH, MAXBH*N]   block expansion
    RT8 = rt_ref[...]                    # [MAXBH*N, MAXBH]   block sum
    HM8 = hm_ref[...]                    # [MAXBH, MAXB*HC]   (branch,head) column masks

    def elu(v):
        return jnp.where(v > 0, v, jnp.exp(jnp.minimum(v, 0.0)) - 1.0)

    def prop(X, ks):
        # V diag(h_k) V^T X  ==  V @ (h_k * (V^T X)); V^T X computed once.
        t = jnp.dot(VT, X, preferred_element_type=jnp.float32)          # [N, W]
        return [jnp.dot(V, hcols[:, k:k + 1] * t,
                        preferred_element_type=jnp.float32) for k in ks]

    def gat_level(Xin, B, wg_ref, asel_ref, dsel_ref, wm_ref, vec_ref):
        # Batched GAT (all branches of this level x both heads) fused with BN+ELU+Linear.
        BH = B * HEADS
        Wg = wg_ref[...]                 # [B*FIN, B*HC]  block-diagonal
        Asel = asel_ref[...]             # [B*HC, BH]     a_src selectors
        Dsel = dsel_ref[...]             # [B*HC, BH]     a_dst selectors
        Wm = wm_ref[...]                 # [B*HC, B*NHID] block-diagonal post-MLP
        vec = vec_ref[...]               # [4, B*HC]: bias / bn_scale / bn_shift / bm(pad)
        bias, bscale, bshift = vec[0:1, :], vec[1:2, :], vec[2:3, :]
        bm = vec[3:4, :B * NHID]
        adj_s = adjt[:, :BH * N]         # [N, BH*N]
        R = R8[:BH, :BH * N]
        RT = RT8[:BH * N, :BH]
        HM = HM8[:BH, :B * HC]

        xp = jnp.dot(Xin, Wg, preferred_element_type=jnp.float32)        # [N, B*HC]
        al_dst = jnp.dot(xp, Dsel, preferred_element_type=jnp.float32)   # [N, BH]
        al_src = jnp.dot(xp, Asel, preferred_element_type=jnp.float32)   # [N, BH]

        # attention logit slab: e[i, b*N + j] = a_dst[i, b] + a_src[j, b]
        src_row = jnp.concatenate(
            [jnp.transpose(al_src[:, b:b + 1]) for b in range(BH)], axis=1)  # [1, BH*N]
        e = jnp.dot(al_dst, R, preferred_element_type=jnp.float32) + src_row
        e = jnp.where(e >= 0, e, 0.2 * e)                      # LeakyReLU(0.2)
        e = jnp.where(adj_s > 0, e, jnp.float32(-1e30))        # mask non-edges
        m = jnp.concatenate(
            [jnp.max(e[:, b * N:(b + 1) * N], axis=1, keepdims=True)
             for b in range(BH)], axis=1)                      # per-block max [N, BH]
        e = e - jnp.dot(m, R, preferred_element_type=jnp.float32)
        p = jnp.exp(e)
        p = jnp.where(adj_s > 0, p, 0.0)
        denom = jnp.dot(p, RT, preferred_element_type=jnp.float32)       # [N, BH]
        inv = pl.reciprocal(denom, approx=True)
        att = p * jnp.dot(inv, R, preferred_element_type=jnp.float32)    # [N, BH*N]

        # one contraction for all (branch, head) blocks: out = att @ G
        G = jnp.concatenate([xp * HM[b:b + 1, :] for b in range(BH)], axis=0)  # [BH*N, B*HC]
        g = jnp.dot(att, G, preferred_element_type=jnp.float32) + bias   # [N, B*HC]

        # fused BatchNorm1d(eval) -> ELU -> (Dropout=identity) -> Linear
        act = elu(g * bscale + bshift)
        return jnp.dot(act, Wm, preferred_element_type=jnp.float32) + bm  # [N, B*NHID]

    # ----- scattering tree (statically unrolled, all intermediates stay on-chip) -----
    y0, y1, y2 = prop(x, (0, 1, 2))
    out1 = gat_level(y0, 1, w1g_ref, a1g_ref, d1g_ref, wm1g_ref, vec1g_ref)   # gat 0

    x2 = jnp.abs(jnp.concatenate([y1, y2], axis=1))                       # [N, 2*FIN]
    z0, z1, z2 = prop(x2, (0, 1, 2))
    out2 = gat_level(z0, 2, w2g_ref, a2g_ref, d2g_ref, wm2g_ref, vec2g_ref)   # gats 1,2

    # level-3 branch order: [y1.y1, y1.y2, y2.y1, y2.y2]
    x3 = jnp.abs(jnp.concatenate(
        [z1[:, :FIN], z2[:, :FIN], z1[:, FIN:], z2[:, FIN:]], axis=1))    # [N, 4*FIN]
    (q0,) = prop(x3, (0,))
    out3 = gat_level(q0, 4, w3g_ref, a3g_ref, d3g_ref, wm3g_ref, vec3g_ref)   # gats 3..6

    s = jnp.concatenate([out1, out2, out3], axis=1)                       # [N, 7*NHID]

    # ----- Net head: mlp1(scatter) + linear1(x), mlp3, log_softmax -----
    hv1 = hv1_ref[...]                   # [2, 7*NHID]: bn1 scale / shift
    hv2 = hv2_ref[...]                   # [5, NHID]:  b1, bl, bn3 scale, bn3 shift, b3(pad)
    a1 = elu(s * hv1[0:1, :] + hv1[1:2, :])
    h = (jnp.dot(a1, w1_ref[...], preferred_element_type=jnp.float32) + hv2[0:1, :]
         + jnp.dot(x, wl_ref[...], preferred_element_type=jnp.float32) + hv2[1:2, :])
    a3 = elu(h * hv2[2:3, :] + hv2[3:4, :])
    z = jnp.dot(a3, w3_ref[...], preferred_element_type=jnp.float32) + hv2[4:5, :NCLASS]

    zmax = jnp.max(z, axis=1, keepdims=True)
    ze = z - zmax
    lse = jnp.log(jnp.sum(jnp.exp(ze), axis=1, keepdims=True))
    out_ref[...] = ze - lse                                               # log_softmax(dim=1)


# ---------------------------------------------------------------------------
# Host-side (one-time) parameter packing: block-diagonal weights, fused BN,
# selector / expansion matrices. Keeps the jitted forward = one pallas_call.
# ---------------------------------------------------------------------------
def pack_params(params, adj, lamb, V):
    hm = jnp.kron(jnp.eye(HEADS, dtype=jnp.float32),
                  jnp.ones((1, NHID), dtype=jnp.float32))      # [HEADS, HC]

    def bdiag(blocks):
        r = sum(b.shape[0] for b in blocks)
        c = sum(b.shape[1] for b in blocks)
        out = jnp.zeros((r, c), dtype=jnp.float32)
        i = j = 0
        for b in blocks:
            out = out.at[i:i + b.shape[0], j:j + b.shape[1]].set(b)
            i += b.shape[0]
            j += b.shape[1]
        return out

    def fuse_bn(p):
        scale = p['gamma'] / jnp.sqrt(p['var'] + BN_EPS)
        shift = p['beta'] - p['mean'] * scale
        return scale, shift

    levels = []
    for gl in LEVEL_GATS:
        B = len(gl)
        gp = [params['gat'][g] for g in gl]
        W = bdiag([q['W'] for q in gp])                            # [B*FIN, B*HC]
        Wm = bdiag([q['Wm'] for q in gp])                          # [B*HC, B*NHID]
        Asel = bdiag([(hm * q['asrc']).T for q in gp])             # [B*HC, B*HEADS]
        Dsel = bdiag([(hm * q['adst']).T for q in gp])             # [B*HC, B*HEADS]
        bias = jnp.concatenate([q['bias'] for q in gp], axis=1)
        sc, sh = zip(*[fuse_bn(q) for q in gp])
        bscale = jnp.concatenate(sc, axis=1)
        bshift = jnp.concatenate(sh, axis=1)
        bm = jnp.concatenate([q['bm'] for q in gp], axis=1)        # [1, B*NHID]
        bm_pad = jnp.pad(bm, ((0, 0), (0, B * HC - B * NHID)))
        vec = jnp.concatenate([bias, bscale, bshift, bm_pad], axis=0)  # [4, B*HC]
        levels.append(dict(W=W, Asel=Asel, Dsel=Dsel, Wm=Wm, vec=vec))

    hmat = haar_filters(lamb)                                      # [J, N]
    R8 = jnp.kron(jnp.eye(MAXBH, dtype=jnp.float32),
                  jnp.ones((1, N), dtype=jnp.float32))             # [MAXBH, MAXBH*N]
    HM8 = jnp.kron(jnp.eye(MAXB, dtype=jnp.float32), hm)           # [MAXBH, MAXB*HC]

    s1, sh1 = fuse_bn(params['mlp1'])
    s3, sh3 = fuse_bn(params['mlp3'])
    hv1 = jnp.concatenate([s1, sh1], axis=0)                       # [2, 7*NHID]
    b3pad = jnp.pad(params['mlp3']['b'], ((0, 0), (0, NHID - NCLASS)))
    hv2 = jnp.concatenate([params['mlp1']['b'], params['linear1']['b'],
                           s3, sh3, b3pad], axis=0)                # [5, NHID]

    return dict(
        V=V.astype(jnp.float32), VT=V.T.astype(jnp.float32),
        hcols=jnp.transpose(hmat),                                 # [N, J]
        adjt=jnp.tile(adj, (1, MAXBH)),                            # [N, MAXBH*N]
        R=R8, RT=jnp.transpose(R8), HM=HM8,
        levels=levels,
        hv1=hv1, W1=params['mlp1']['W'], Wl=params['linear1']['W'],
        hv2=hv2, W3=params['mlp3']['W'])


@jax.jit
def net_forward(x, pk):
    lv = pk['levels']
    return pl.pallas_call(
        fused_net_kernel,
        out_shape=jax.ShapeDtypeStruct((N, NCLASS), jnp.float32),
        in_specs=[VMEM_SPEC] * 28,
        out_specs=VMEM_SPEC,
    )(x, pk['V'], pk['VT'], pk['hcols'], pk['adjt'], pk['R'], pk['RT'], pk['HM'],
      lv[0]['W'], lv[0]['Asel'], lv[0]['Dsel'], lv[0]['Wm'], lv[0]['vec'],
      lv[1]['W'], lv[1]['Asel'], lv[1]['Dsel'], lv[1]['Wm'], lv[1]['vec'],
      lv[2]['W'], lv[2]['Asel'], lv[2]['Dsel'], lv[2]['Wm'], lv[2]['vec'],
      pk['hv1'], pk['W1'], pk['Wl'], pk['hv2'], pk['W3'])


# ---------------------------------------------------------------------------
# Deterministic parameter / graph construction
# ---------------------------------------------------------------------------
def init_params(key):
    keys = iter(jax.random.split(key, 256))

    def nrm(shape, scale=0.1):
        return scale * jax.random.normal(next(keys), shape, dtype=jnp.float32)

    gat_params = []
    for _ in range(NUM_GAT):
        gat_params.append(dict(
            W=nrm((FIN, HC)),
            asrc=nrm((1, HC)),
            adst=nrm((1, HC)),
            bias=nrm((1, HC)),
            gamma=1.0 + nrm((1, HC)),
            beta=nrm((1, HC)),
            mean=nrm((1, HC)),
            var=1.0 + jnp.abs(nrm((1, HC))),
            Wm=nrm((HC, NHID)),
            bm=nrm((1, NHID)),
        ))
    return dict(
        gat=gat_params,
        mlp1=dict(gamma=1.0 + nrm((1, NUM_GAT * NHID)), beta=nrm((1, NUM_GAT * NHID)),
                  mean=nrm((1, NUM_GAT * NHID)), var=1.0 + jnp.abs(nrm((1, NUM_GAT * NHID))),
                  W=nrm((NUM_GAT * NHID, NHID)), b=nrm((1, NHID))),
        linear1=dict(W=nrm((FIN, NHID)), b=nrm((1, NHID))),
        mlp3=dict(gamma=1.0 + nrm((1, NHID)), beta=nrm((1, NHID)),
                  mean=nrm((1, NHID)), var=1.0 + jnp.abs(nrm((1, NHID))),
                  W=nrm((NHID, NCLASS)), b=nrm((1, NCLASS))),
    )


def build_graph():
    # bidirectional ring graph
    src, dst = [], []
    for i in range(N):
        j = (i + 1) % N
        src += [i, j]
        dst += [j, i]
    edge_index = jnp.array([src, dst], dtype=jnp.int32)   # [2, E]
    A = jnp.zeros((N, N), dtype=jnp.float32)
    A = A.at[edge_index[1], edge_index[0]].set(1.0)       # adj[dst, src] = 1
    adj = jnp.maximum(A, jnp.eye(N, dtype=jnp.float32))   # GATConv adds self-loops
    # symmetric normalized Laplacian -> (lamb, V) as in the original graph setup
    A_sym = jnp.maximum(A, A.T)
    deg = jnp.sum(A_sym, axis=1)
    dinv = 1.0 / jnp.sqrt(jnp.where(deg > 0, deg, 1.0))
    L = jnp.eye(N, dtype=jnp.float32) - (dinv[:, None] * A_sym) * dinv[None, :]
    lamb, V = jnp.linalg.eigh(L)
    return edge_index, adj, lamb.astype(jnp.float32), V.astype(jnp.float32)


if __name__ == "__main__":
    key = jax.random.PRNGKey(0)
    kx, kp = jax.random.split(key)
    x = jax.random.normal(kx, (N, FIN), dtype=jnp.float32)
    edge_index, adj, lamb, V = build_graph()
    params = init_params(kp)
    packed = pack_params(params, adj, lamb, V)   # one-time host-side packing

    out = net_forward(x, packed)
    out = jax.block_until_ready(out)
    assert out.shape == (N, NCLASS), out.shape
    assert bool(jnp.all(jnp.isfinite(out)))
    print("KERNEL_OK")
</pallas_src>

<mosaic_0001>
module attributes {stable_mosaic.version = 11 : i64} {
  func.func @fused_net_kernel(%arg0: memref<16x8xf32, #tpu.memory_space<vmem>>, %arg1: memref<16x16xf32, #tpu.memory_space<vmem>>, %arg2: memref<16x16xf32, #tpu.memory_space<vmem>>, %arg3: memref<16x3xf32, #tpu.memory_space<vmem>>, %arg4: memref<16x128xf32, #tpu.memory_space<vmem>>, %arg5: memref<8x128xf32, #tpu.memory_space<vmem>>, %arg6: memref<128x8xf32, #tpu.memory_space<vmem>>, %arg7: memref<8x64xf32, #tpu.memory_space<vmem>>, %arg8: memref<8x16xf32, #tpu.memory_space<vmem>>, %arg9: memref<16x2xf32, #tpu.memory_space<vmem>>, %arg10: memref<16x2xf32, #tpu.memory_space<vmem>>, %arg11: memref<16x8xf32, #tpu.memory_space<vmem>>, %arg12: memref<4x16xf32, #tpu.memory_space<vmem>>, %arg13: memref<16x32xf32, #tpu.memory_space<vmem>>, %arg14: memref<32x4xf32, #tpu.memory_space<vmem>>, %arg15: memref<32x4xf32, #tpu.memory_space<vmem>>, %arg16: memref<32x16xf32, #tpu.memory_space<vmem>>, %arg17: memref<4x32xf32, #tpu.memory_space<vmem>>, %arg18: memref<32x64xf32, #tpu.memory_space<vmem>>, %arg19: memref<64x8xf32, #tpu.memory_space<vmem>>, %arg20: memref<64x8xf32, #tpu.memory_space<vmem>>, %arg21: memref<64x32xf32, #tpu.memory_space<vmem>>, %arg22: memref<4x64xf32, #tpu.memory_space<vmem>>, %arg23: memref<2x56xf32, #tpu.memory_space<vmem>>, %arg24: memref<56x8xf32, #tpu.memory_space<vmem>>, %arg25: memref<8x8xf32, #tpu.memory_space<vmem>>, %arg26: memref<5x8xf32, #tpu.memory_space<vmem>>, %arg27: memref<8x4xf32, #tpu.memory_space<vmem>>, %arg28: memref<16x4xf32, #tpu.memory_space<vmem>>) attributes {dimension_semantics = [], scalar_prefetch = 0 : i64, scratch_operands = 0 : i64, tpu.core_type = #tpu.core_type<tc>} {
    %c0 = arith.constant 0 : index
    %c0_0 = arith.constant 0 : index
    %0 = vector.load %arg0[%c0, %c0_0] : memref<16x8xf32, #tpu.memory_space<vmem>>, vector<16x8xf32>
    %c0_1 = arith.constant 0 : index
    %c0_2 = arith.constant 0 : index
    %1 = vector.load %arg1[%c0_1, %c0_2] : memref<16x16xf32, #tpu.memory_space<vmem>>, vector<16x16xf32>
    %c0_3 = arith.constant 0 : index
    %c0_4 = arith.constant 0 : index
    %2 = vector.load %arg2[%c0_3, %c0_4] : memref<16x16xf32, #tpu.memory_space<vmem>>, vector<16x16xf32>
    %c0_5 = arith.constant 0 : index
    %c0_6 = arith.constant 0 : index
    %3 = vector.load %arg3[%c0_5, %c0_6] : memref<16x3xf32, #tpu.memory_space<vmem>>, vector<16x3xf32>
    %c0_7 = arith.constant 0 : index
    %c0_8 = arith.constant 0 : index
    %4 = vector.load %arg4[%c0_7, %c0_8] : memref<16x128xf32, #tpu.memory_space<vmem>>, vector<16x128xf32>
    %c0_9 = arith.constant 0 : index
    %c0_10 = arith.constant 0 : index
    %5 = vector.load %arg5[%c0_9, %c0_10] : memref<8x128xf32, #tpu.memory_space<vmem>>, vector<8x128xf32>
    %c0_11 = arith.constant 0 : index
    %c0_12 = arith.constant 0 : index
    %6 = vector.load %arg6[%c0_11, %c0_12] : memref<128x8xf32, #tpu.memory_space<vmem>>, vector<128x8xf32>
    %c0_13 = arith.constant 0 : index
    %c0_14 = arith.constant 0 : index
    %7 = vector.load %arg7[%c0_13, %c0_14] : memref<8x64xf32, #tpu.memory_space<vmem>>, vector<8x64xf32>
    %cst = arith.constant dense<0.000000e+00> : vector<16x8xf32>
    %8 = tpu.matmul %2, %0, %cst {dimension_numbers = #tpu.dot_dimension_numbers<[1], [0], [0], [1], [0, 0, 1, 1], [], []>} : vector<16x16xf32>, vector<16x8xf32>, vector<16x8xf32> -> vector<16x8xf32>
    %9 = vector.extract_strided_slice %3 {offsets = [0, 0], sizes = [16, 1], strides = [1, 1]} : vector<16x3xf32> to vector<16x1xf32>
    %10 = vector.broadcast %9 : vector<16x1xf32> to vector<16x8xf32>
    %11 = arith.mulf %10, %8 : vector<16x8xf32>
    %cst_15 = arith.constant dense<0.000000e+00> : vector<16x8xf32>
    %12 = tpu.matmul %1, %11, %cst_15 {dimension_numbers = #tpu.dot_dimension_numbers<[1], [0], [0], [1], [0, 0, 1, 1], [], []>} : vector<16x16xf32>, vector<16x8xf32>, vector<16x8xf32> -> vector<16x8xf32>
    %13 = vector.extract_strided_slice %3 {offsets = [0, 1], sizes = [16, 1], strides = [1, 1]} : vector<16x3xf32> to vector<16x1xf32>
    %14 = vector.broadcast %13 : vector<16x1xf32> to vector<16x8xf32>
    %15 = arith.mulf %14, %8 : vector<16x8xf32>
    %cst_16 = arith.constant dense<0.000000e+00> : vector<16x8xf32>
    %16 = tpu.matmul %1, %15, %cst_16 {dimension_numbers = #tpu.dot_dimension_numbers<[1], [0], [0], [1], [0, 0, 1, 1], [], []>} : vector<16x16xf32>, vector<16x8xf32>, vector<16x8xf32> -> vector<16x8xf32>
    %17 = vector.extract_strided_slice %3 {offsets = [0, 2], sizes = [16, 1], strides = [1, 1]} : vector<16x3xf32> to vector<16x1xf32>
    %18 = vector.broadcast %17 : vector<16x1xf32> to vector<16x8xf32>
    %19 = arith.mulf %18, %8 : vector<16x8xf32>
    %cst_17 = arith.constant dense<0.000000e+00> : vector<16x8xf32>
    %20 = tpu.matmul %1, %19, %cst_17 {dimension_numbers = #tpu.dot_dimension_numbers<[1], [0], [0], [1], [0, 0, 1, 1], [], []>} : vector<16x16xf32>, vector<16x8xf32>, vector<16x8xf32> -> vector<16x8xf32>
    %c0_18 = arith.constant 0 : index
    %c0_19 = arith.constant 0 : index
    %21 = vector.load %arg8[%c0_18, %c0_19] : memref<8x16xf32, #tpu.memory_space<vmem>>, vector<8x16xf32>
    %c0_20 = arith.constant 0 : index
    %c0_21 = arith.constant 0 : index
    %22 = vector.load %arg9[%c0_20, %c0_21] : memref<16x2xf32, #tpu.memory_space<vmem>>, vector<16x2xf32>
    %c0_22 = arith.constant 0 : index
    %c0_23 = arith.constant 0 : index
    %23 = vector.load %arg10[%c0_22, %c0_23] : memref<16x2xf32, #tpu.memory_space<vmem>>, vector<16x2xf32>
    %c0_24 = arith.constant 0 : index
    %c0_25 = arith.constant 0 : index
    %24 = vector.load %arg11[%c0_24, %c0_25] : memref<16x8xf32, #tpu.memory_space<vmem>>, vector<16x8xf32>
    %c0_26 = arith.constant 0 : index
    %c0_27 = arith.constant 0 : index
    %25 = vector.load %arg12[%c0_26, %c0_27] : memref<4x16xf32, #tpu.memory_space<vmem>>, vector<4x16xf32>
    %26 = vector.extract_strided_slice %25 {offsets = [0, 0], sizes = [1, 16], strides = [1, 1]} : vector<4x16xf32> to vector<1x16xf32>
    %27 = vector.extract_strided_slice %25 {offsets = [1, 0], sizes = [1, 16], strides = [1, 1]} : vector<4x16xf32> to vector<1x16xf32>
    %28 = vector.extract_strided_slice %25 {offsets = [2, 0], sizes = [1, 16], strides = [1, 1]} : vector<4x16xf32> to vector<1x16xf32>
    %29 = vector.extract_strided_slice %25 {offsets = [3, 0], sizes = [1, 8], strides = [1, 1]} : vector<4x16xf32> to vector<1x8xf32>
    %30 = vector.extract_strided_slice %4 {offsets = [0, 0], sizes = [16, 32], strides = [1, 1]} : vector<16x128xf32> to vector<16x32xf32>
    %31 = vector.extract_strided_slice %5 {offsets = [0, 0], sizes = [2, 32], strides = [1, 1]} : vector<8x128xf32> to vector<2x32xf32>
    %32 = vector.extract_strided_slice %6 {offsets = [0, 0], sizes = [32, 2], strides = [1, 1]} : vector<128x8xf32> to vector<32x2xf32>
    %33 = vector.extract_strided_slice %7 {offsets = [0, 0], sizes = [2, 16], strides = [1, 1]} : vector<8x64xf32> to vector<2x16xf32>
    %cst_28 = arith.constant dense<0.000000e+00> : vector<16x16xf32>
    %34 = tpu.matmul %12, %21, %cst_28 {dimension_numbers = #tpu.dot_dimension_numbers<[1], [0], [0], [1], [0, 0, 1, 1], [], []>} : vector<16x8xf32>, vector<8x16xf32>, vector<16x16xf32> -> vector<16x16xf32>
    %cst_29 = arith.constant dense<0.000000e+00> : vector<16x2xf32>
    %35 = tpu.matmul %34, %23, %cst_29 {dimension_numbers = #tpu.dot_dimension_numbers<[1], [0], [0], [1], [0, 0, 1, 1], [], []>} : vector<16x16xf32>, vector<16x2xf32>, vector<16x2xf32> -> vector<16x2xf32>
    %cst_30 = arith.constant dense<0.000000e+00> : vector<16x2xf32>
    %36 = tpu.matmul %34, %22, %cst_30 {dimension_numbers = #tpu.dot_dimension_numbers<[1], [0], [0], [1], [0, 0, 1, 1], [], []>} : vector<16x16xf32>, vector<16x2xf32>, vector<16x2xf32> -> vector<16x2xf32>
    %37 = vector.extract_strided_slice %36 {offsets = [0, 0], sizes = [16, 1], strides = [1, 1]} : vector<16x2xf32> to vector<16x1xf32>
    %38 = tpu.transpose %37, [1, 0] : vector<16x1xf32> -> vector<1x16xf32>
    %39 = vector.extract_strided_slice %36 {offsets = [0, 1], sizes = [16, 1], strides = [1, 1]} : vector<16x2xf32> to vector<16x1xf32>
    %40 = tpu.transpose %39, [1, 0] : vector<16x1xf32> -> vector<1x16xf32>
    %41 = tpu.concatenate %38, %40 in 1 : vector<1x16xf32>, vector<1x16xf32> -> vector<1x32xf32>
    %cst_31 = arith.constant dense<0.000000e+00> : vector<16x32xf32>
    %42 = tpu.matmul %35, %31, %cst_31 {dimension_numbers = #tpu.dot_dimension_numbers<[1], [0], [0], [1], [0, 0, 1, 1], [], []>} : vector<16x2xf32>, vector<2x32xf32>, vector<16x32xf32> -> vector<16x32xf32>
    %43 = vector.broadcast %41 : vector<1x32xf32> to vector<16x32xf32>
    %44 = arith.addf %42, %43 : vector<16x32xf32>
    %cst_32 = arith.constant 0.000000e+00 : f32
    %45 = vector.broadcast %cst_32 : f32 to vector<16x32xf32>
    %46 = arith.cmpf oge, %44, %45 : vector<16x32xf32>
    %cst_33 = arith.constant 2.000000e-01 : f32
    %47 = vector.broadcast %cst_33 : f32 to vector<16x32xf32>
    %48 = arith.mulf %47, %44 : vector<16x32xf32>
    %49 = arith.select %46, %44, %48 : vector<16x32xi1>, vector<16x32xf32>
    %cst_34 = arith.constant 0.000000e+00 : f32
    %50 = vector.broadcast %cst_34 : f32 to vector<16x32xf32>
    %51 = arith.cmpf ogt, %30, %50 : vector<16x32xf32>
    %cst_35 = arith.constant -1.000000e+30 : f32
    %52 = vector.broadcast %cst_35 : f32 to vector<16x32xf32>
    %53 = arith.select %51, %49, %52 : vector<16x32xi1>, vector<16x32xf32>
    %54 = vector.extract_strided_slice %53 {offsets = [0, 0], sizes = [16, 16], strides = [1, 1]} : vector<16x32xf32> to vector<16x16xf32>
    %cst_36 = arith.constant dense<0xFF800000> : vector<16xf32>
    %55 = vector.multi_reduction <maximumf>, %54, %cst_36 [1] : vector<16x16xf32> to vector<16xf32>
    %56 = vector.shape_cast %55 : vector<16xf32> to vector<16x1xf32>
    %57 = vector.extract_strided_slice %53 {offsets = [0, 16], sizes = [16, 16], strides = [1, 1]} : vector<16x32xf32> to vector<16x16xf32>
    %cst_37 = arith.constant dense<0xFF800000> : vector<16xf32>
    %58 = vector.multi_reduction <maximumf>, %57, %cst_37 [1] : vector<16x16xf32> to vector<16xf32>
    %59 = vector.shape_cast %58 : vector<16xf32> to vector<16x1xf32>
    %60 = tpu.concatenate %56, %59 in 1 : vector<16x1xf32>, vector<16x1xf32> -> vector<16x2xf32>
    %cst_38 = arith.constant dense<0.000000e+00> : vector<16x32xf32>
    %61 = tpu.matmul %60, %31, %cst_38 {dimension_numbers = #tpu.dot_dimension_numbers<[1], [0], [0], [1], [0, 0, 1, 1], [], []>} : vector<16x2xf32>, vector<2x32xf32>, vector<16x32xf32> -> vector<16x32xf32>
    %62 = arith.subf %53, %61 : vector<16x32xf32>
    %63 = math.exp %62 : vector<16x32xf32>
    %cst_39 = arith.constant 0.000000e+00 : f32
    %64 = vector.broadcast %cst_39 : f32 to vector<16x32xf32>
    %65 = arith.cmpf ogt, %30, %64 : vector<16x32xf32>
    %cst_40 = arith.constant 0.000000e+00 : f32
    %66 = vector.broadcast %cst_40 : f32 to vector<16x32xf32>
    %67 = arith.select %65, %63, %66 : vector<16x32xi1>, vector<16x32xf32>
    %cst_41 = arith.constant dense<0.000000e+00> : vector<16x2xf32>
    %68 = tpu.matmul %67, %32, %cst_41 {dimension_numbers = #tpu.dot_dimension_numbers<[1], [0], [0], [1], [0, 0, 1, 1], [], []>} : vector<16x32xf32>, vector<32x2xf32>, vector<16x2xf32> -> vector<16x2xf32>
    %69 = tpu.reciprocal %68 {approx = true} : vector<16x2xf32> -> vector<16x2xf32>
    %cst_42 = arith.constant dense<0.000000e+00> : vector<16x32xf32>
    %70 = tpu.matmul %69, %31, %cst_42 {dimension_numbers = #tpu.dot_dimension_numbers<[1], [0], [0], [1], [0, 0, 1, 1], [], []>} : vector<16x2xf32>, vector<2x32xf32>, vector<16x32xf32> -> vector<16x32xf32>
    %71 = arith.mulf %67, %70 : vector<16x32xf32>
    %72 = vector.extract_strided_slice %33 {offsets = [0, 0], sizes = [1, 16], strides = [1, 1]} : vector<2x16xf32> to vector<1x16xf32>
    %73 = vector.broadcast %72 : vector<1x16xf32> to vector<16x16xf32>
    %74 = arith.mulf %34, %73 : vector<16x16xf32>
    %75 = vector.extract_strided_slice %33 {offsets = [1, 0], sizes = [1, 16], strides = [1, 1]} : vector<2x16xf32> to vector<1x16xf32>
    %76 = vector.broadcast %75 : vector<1x16xf32> to vector<16x16xf32>
    %77 = arith.mulf %34, %76 : vector<16x16xf32>
    %78 = tpu.concatenate %74, %77 in 0 : vector<16x16xf32>, vector<16x16xf32> -> vector<32x16xf32>
    %cst_43 = arith.constant dense<0.000000e+00> : vector<16x16xf32>
    %79 = tpu.matmul %71, %78, %cst_43 {dimension_numbers = #tpu.dot_dimension_numbers<[1], [0], [0], [1], [0, 0, 1, 1], [], []>} : vector<16x32xf32>, vector<32x16xf32>, vector<16x16xf32> -> vector<16x16xf32>
    %80 = vector.broadcast %26 : vector<1x16xf32> to vector<16x16xf32>
    %81 = arith.addf %79, %80 : vector<16x16xf32>
    %82 = vector.broadcast %27 : vector<1x16xf32> to vector<16x16xf32>
    %83 = arith.mulf %81, %82 : vector<16x16xf32>
    %84 = vector.broadcast %28 : vector<1x16xf32> to vector<16x16xf32>
    %85 = arith.addf %83, %84 : vector<16x16xf32>
    %cst_44 = arith.constant 0.000000e+00 : f32
    %86 = vector.broadcast %cst_44 : f32 to vector<16x16xf32>
    %87 = arith.cmpf ogt, %85, %86 : vector<16x16xf32>
    %cst_45 = arith.constant 0.000000e+00 : f32
    %88 = vector.broadcast %cst_45 : f32 to vector<16x16xf32>
    %89 = arith.minimumf %85, %88 : vector<16x16xf32>
    %90 = math.exp %89 : vector<16x16xf32>
    %cst_46 = arith.constant 1.000000e+00 : f32
    %91 = vector.broadcast %cst_46 : f32 to vector<16x16xf32>
    %92 = arith.subf %90, %91 : vector<16x16xf32>
    %93 = arith.select %87, %85, %92 : vector<16x16xi1>, vector<16x16xf32>
    %cst_47 = arith.constant dense<0.000000e+00> : vector<16x8xf32>
    %94 = tpu.matmul %93, %24, %cst_47 {dimension_numbers = #tpu.dot_dimension_numbers<[1], [0], [0], [1], [0, 0, 1, 1], [], []>} : vector<16x16xf32>, vector<16x8xf32>, vector<16x8xf32> -> vector<16x8xf32>
    %95 = vector.broadcast %29 : vector<1x8xf32> to vector<16x8xf32>
    %96 = arith.addf %94, %95 : vector<16x8xf32>
    %97 = tpu.concatenate %16, %20 in 1 : vector<16x8xf32>, vector<16x8xf32> -> vector<16x16xf32>
    %98 = math.absf %97 : vector<16x16xf32>
    %cst_48 = arith.constant dense<0.000000e+00> : vector<16x16xf32>
    %99 = tpu.matmul %2, %98, %cst_48 {dimension_numbers = #tpu.dot_dimension_numbers<[1], [0], [0], [1], [0, 0, 1, 1], [], []>} : vector<16x16xf32>, vector<16x16xf32>, vector<16x16xf32> -> vector<16x16xf32>
    %100 = vector.extract_strided_slice %3 {offsets = [0, 0], sizes = [16, 1], strides = [1, 1]} : vector<16x3xf32> to vector<16x1xf32>
    %101 = vector.broadcast %100 : vector<16x1xf32> to vector<16x16xf32>
    %102 = arith.mulf %101, %99 : vector<16x16xf32>
    %cst_49 = arith.constant dense<0.000000e+00> : vector<16x16xf32>
    %103 = tpu.matmul %1, %102, %cst_49 {dimension_numbers = #tpu.dot_dimension_numbers<[1], [0], [0], [1], [0, 0, 1, 1], [], []>} : vector<16x16xf32>, vector<16x16xf32>, vector<16x16xf32> -> vector<16x16xf32>
    %104 = vector.extract_strided_slice %3 {offsets = [0, 1], sizes = [16, 1], strides = [1, 1]} : vector<16x3xf32> to vector<16x1xf32>
    %105 = vector.broadcast %104 : vector<16x1xf32> to vector<16x16xf32>
    %106 = arith.mulf %105, %99 : vector<16x16xf32>
    %cst_50 = arith.constant dense<0.000000e+00> : vector<16x16xf32>
    %107 = tpu.matmul %1, %106, %cst_50 {dimension_numbers = #tpu.dot_dimension_numbers<[1], [0], [0], [1], [0, 0, 1, 1], [], []>} : vector<16x16xf32>, vector<16x16xf32>, vector<16x16xf32> -> vector<16x16xf32>
    %108 = vector.extract_strided_slice %3 {offsets = [0, 2], sizes = [16, 1], strides = [1, 1]} : vector<16x3xf32> to vector<16x1xf32>
    %109 = vector.broadcast %108 : vector<16x1xf32> to vector<16x16xf32>
    %110 = arith.mulf %109, %99 : vector<16x16xf32>
    %cst_51 = arith.constant dense<0.000000e+00> : vector<16x16xf32>
    %111 = tpu.matmul %1, %110, %cst_51 {dimension_numbers = #tpu.dot_dimension_numbers<[1], [0], [0], [1], [0, 0, 1, 1], [], []>} : vector<16x16xf32>, vector<16x16xf32>, vector<16x16xf32> -> vector<16x16xf32>
    %c0_52 = arith.constant 0 : index
    %c0_53 = arith.constant 0 : index
    %112 = vector.load %arg13[%c0_52, %c0_53] : memref<16x32xf32, #tpu.memory_space<vmem>>, vector<16x32xf32>
    %c0_54 = arith.constant 0 : index
    %c0_55 = arith.constant 0 : index
    %113 = vector.load %arg14[%c0_54, %c0_55] : memref<32x4xf32, #tpu.memory_space<vmem>>, vector<32x4xf32>
    %c0_56 = arith.constant 0 : index
    %c0_57 = arith.constant 0 : index
    %114 = vector.load %arg15[%c0_56, %c0_57] : memref<32x4xf32, #tpu.memory_space<vmem>>, vector<32x4xf32>
    %c0_58 = arith.constant 0 : index
    %c0_59 = arith.constant 0 : index
    %115 = vector.load %arg16[%c0_58, %c0_59] : memref<32x16xf32, #tpu.memory_space<vmem>>, vector<32x16xf32>
    %c0_60 = arith.constant 0 : index
    %c0_61 = arith.constant 0 : index
    %116 = vector.load %arg17[%c0_60, %c0_61] : memref<4x32xf32, #tpu.memory_space<vmem>>, vector<4x32xf32>
    %117 = vector.extract_strided_slice %116 {offsets = [0, 0], sizes = [1, 32], strides = [1, 1]} : vector<4x32xf32> to vector<1x32xf32>
    %118 = vector.extract_strided_slice %116 {offsets = [1, 0], sizes = [1, 32], strides = [1, 1]} : vector<4x32xf32> to vector<1x32xf32>
    %119 = vector.extract_strided_slice %116 {offsets = [2, 0], sizes = [1, 32], strides = [1, 1]} : vector<4x32xf32> to vector<1x32xf32>
    %120 = vector.extract_strided_slice %116 {offsets = [3, 0], sizes = [1, 16], strides = [1, 1]} : vector<4x32xf32> to vector<1x16xf32>
    %121 = vector.extract_strided_slice %4 {offsets = [0, 0], sizes = [16, 64], strides = [1, 1]} : vector<16x128xf32> to vector<16x64xf32>
    %122 = vector.extract_strided_slice %5 {offsets = [0, 0], sizes = [4, 64], strides = [1, 1]} : vector<8x128xf32> to vector<4x64xf32>
    %123 = vector.extract_strided_slice %6 {offsets = [0, 0], sizes = [64, 4], strides = [1, 1]} : vector<128x8xf32> to vector<64x4xf32>
    %124 = vector.extract_strided_slice %7 {offsets = [0, 0], sizes = [4, 32], strides = [1, 1]} : vector<8x64xf32> to vector<4x32xf32>
    %cst_62 = arith.constant dense<0.000000e+00> : vector<16x32xf32>
    %125 = tpu.matmul %103, %112, %cst_62 {dimension_numbers = #tpu.dot_dimension_numbers<[1], [0], [0], [1], [0, 0, 1, 1], [], []>} : vector<16x16xf32>, vector<16x32xf32>, vector<16x32xf32> -> vector<16x32xf32>
    %cst_63 = arith.constant dense<0.000000e+00> : vector<16x4xf32>
    %126 = tpu.matmul %125, %114, %cst_63 {dimension_numbers = #tpu.dot_dimension_numbers<[1], [0], [0], [1], [0, 0, 1, 1], [], []>} : vector<16x32xf32>, vector<32x4xf32>, vector<16x4xf32> -> vector<16x4xf32>
    %cst_64 = arith.constant dense<0.000000e+00> : vector<16x4xf32>
    %127 = tpu.matmul %125, %113, %cst_64 {dimension_numbers = #tpu.dot_dimension_numbers<[1], [0], [0], [1], [0, 0, 1, 1], [], []>} : vector<16x32xf32>, vector<32x4xf32>, vector<16x4xf32> -> vector<16x4xf32>
    %128 = vector.extract_strided_slice %127 {offsets = [0, 0], sizes = [16, 1], strides = [1, 1]} : vector<16x4xf32> to vector<16x1xf32>
    %129 = tpu.transpose %128, [1, 0] : vector<16x1xf32> -> vector<1x16xf32>
    %130 = vector.extract_strided_slice %127 {offsets = [0, 1], sizes = [16, 1], strides = [1, 1]} : vector<16x4xf32> to vector<16x1xf32>
    %131 = tpu.transpose %130, [1, 0] : vector<16x1xf32> -> vector<1x16xf32>
    %132 = vector.extract_strided_slice %127 {offsets = [0, 2], sizes = [16, 1], strides = [1, 1]} : vector<16x4xf32> to vector<16x1xf32>
    %133 = tpu.transpose %132, [1, 0] : vector<16x1xf32> -> vector<1x16xf32>
    %134 = vector.extract_strided_slice %127 {offsets = [0, 3], sizes = [16, 1], strides = [1, 1]} : vector<16x4xf32> to vector<16x1xf32>
    %135 = tpu.transpose %134, [1, 0] : vector<16x1xf32> -> vector<1x16xf32>
    %136 = tpu.concatenate %129, %131, %133, %135 in 1 : vector<1x16xf32>, vector<1x16xf32>, vector<1x16xf32>, vector<1x16xf32> -> vector<1x64xf32>
    %cst_65 = arith.constant dense<0.000000e+00> : vector<16x64xf32>
    %137 = tpu.matmul %126, %122, %cst_65 {dimension_numbers = #tpu.dot_dimension_numbers<[1], [0], [0], [1], [0, 0, 1, 1], [], []>} : vector<16x4xf32>, vector<4x64xf32>, vector<16x64xf32> -> vector<16x64xf32>
    %138 = vector.broadcast %136 : vector<1x64xf32> to vector<16x64xf32>
    %139 = arith.addf %137, %138 : vector<16x64xf32>
    %cst_66 = arith.constant 0.000000e+00 : f32
    %140 = vector.broadcast %cst_66 : f32 to vector<16x64xf32>
    %141 = arith.cmpf oge, %139, %140 : vector<16x64xf32>
    %cst_67 = arith.constant 2.000000e-01 : f32
    %142 = vector.broadcast %cst_67 : f32 to vector<16x64xf32>
    %143 = arith.mulf %142, %139 : vector<16x64xf32>
    %144 = arith.select %141, %139, %143 : vector<16x64xi1>, vector<16x64xf32>
    %cst_68 = arith.constant 0.000000e+00 : f32
    %145 = vector.broadcast %cst_68 : f32 to vector<16x64xf32>
    %146 = arith.cmpf ogt, %121, %145 : vector<16x64xf32>
    %cst_69 = arith.constant -1.000000e+30 : f32
    %147 = vector.broadcast %cst_69 : f32 to vector<16x64xf32>
    %148 = arith.select %146, %144, %147 : vector<16x64xi1>, vector<16x64xf32>
    %149 = vector.extract_strided_slice %148 {offsets = [0, 0], sizes = [16, 16], strides = [1, 1]} : vector<16x64xf32> to vector<16x16xf32>
    %cst_70 = arith.constant dense<0xFF800000> : vector<16xf32>
    %150 = vector.multi_reduction <maximumf>, %149, %cst_70 [1] : vector<16x16xf32> to vector<16xf32>
    %151 = vector.shape_cast %150 : vector<16xf32> to vector<16x1xf32>
    %152 = vector.extract_strided_slice %148 {offsets = [0, 16], sizes = [16, 16], strides = [1, 1]} : vector<16x64xf32> to vector<16x16xf32>
    %cst_71 = arith.constant dense<0xFF800000> : vector<16xf32>
    %153 = vector.multi_reduction <maximumf>, %152, %cst_71 [1] : vector<16x16xf32> to vector<16xf32>
    %154 = vector.shape_cast %153 : vector<16xf32> to vector<16x1xf32>
    %155 = vector.extract_strided_slice %148 {offsets = [0, 32], sizes = [16, 16], strides = [1, 1]} : vector<16x64xf32> to vector<16x16xf32>
    %cst_72 = arith.constant dense<0xFF800000> : vector<16xf32>
    %156 = vector.multi_reduction <maximumf>, %155, %cst_72 [1] : vector<16x16xf32> to vector<16xf32>
    %157 = vector.shape_cast %156 : vector<16xf32> to vector<16x1xf32>
    %158 = vector.extract_strided_slice %148 {offsets = [0, 48], sizes = [16, 16], strides = [1, 1]} : vector<16x64xf32> to vector<16x16xf32>
    %cst_73 = arith.constant dense<0xFF800000> : vector<16xf32>
    %159 = vector.multi_reduction <maximumf>, %158, %cst_73 [1] : vector<16x16xf32> to vector<16xf32>
    %160 = vector.shape_cast %159 : vector<16xf32> to vector<16x1xf32>
    %161 = tpu.concatenate %151, %154, %157, %160 in 1 : vector<16x1xf32>, vector<16x1xf32>, vector<16x1xf32>, vector<16x1xf32> -> vector<16x4xf32>
    %cst_74 = arith.constant dense<0.000000e+00> : vector<16x64xf32>
    %162 = tpu.matmul %161, %122, %cst_74 {dimension_numbers = #tpu.dot_dimension_numbers<[1], [0], [0], [1], [0, 0, 1, 1], [], []>} : vector<16x4xf32>, vector<4x64xf32>, vector<16x64xf32> -> vector<16x64xf32>
    %163 = arith.subf %148, %162 : vector<16x64xf32>
    %164 = math.exp %163 : vector<16x64xf32>
    %cst_75 = arith.constant 0.000000e+00 : f32
    %165 = vector.broadcast %cst_75 : f32 to vector<16x64xf32>
    %166 = arith.cmpf ogt, %121, %165 : vector<16x64xf32>
    %cst_76 = arith.constant 0.000000e+00 : f32
    %167 = vector.broadcast %cst_76 : f32 to vector<16x64xf32>
    %168 = arith.select %166, %164, %167 : vector<16x64xi1>, vector<16x64xf32>
    %cst_77 = arith.constant dense<0.000000e+00> : vector<16x4xf32>
    %169 = tpu.matmul %168, %123, %cst_77 {dimension_numbers = #tpu.dot_dimension_numbers<[1], [0], [0], [1], [0, 0, 1, 1], [], []>} : vector<16x64xf32>, vector<64x4xf32>, vector<16x4xf32> -> vector<16x4xf32>
    %170 = tpu.reciprocal %169 {approx = true} : vector<16x4xf32> -> vector<16x4xf32>
    %cst_78 = arith.constant dense<0.000000e+00> : vector<16x64xf32>
    %171 = tpu.matmul %170, %122, %cst_78 {dimension_numbers = #tpu.dot_dimension_numbers<[1], [0], [0], [1], [0, 0, 1, 1], [], []>} : vector<16x4xf32>, vector<4x64xf32>, vector<16x64xf32> -> vector<16x64xf32>
    %172 = arith.mulf %168, %171 : vector<16x64xf32>
    %173 = vector.extract_strided_slice %124 {offsets = [0, 0], sizes = [1, 32], strides = [1, 1]} : vector<4x32xf32> to vector<1x32xf32>
    %174 = vector.broadcast %173 : vector<1x32xf32> to vector<16x32xf32>
    %175 = arith.mulf %125, %174 : vector<16x32xf32>
    %176 = vector.extract_strided_slice %124 {offsets = [1, 0], sizes = [1, 32], strides = [1, 1]} : vector<4x32xf32> to vector<1x32xf32>
    %177 = vector.broadcast %176 : vector<1x32xf32> to vector<16x32xf32>
    %178 = arith.mulf %125, %177 : vector<16x32xf32>
    %179 = vector.extract_strided_slice %124 {offsets = [2, 0], sizes = [1, 32], strides = [1, 1]} : vector<4x32xf32> to vector<1x32xf32>
    %180 = vector.broadcast %179 : vector<1x32xf32> to vector<16x32xf32>
    %181 = arith.mulf %125, %180 : vector<16x32xf32>
    %182 = vector.extract_strided_slice %124 {offsets = [3, 0], sizes = [1, 32], strides = [1, 1]} : vector<4x32xf32> to vector<1x32xf32>
    %183 = vector.broadcast %182 : vector<1x32xf32> to vector<16x32xf32>
    %184 = arith.mulf %125, %183 : vector<16x32xf32>
    %185 = tpu.concatenate %175, %178, %181, %184 in 0 : vector<16x32xf32>, vector<16x32xf32>, vector<16x32xf32>, vector<16x32xf32> -> vector<64x32xf32>
    %cst_79 = arith.constant dense<0.000000e+00> : vector<16x32xf32>
    %186 = tpu.matmul %172, %185, %cst_79 {dimension_numbers = #tpu.dot_dimension_numbers<[1], [0], [0], [1], [0, 0, 1, 1], [], []>} : vector<16x64xf32>, vector<64x32xf32>, vector<16x32xf32> -> vector<16x32xf32>
    %187 = vector.broadcast %117 : vector<1x32xf32> to vector<16x32xf32>
    %188 = arith.addf %186, %187 : vector<16x32xf32>
    %189 = vector.broadcast %118 : vector<1x32xf32> to vector<16x32xf32>
    %190 = arith.mulf %188, %189 : vector<16x32xf32>
    %191 = vector.broadcast %119 : vector<1x32xf32> to vector<16x32xf32>
    %192 = arith.addf %190, %191 : vector<16x32xf32>
    %cst_80 = arith.constant 0.000000e+00 : f32
    %193 = vector.broadcast %cst_80 : f32 to vector<16x32xf32>
    %194 = arith.cmpf ogt, %192, %193 : vector<16x32xf32>
    %cst_81 = arith.constant 0.000000e+00 : f32
    %195 = vector.broadcast %cst_81 : f32 to vector<16x32xf32>
    %196 = arith.minimumf %192, %195 : vector<16x32xf32>
    %197 = math.exp %196 : vector<16x32xf32>
    %cst_82 = arith.constant 1.000000e+00 : f32
    %198 = vector.broadcast %cst_82 : f32 to vector<16x32xf32>
    %199 = arith.subf %197, %198 : vector<16x32xf32>
    %200 = arith.select %194, %192, %199 : vector<16x32xi1>, vector<16x32xf32>
    %cst_83 = arith.constant dense<0.000000e+00> : vector<16x16xf32>
    %201 = tpu.matmul %200, %115, %cst_83 {dimension_numbers = #tpu.dot_dimension_numbers<[1], [0], [0], [1], [0, 0, 1, 1], [], []>} : vector<16x32xf32>, vector<32x16xf32>, vector<16x16xf32> -> vector<16x16xf32>
    %202 = vector.broadcast %120 : vector<1x16xf32> to vector<16x16xf32>
    %203 = arith.addf %201, %202 : vector<16x16xf32>
    %204 = vector.extract_strided_slice %107 {offsets = [0, 0], sizes = [16, 8], strides = [1, 1]} : vector<16x16xf32> to vector<16x8xf32>
    %205 = vector.extract_strided_slice %111 {offsets = [0, 0], sizes = [16, 8], strides = [1, 1]} : vector<16x16xf32> to vector<16x8xf32>
    %206 = vector.extract_strided_slice %107 {offsets = [0, 8], sizes = [16, 8], strides = [1, 1]} : vector<16x16xf32> to vector<16x8xf32>
    %207 = vector.extract_strided_slice %111 {offsets = [0, 8], sizes = [16, 8], strides = [1, 1]} : vector<16x16xf32> to vector<16x8xf32>
    %208 = tpu.concatenate %204, %205, %206, %207 in 1 : vector<16x8xf32>, vector<16x8xf32>, vector<16x8xf32>, vector<16x8xf32> -> vector<16x32xf32>
    %209 = math.absf %208 : vector<16x32xf32>
    %cst_84 = arith.constant dense<0.000000e+00> : vector<16x32xf32>
    %210 = tpu.matmul %2, %209, %cst_84 {dimension_numbers = #tpu.dot_dimension_numbers<[1], [0], [0], [1], [0, 0, 1, 1], [], []>} : vector<16x16xf32>, vector<16x32xf32>, vector<16x32xf32> -> vector<16x32xf32>
    %211 = vector.extract_strided_slice %3 {offsets = [0, 0], sizes = [16, 1], strides = [1, 1]} : vector<16x3xf32> to vector<16x1xf32>
    %212 = vector.broadcast %211 : vector<16x1xf32> to vector<16x32xf32>
    %213 = arith.mulf %212, %210 : vector<16x32xf32>
    %cst_85 = arith.constant dense<0.000000e+00> : vector<16x32xf32>
    %214 = tpu.matmul %1, %213, %cst_85 {dimension_numbers = #tpu.dot_dimension_numbers<[1], [0], [0], [1], [0, 0, 1, 1], [], []>} : vector<16x16xf32>, vector<16x32xf32>, vector<16x32xf32> -> vector<16x32xf32>
    %c0_86 = arith.constant 0 : index
    %c0_87 = arith.constant 0 : index
    %215 = vector.load %arg18[%c0_86, %c0_87] : memref<32x64xf32, #tpu.memory_space<vmem>>, vector<32x64xf32>
    %c0_88 = arith.constant 0 : index
    %c0_89 = arith.constant 0 : index
    %216 = vector.load %arg19[%c0_88, %c0_89] : memref<64x8xf32, #tpu.memory_space<vmem>>, vector<64x8xf32>
    %c0_90 = arith.constant 0 : index
    %c0_91 = arith.constant 0 : index
    %217 = vector.load %arg20[%c0_90, %c0_91] : memref<64x8xf32, #tpu.memory_space<vmem>>, vector<64x8xf32>
    %c0_92 = arith.constant 0 : index
    %c0_93 = arith.constant 0 : index
    %218 = vector.load %arg21[%c0_92, %c0_93] : memref<64x32xf32, #tpu.memory_space<vmem>>, vector<64x32xf32>
    %c0_94 = arith.constant 0 : index
    %c0_95 = arith.constant 0 : index
    %219 = vector.load %arg22[%c0_94, %c0_95] : memref<4x64xf32, #tpu.memory_space<vmem>>, vector<4x64xf32>
    %220 = vector.extract_strided_slice %219 {offsets = [0, 0], sizes = [1, 64], strides = [1, 1]} : vector<4x64xf32> to vector<1x64xf32>
    %221 = vector.extract_strided_slice %219 {offsets = [1, 0], sizes = [1, 64], strides = [1, 1]} : vector<4x64xf32> to vector<1x64xf32>
    %222 = vector.extract_strided_slice %219 {offsets = [2, 0], sizes = [1, 64], strides = [1, 1]} : vector<4x64xf32> to vector<1x64xf32>
    %223 = vector.extract_strided_slice %219 {offsets = [3, 0], sizes = [1, 32], strides = [1, 1]} : vector<4x64xf32> to vector<1x32xf32>
    %cst_96 = arith.constant dense<0.000000e+00> : vector<16x64xf32>
    %224 = tpu.matmul %214, %215, %cst_96 {dimension_numbers = #tpu.dot_dimension_numbers<[1], [0], [0], [1], [0, 0, 1, 1], [], []>} : vector<16x32xf32>, vector<32x64xf32>, vector<16x64xf32> -> vector<16x64xf32>
    %cst_97 = arith.constant dense<0.000000e+00> : vector<16x8xf32>
    %225 = tpu.matmul %224, %217, %cst_97 {dimension_numbers = #tpu.dot_dimension_numbers<[1], [0], [0], [1], [0, 0, 1, 1], [], []>} : vector<16x64xf32>, vector<64x8xf32>, vector<16x8xf32> -> vector<16x8xf32>
    %cst_98 = arith.constant dense<0.000000e+00> : vector<16x8xf32>
    %226 = tpu.matmul %224, %216, %cst_98 {dimension_numbers = #tpu.dot_dimension_numbers<[1], [0], [0], [1], [0, 0, 1, 1], [], []>} : vector<16x64xf32>, vector<64x8xf32>, vector<16x8xf32> -> vector<16x8xf32>
    %227 = vector.extract_strided_slice %226 {offsets = [0, 0], sizes = [16, 1], strides = [1, 1]} : vector<16x8xf32> to vector<16x1xf32>
    %228 = tpu.transpose %227, [1, 0] : vector<16x1xf32> -> vector<1x16xf32>
    %229 = vector.extract_strided_slice %226 {offsets = [0, 1], sizes = [16, 1], strides = [1, 1]} : vector<16x8xf32> to vector<16x1xf32>
    %230 = tpu.transpose %229, [1, 0] : vector<16x1xf32> -> vector<1x16xf32>
    %231 = vector.extract_strided_slice %226 {offsets = [0, 2], sizes = [16, 1], strides = [1, 1]} : vector<16x8xf32> to vector<16x1xf32>
    %232 = tpu.transpose %231, [1, 0] : vector<16x1xf32> -> vector<1x16xf32>
    %233 = vector.extract_strided_slice %226 {offsets = [0, 3], sizes = [16, 1], strides = [1, 1]} : vector<16x8xf32> to vector<16x1xf32>
    %234 = tpu.transpose %233, [1, 0] : vector<16x1xf32> -> vector<1x16xf32>
    %235 = vector.extract_strided_slice %226 {offsets = [0, 4], sizes = [16, 1], strides = [1, 1]} : vector<16x8xf32> to vector<16x1xf32>
    %236 = tpu.transpose %235, [1, 0] : vector<16x1xf32> -> vector<1x16xf32>
    %237 = vector.extract_strided_slice %226 {offsets = [0, 5], sizes = [16, 1], strides = [1, 1]} : vector<16x8xf32> to vector<16x1xf32>
    %238 = tpu.transpose %237, [1, 0] : vector<16x1xf32> -> vector<1x16xf32>
    %239 = vector.extract_strided_slice %226 {offsets = [0, 6], sizes = [16, 1], strides = [1, 1]} : vector<16x8xf32> to vector<16x1xf32>
    %240 = tpu.transpose %239, [1, 0] : vector<16x1xf32> -> vector<1x16xf32>
    %241 = vector.extract_strided_slice %226 {offsets = [0, 7], sizes = [16, 1], strides = [1, 1]} : vector<16x8xf32> to vector<16x1xf32>
    %242 = tpu.transpose %241, [1, 0] : vector<16x1xf32> -> vector<1x16xf32>
    %243 = tpu.concatenate %228, %230, %232, %234, %236, %238, %240, %242 in 1 : vector<1x16xf32>, vector<1x16xf32>, vector<1x16xf32>, vector<1x16xf32>, vector<1x16xf32>, vector<1x16xf32>, vector<1x16xf32>, vector<1x16xf32> -> vector<1x128xf32>
    %cst_99 = arith.constant dense<0.000000e+00> : vector<16x128xf32>
    %244 = tpu.matmul %225, %5, %cst_99 {dimension_numbers = #tpu.dot_dimension_numbers<[1], [0], [0], [1], [0, 0, 1, 1], [], []>} : vector<16x8xf32>, vector<8x128xf32>, vector<16x128xf32> -> vector<16x128xf32>
    %245 = vector.broadcast %243 : vector<1x128xf32> to vector<16x128xf32>
    %246 = arith.addf %244, %245 : vector<16x128xf32>
    %cst_100 = arith.constant 0.000000e+00 : f32
    %247 = vector.broadcast %cst_100 : f32 to vector<16x128xf32>
    %248 = arith.cmpf oge, %246, %247 : vector<16x128xf32>
    %cst_101 = arith.constant 2.000000e-01 : f32
    %249 = vector.broadcast %cst_101 : f32 to vector<16x128xf32>
    %250 = arith.mulf %249, %246 : vector<16x128xf32>
    %251 = arith.select %248, %246, %250 : vector<16x128xi1>, vector<16x128xf32>
    %cst_102 = arith.constant 0.000000e+00 : f32
    %252 = vector.broadcast %cst_102 : f32 to vector<16x128xf32>
    %253 = arith.cmpf ogt, %4, %252 : vector<16x128xf32>
    %cst_103 = arith.constant -1.000000e+30 : f32
    %254 = vector.broadcast %cst_103 : f32 to vector<16x128xf32>
    %255 = arith.select %253, %251, %254 : vector<16x128xi1>, vector<16x128xf32>
    %256 = vector.extract_strided_slice %255 {offsets = [0, 0], sizes = [16, 16], strides = [1, 1]} : vector<16x128xf32> to vector<16x16xf32>
    %cst_104 = arith.constant dense<0xFF800000> : vector<16xf32>
    %257 = vector.multi_reduction <maximumf>, %256, %cst_104 [1] : vector<16x16xf32> to vector<16xf32>
    %258 = vector.shape_cast %257 : vector<16xf32> to vector<16x1xf32>
    %259 = vector.extract_strided_slice %255 {offsets = [0, 16], sizes = [16, 16], strides = [1, 1]} : vector<16x128xf32> to vector<16x16xf32>
    %cst_105 = arith.constant dense<0xFF800000> : vector<16xf32>
    %260 = vector.multi_reduction <maximumf>, %259, %cst_105 [1] : vector<16x16xf32> to vector<16xf32>
    %261 = vector.shape_cast %260 : vector<16xf32> to vector<16x1xf32>
    %262 = vector.extract_strided_slice %255 {offsets = [0, 32], sizes = [16, 16], strides = [1, 1]} : vector<16x128xf32> to vector<16x16xf32>
    %cst_106 = arith.constant dense<0xFF800000> : vector<16xf32>
    %263 = vector.multi_reduction <maximumf>, %262, %cst_106 [1] : vector<16x16xf32> to vector<16xf32>
    %264 = vector.shape_cast %263 : vector<16xf32> to vector<16x1xf32>
    %265 = vector.extract_strided_slice %255 {offsets = [0, 48], sizes = [16, 16], strides = [1, 1]} : vector<16x128xf32> to vector<16x16xf32>
    %cst_107 = arith.constant dense<0xFF800000> : vector<16xf32>
    %266 = vector.multi_reduction <maximumf>, %265, %cst_107 [1] : vector<16x16xf32> to vector<16xf32>
    %267 = vector.shape_cast %266 : vector<16xf32> to vector<16x1xf32>
    %268 = vector.extract_strided_slice %255 {offsets = [0, 64], sizes = [16, 16], strides = [1, 1]} : vector<16x128xf32> to vector<16x16xf32>
    %cst_108 = arith.constant dense<0xFF800000> : vector<16xf32>
    %269 = vector.multi_reduction <maximumf>, %268, %cst_108 [1] : vector<16x16xf32> to vector<16xf32>
    %270 = vector.shape_cast %269 : vector<16xf32> to vector<16x1xf32>
    %271 = vector.extract_strided_slice %255 {offsets = [0, 80], sizes = [16, 16], strides = [1, 1]} : vector<16x128xf32> to vector<16x16xf32>
    %cst_109 = arith.constant dense<0xFF800000> : vector<16xf32>
    %272 = vector.multi_reduction <maximumf>, %271, %cst_109 [1] : vector<16x16xf32> to vector<16xf32>
    %273 = vector.shape_cast %272 : vector<16xf32> to vector<16x1xf32>
    %274 = vector.extract_strided_slice %255 {offsets = [0, 96], sizes = [16, 16], strides = [1, 1]} : vector<16x128xf32> to vector<16x16xf32>
    %cst_110 = arith.constant dense<0xFF800000> : vector<16xf32>
    %275 = vector.multi_reduction <maximumf>, %274, %cst_110 [1] : vector<16x16xf32> to vector<16xf32>
    %276 = vector.shape_cast %275 : vector<16xf32> to vector<16x1xf32>
    %277 = vector.extract_strided_slice %255 {offsets = [0, 112], sizes = [16, 16], strides = [1, 1]} : vector<16x128xf32> to vector<16x16xf32>
    %cst_111 = arith.constant dense<0xFF800000> : vector<16xf32>
    %278 = vector.multi_reduction <maximumf>, %277, %cst_111 [1] : vector<16x16xf32> to vector<16xf32>
    %279 = vector.shape_cast %278 : vector<16xf32> to vector<16x1xf32>
    %280 = tpu.concatenate %258, %261, %264, %267, %270, %273, %276, %279 in 1 : vector<16x1xf32>, vector<16x1xf32>, vector<16x1xf32>, vector<16x1xf32>, vector<16x1xf32>, vector<16x1xf32>, vector<16x1xf32>, vector<16x1xf32> -> vector<16x8xf32>
    %cst_112 = arith.constant dense<0.000000e+00> : vector<16x128xf32>
    %281 = tpu.matmul %280, %5, %cst_112 {dimension_numbers = #tpu.dot_dimension_numbers<[1], [0], [0], [1], [0, 0, 1, 1], [], []>} : vector<16x8xf32>, vector<8x128xf32>, vector<16x128xf32> -> vector<16x128xf32>
    %282 = arith.subf %255, %281 : vector<16x128xf32>
    %283 = math.exp %282 : vector<16x128xf32>
    %cst_113 = arith.constant 0.000000e+00 : f32
    %284 = vector.broadcast %cst_113 : f32 to vector<16x128xf32>
    %285 = arith.cmpf ogt, %4, %284 : vector<16x128xf32>
    %cst_114 = arith.constant 0.000000e+00 : f32
    %286 = vector.broadcast %cst_114 : f32 to vector<16x128xf32>
    %287 = arith.select %285, %283, %286 : vector<16x128xi1>, vector<16x128xf32>
    %cst_115 = arith.constant dense<0.000000e+00> : vector<16x8xf32>
    %288 = tpu.matmul %287, %6, %cst_115 {dimension_numbers = #tpu.dot_dimension_numbers<[1], [0], [0], [1], [0, 0, 1, 1], [], []>} : vector<16x128xf32>, vector<128x8xf32>, vector<16x8xf32> -> vector<16x8xf32>
    %289 = tpu.reciprocal %288 {approx = true} : vector<16x8xf32> -> vector<16x8xf32>
    %cst_116 = arith.constant dense<0.000000e+00> : vector<16x128xf32>
    %290 = tpu.matmul %289, %5, %cst_116 {dimension_numbers = #tpu.dot_dimension_numbers<[1], [0], [0], [1], [0, 0, 1, 1], [], []>} : vector<16x8xf32>, vector<8x128xf32>, vector<16x128xf32> -> vector<16x128xf32>
    %291 = arith.mulf %287, %290 : vector<16x128xf32>
    %292 = vector.extract_strided_slice %7 {offsets = [0, 0], sizes = [1, 64], strides = [1, 1]} : vector<8x64xf32> to vector<1x64xf32>
    %293 = vector.broadcast %292 : vector<1x64xf32> to vector<16x64xf32>
    %294 = arith.mulf %224, %293 : vector<16x64xf32>
    %295 = vector.extract_strided_slice %7 {offsets = [1, 0], sizes = [1, 64], strides = [1, 1]} : vector<8x64xf32> to vector<1x64xf32>
    %296 = vector.broadcast %295 : vector<1x64xf32> to vector<16x64xf32>
    %297 = arith.mulf %224, %296 : vector<16x64xf32>
    %298 = vector.extract_strided_slice %7 {offsets = [2, 0], sizes = [1, 64], strides = [1, 1]} : vector<8x64xf32> to vector<1x64xf32>
    %299 = vector.broadcast %298 : vector<1x64xf32> to vector<16x64xf32>
    %300 = arith.mulf %224, %299 : vector<16x64xf32>
    %301 = vector.extract_strided_slice %7 {offsets = [3, 0], sizes = [1, 64], strides = [1, 1]} : vector<8x64xf32> to vector<1x64xf32>
    %302 = vector.broadcast %301 : vector<1x64xf32> to vector<16x64xf32>
    %303 = arith.mulf %224, %302 : vector<16x64xf32>
    %304 = vector.extract_strided_slice %7 {offsets = [4, 0], sizes = [1, 64], strides = [1, 1]} : vector<8x64xf32> to vector<1x64xf32>
    %305 = vector.broadcast %304 : vector<1x64xf32> to vector<16x64xf32>
    %306 = arith.mulf %224, %305 : vector<16x64xf32>
    %307 = vector.extract_strided_slice %7 {offsets = [5, 0], sizes = [1, 64], strides = [1, 1]} : vector<8x64xf32> to vector<1x64xf32>
    %308 = vector.broadcast %307 : vector<1x64xf32> to vector<16x64xf32>
    %309 = arith.mulf %224, %308 : vector<16x64xf32>
    %310 = vector.extract_strided_slice %7 {offsets = [6, 0], sizes = [1, 64], strides = [1, 1]} : vector<8x64xf32> to vector<1x64xf32>
    %311 = vector.broadcast %310 : vector<1x64xf32> to vector<16x64xf32>
    %312 = arith.mulf %224, %311 : vector<16x64xf32>
    %313 = vector.extract_strided_slice %7 {offsets = [7, 0], sizes = [1, 64], strides = [1, 1]} : vector<8x64xf32> to vector<1x64xf32>
    %314 = vector.broadcast %313 : vector<1x64xf32> to vector<16x64xf32>
    %315 = arith.mulf %224, %314 : vector<16x64xf32>
    %316 = tpu.concatenate %294, %297, %300, %303, %306, %309, %312, %315 in 0 : vector<16x64xf32>, vector<16x64xf32>, vector<16x64xf32>, vector<16x64xf32>, vector<16x64xf32>, vector<16x64xf32>, vector<16x64xf32>, vector<16x64xf32> -> vector<128x64xf32>
    %cst_117 = arith.constant dense<0.000000e+00> : vector<16x64xf32>
    %317 = tpu.matmul %291, %316, %cst_117 {dimension_numbers = #tpu.dot_dimension_numbers<[1], [0], [0], [1], [0, 0, 1, 1], [], []>} : vector<16x128xf32>, vector<128x64xf32>, vector<16x64xf32> -> vector<16x64xf32>
    %318 = vector.broadcast %220 : vector<1x64xf32> to vector<16x64xf32>
    %319 = arith.addf %317, %318 : vector<16x64xf32>
    %320 = vector.broadcast %221 : vector<1x64xf32> to vector<16x64xf32>
    %321 = arith.mulf %319, %320 : vector<16x64xf32>
    %322 = vector.broadcast %222 : vector<1x64xf32> to vector<16x64xf32>
    %323 = arith.addf %321, %322 : vector<16x64xf32>
    %cst_118 = arith.constant 0.000000e+00 : f32
    %324 = vector.broadcast %cst_118 : f32 to vector<16x64xf32>
    %325 = arith.cmpf ogt, %323, %324 : vector<16x64xf32>
    %cst_119 = arith.constant 0.000000e+00 : f32
    %326 = vector.broadcast %cst_119 : f32 to vector<16x64xf32>
    %327 = arith.minimumf %323, %326 : vector<16x64xf32>
    %328 = math.exp %327 : vector<16x64xf32>
    %cst_120 = arith.constant 1.000000e+00 : f32
    %329 = vector.broadcast %cst_120 : f32 to vector<16x64xf32>
    %330 = arith.subf %328, %329 : vector<16x64xf32>
    %331 = arith.select %325, %323, %330 : vector<16x64xi1>, vector<16x64xf32>
    %cst_121 = arith.constant dense<0.000000e+00> : vector<16x32xf32>
    %332 = tpu.matmul %331, %218, %cst_121 {dimension_numbers = #tpu.dot_dimension_numbers<[1], [0], [0], [1], [0, 0, 1, 1], [], []>} : vector<16x64xf32>, vector<64x32xf32>, vector<16x32xf32> -> vector<16x32xf32>
    %333 = vector.broadcast %223 : vector<1x32xf32> to vector<16x32xf32>
    %334 = arith.addf %332, %333 : vector<16x32xf32>
    %335 = tpu.concatenate %96, %203, %334 in 1 : vector<16x8xf32>, vector<16x16xf32>, vector<16x32xf32> -> vector<16x56xf32>
    %c0_122 = arith.constant 0 : index
    %c0_123 = arith.constant 0 : index
    %336 = vector.load %arg23[%c0_122, %c0_123] : memref<2x56xf32, #tpu.memory_space<vmem>>, vector<2x56xf32>
    %c0_124 = arith.constant 0 : index
    %c0_125 = arith.constant 0 : index
    %337 = vector.load %arg26[%c0_124, %c0_125] : memref<5x8xf32, #tpu.memory_space<vmem>>, vector<5x8xf32>
    %338 = vector.extract_strided_slice %336 {offsets = [0, 0], sizes = [1, 56], strides = [1, 1]} : vector<2x56xf32> to vector<1x56xf32>
    %339 = vector.broadcast %338 : vector<1x56xf32> to vector<16x56xf32>
    %340 = arith.mulf %335, %339 : vector<16x56xf32>
    %341 = vector.extract_strided_slice %336 {offsets = [1, 0], sizes = [1, 56], strides = [1, 1]} : vector<2x56xf32> to vector<1x56xf32>
    %342 = vector.broadcast %341 : vector<1x56xf32> to vector<16x56xf32>
    %343 = arith.addf %340, %342 : vector<16x56xf32>
    %cst_126 = arith.constant 0.000000e+00 : f32
    %344 = vector.broadcast %cst_126 : f32 to vector<16x56xf32>
    %345 = arith.cmpf ogt, %343, %344 : vector<16x56xf32>
    %cst_127 = arith.constant 0.000000e+00 : f32
    %346 = vector.broadcast %cst_127 : f32 to vector<16x56xf32>
    %347 = arith.minimumf %343, %346 : vector<16x56xf32>
    %348 = math.exp %347 : vector<16x56xf32>
    %cst_128 = arith.constant 1.000000e+00 : f32
    %349 = vector.broadcast %cst_128 : f32 to vector<16x56xf32>
    %350 = arith.subf %348, %349 : vector<16x56xf32>
    %351 = arith.select %345, %343, %350 : vector<16x56xi1>, vector<16x56xf32>
    %c0_129 = arith.constant 0 : index
    %c0_130 = arith.constant 0 : index
    %352 = vector.load %arg24[%c0_129, %c0_130] : memref<56x8xf32, #tpu.memory_space<vmem>>, vector<56x8xf32>
    %cst_131 = arith.constant dense<0.000000e+00> : vector<16x8xf32>
    %353 = tpu.matmul %351, %352, %cst_131 {dimension_numbers = #tpu.dot_dimension_numbers<[1], [0], [0], [1], [0, 0, 1, 1], [], []>} : vector<16x56xf32>, vector<56x8xf32>, vector<16x8xf32> -> vector<16x8xf32>
    %354 = vector.extract_strided_slice %337 {offsets = [0, 0], sizes = [1, 8], strides = [1, 1]} : vector<5x8xf32> to vector<1x8xf32>
    %355 = vector.broadcast %354 : vector<1x8xf32> to vector<16x8xf32>
    %356 = arith.addf %353, %355 : vector<16x8xf32>
    %c0_132 = arith.constant 0 : index
    %c0_133 = arith.constant 0 : index
    %357 = vector.load %arg25[%c0_132, %c0_133] : memref<8x8xf32, #tpu.memory_space<vmem>>, vector<8x8xf32>
    %cst_134 = arith.constant dense<0.000000e+00> : vector<16x8xf32>
    %358 = tpu.matmul %0, %357, %cst_134 {dimension_numbers = #tpu.dot_dimension_numbers<[1], [0], [0], [1], [0, 0, 1, 1], [], []>} : vector<16x8xf32>, vector<8x8xf32>, vector<16x8xf32> -> vector<16x8xf32>
    %359 = arith.addf %356, %358 : vector<16x8xf32>
    %360 = vector.extract_strided_slice %337 {offsets = [1, 0], sizes = [1, 8], strides = [1, 1]} : vector<5x8xf32> to vector<1x8xf32>
    %361 = vector.broadcast %360 : vector<1x8xf32> to vector<16x8xf32>
    %362 = arith.addf %359, %361 : vector<16x8xf32>
    %363 = vector.extract_strided_slice %337 {offsets = [2, 0], sizes = [1, 8], strides = [1, 1]} : vector<5x8xf32> to vector<1x8xf32>
    %364 = vector.broadcast %363 : vector<1x8xf32> to vector<16x8xf32>
    %365 = arith.mulf %362, %364 : vector<16x8xf32>
    %366 = vector.extract_strided_slice %337 {offsets = [3, 0], sizes = [1, 8], strides = [1, 1]} : vector<5x8xf32> to vector<1x8xf32>
    %367 = vector.broadcast %366 : vector<1x8xf32> to vector<16x8xf32>
    %368 = arith.addf %365, %367 : vector<16x8xf32>
    %cst_135 = arith.constant 0.000000e+00 : f32
    %369 = vector.broadcast %cst_135 : f32 to vector<16x8xf32>
    %370 = arith.cmpf ogt, %368, %369 : vector<16x8xf32>
    %cst_136 = arith.constant 0.000000e+00 : f32
    %371 = vector.broadcast %cst_136 : f32 to vector<16x8xf32>
    %372 = arith.minimumf %368, %371 : vector<16x8xf32>
    %373 = math.exp %372 : vector<16x8xf32>
    %cst_137 = arith.constant 1.000000e+00 : f32
    %374 = vector.broadcast %cst_137 : f32 to vector<16x8xf32>
    %375 = arith.subf %373, %374 : vector<16x8xf32>
    %376 = arith.select %370, %368, %375 : vector<16x8xi1>, vector<16x8xf32>
    %c0_138 = arith.constant 0 : index
    %c0_139 = arith.constant 0 : index
    %377 = vector.load %arg27[%c0_138, %c0_139] : memref<8x4xf32, #tpu.memory_space<vmem>>, vector<8x4xf32>
    %cst_140 = arith.constant dense<0.000000e+00> : vector<16x4xf32>
    %378 = tpu.matmul %376, %377, %cst_140 {dimension_numbers = #tpu.dot_dimension_numbers<[1], [0], [0], [1], [0, 0, 1, 1], [], []>} : vector<16x8xf32>, vector<8x4xf32>, vector<16x4xf32> -> vector<16x4xf32>
    %379 = vector.extract_strided_slice %337 {offsets = [4, 0], sizes = [1, 4], strides = [1, 1]} : vector<5x8xf32> to vector<1x4xf32>
    %380 = vector.broadcast %379 : vector<1x4xf32> to vector<16x4xf32>
    %381 = arith.addf %378, %380 : vector<16x4xf32>
    %cst_141 = arith.constant dense<0xFF800000> : vector<16xf32>
    %382 = vector.multi_reduction <maximumf>, %381, %cst_141 [1] : vector<16x4xf32> to vector<16xf32>
    %383 = vector.shape_cast %382 : vector<16xf32> to vector<16x1xf32>
    %384 = vector.broadcast %383 : vector<16x1xf32> to vector<16x4xf32>
    %385 = arith.subf %381, %384 : vector<16x4xf32>
    %386 = math.exp %385 : vector<16x4xf32>
    %cst_142 = arith.constant dense<0.000000e+00> : vector<16xf32>
    %387 = vector.multi_reduction <add>, %386, %cst_142 [1] : vector<16x4xf32> to vector<16xf32>
    %388 = vector.shape_cast %387 : vector<16xf32> to vector<16x1xf32>
    %389 = math.log %388 : vector<16x1xf32>
    %390 = vector.broadcast %389 : vector<16x1xf32> to vector<16x4xf32>
    %391 = arith.subf %385, %390 : vector<16x4xf32>
    %c0_143 = arith.constant 0 : index
    %c0_144 = arith.constant 0 : index
    %392 = vector.load %arg28[%c0_143, %c0_144] : memref<16x4xf32, #tpu.memory_space<vmem>>, vector<16x4xf32>
    tpu.vector_store %arg28[%c0_143, %c0_144], %391 {strides = array<i32>} : memref<16x4xf32, #tpu.memory_space<vmem>>, vector<16x4xf32>,
    return
  }
}

</mosaic_0001>

<llo_original>
// kernel: net_forward.1
$region0: #{net_forward.1}
  #allocation0 [shape = 'u32[]', space=smem, size = 0x4, offset = 0x4, fixed_abs, tag = 'smem constant byte address 0x4 - core index']
  #allocation1 [shape = 'u32[144,128]{1,0:T(1,128)}', space=vmem, size = 0x12000, scoped, tag = 'internal scratch']
  %s0 = inlined_call_operand.vmem [shape: f32[16,8], index: 0, kind: input, shape index: {}]
  %s1 = inlined_call_operand.vmem [shape: f32[16,16], index: 1, kind: input, shape index: {}]
  %s2 = inlined_call_operand.vmem [shape: f32[16,16], index: 2, kind: input, shape index: {}]
  %s3 = inlined_call_operand.vmem [shape: f32[16,3], index: 3, kind: input, shape index: {}]
  %s4 = inlined_call_operand.vmem [shape: f32[16,128], index: 4, kind: input, shape index: {}]
  %s5 = inlined_call_operand.vmem [shape: f32[8,128], index: 5, kind: input, shape index: {}]
  %s6 = inlined_call_operand.vmem [shape: f32[128,8], index: 6, kind: input, shape index: {}]
  %s7 = inlined_call_operand.vmem [shape: f32[8,64], index: 7, kind: input, shape index: {}]
  %s8 = inlined_call_operand.vmem [shape: f32[8,16], index: 8, kind: input, shape index: {}]
  %s9 = inlined_call_operand.vmem [shape: f32[16,2], index: 9, kind: input, shape index: {}]
  %s10 = inlined_call_operand.vmem [shape: f32[16,2], index: 10, kind: input, shape index: {}]
  %s11 = inlined_call_operand.vmem [shape: f32[16,8], index: 11, kind: input, shape index: {}]
  %s12 = inlined_call_operand.vmem [shape: f32[4,16], index: 12, kind: input, shape index: {}]
  %s13 = inlined_call_operand.vmem [shape: f32[16,32], index: 13, kind: input, shape index: {}]
  %s14 = inlined_call_operand.vmem [shape: f32[32,4], index: 14, kind: input, shape index: {}]
  %s15 = inlined_call_operand.vmem [shape: f32[32,4], index: 15, kind: input, shape index: {}]
  %s16 = inlined_call_operand.vmem [shape: f32[32,16], index: 16, kind: input, shape index: {}]
  %s17 = inlined_call_operand.vmem [shape: f32[4,32], index: 17, kind: input, shape index: {}]
  %s18 = inlined_call_operand.vmem [shape: f32[32,64], index: 18, kind: input, shape index: {}]
  %s19 = inlined_call_operand.vmem [shape: f32[64,8], index: 19, kind: input, shape index: {}]
  %s20 = inlined_call_operand.vmem [shape: f32[64,8], index: 20, kind: input, shape index: {}]
  %s21 = inlined_call_operand.vmem [shape: f32[64,32], index: 21, kind: input, shape index: {}]
  %s22 = inlined_call_operand.vmem [shape: f32[4,64], index: 22, kind: input, shape index: {}]
  %s23 = inlined_call_operand.vmem [shape: f32[2,56], index: 23, kind: input, shape index: {}]
  %s24 = inlined_call_operand.vmem [shape: f32[56,8], index: 24, kind: input, shape index: {}]
  %s25 = inlined_call_operand.vmem [shape: f32[8,8], index: 25, kind: input, shape index: {}]
  %s26 = inlined_call_operand.vmem [shape: f32[5,8], index: 26, kind: input, shape index: {}]
  %s27 = inlined_call_operand.vmem [shape: f32[8,4], index: 27, kind: input, shape index: {}]
  %s28 = inlined_call_operand.vmem [shape: f32[16,4], index: 28, kind: output, shape index: {}]
  %s29 = sld [smem:[#allocation0]]
  $region122: #{net_forward.1} parent=0
    _
  %s31 = ssub.s32 1, %s29
  %s32 = scalar_select 0, %s31, %s29
  // Predicated region
  $region2: #{net_forward.1} parent=0 // pred_check
    _
  $region3: #{net_forward.1} parent=0 // pred_check_branch
    %34 = sbr.rel (0) target = $region5
  $region4: #{net_forward.1} parent=0 // pred_region
    _
  $region5: #{net_forward.1} parent=0 // pred_fallthru
    _
  // Predicated region
  $region6: #{net_forward.1} parent=0 // pred_check
    _
  $region7: #{net_forward.1} parent=0 // pred_check_branch
    %36 = sbr.rel (0) target = $region9
  $region8: #{net_forward.1} parent=0 // pred_region
    _
  $region9: #{net_forward.1} parent=0 // pred_fallthru
    _
  // Predicated region
  $region10: #{net_forward.1} parent=0 // pred_check
    _
  $region11: #{net_forward.1} parent=0 // pred_check_branch
    %38 = sbr.rel (0) target = $region13
  $region12: #{net_forward.1} parent=0 // pred_region
    _
  $region13: #{net_forward.1} parent=0 // pred_fallthru
    _
  // Predicated region
  $region14: #{net_forward.1} parent=0 // pred_check
    _
  $region15: #{net_forward.1} parent=0 // pred_check_branch
    %40 = sbr.rel (0) target = $region17
  $region16: #{net_forward.1} parent=0 // pred_region
    _
  $region17: #{net_forward.1} parent=0 // pred_fallthru
    _
  // Predicated region
  $region18: #{net_forward.1} parent=0 // pred_check
    _
  $region19: #{net_forward.1} parent=0 // pred_check_branch
    %42 = sbr.rel (0) target = $region21
  $region20: #{net_forward.1} parent=0 // pred_region
    _
  $region21: #{net_forward.1} parent=0 // pred_fallthru
    _
  // Predicated region
  $region22: #{net_forward.1} parent=0 // pred_check
    _
  $region23: #{net_forward.1} parent=0 // pred_check_branch
    %44 = sbr.rel (0) target = $region25
  $region24: #{net_forward.1} parent=0 // pred_region
    _
  $region25: #{net_forward.1} parent=0 // pred_fallthru
    _
  // Predicated region
  $region26: #{net_forward.1} parent=0 // pred_check
    _
  $region27: #{net_forward.1} parent=0 // pred_check_branch
    %46 = sbr.rel (0) target = $region29
  $region28: #{net_forward.1} parent=0 // pred_region
    _
  $region29: #{net_forward.1} parent=0 // pred_fallthru
    _
  // Predicated region
  $region30: #{net_forward.1} parent=0 // pred_check
    _
  $region31: #{net_forward.1} parent=0 // pred_check_branch
    %48 = sbr.rel (0) target = $region33
  $region32: #{net_forward.1} parent=0 // pred_region
    _
  $region33: #{net_forward.1} parent=0 // pred_fallthru
    _
  // Predicated region
  $region34: #{net_forward.1} parent=0 // pred_check
    _
  $region35: #{net_forward.1} parent=0 // pred_check_branch
    %50 = sbr.rel (0) target = $region37
  $region36: #{net_forward.1} parent=0 // pred_region
    _
  $region37: #{net_forward.1} parent=0 // pred_fallthru
    _
  // Predicated region
  $region38: #{net_forward.1} parent=0 // pred_check
    _
  $region39: #{net_forward.1} parent=0 // pred_check_branch
    %52 = sbr.rel (0) target = $region41
  $region40: #{net_forward.1} parent=0 // pred_region
    _
  $region41: #{net_forward.1} parent=0 // pred_fallthru
    _
  // Predicated region
  $region42: #{net_forward.1} parent=0 // pred_check
    _
  $region43: #{net_forward.1} parent=0 // pred_check_branch
    %54 = sbr.rel (0) target = $region45
  $region44: #{net_forward.1} parent=0 // pred_region
    _
  $region45: #{net_forward.1} parent=0 // pred_fallthru
    _
  // Predicated region
  $region46: #{net_forward.1} parent=0 // pred_check
    _
  $region47: #{net_forward.1} parent=0 // pred_check_branch
    %56 = sbr.rel (0) target = $region49
  $region48: #{net_forward.1} parent=0 // pred_region
    _
  $region49: #{net_forward.1} parent=0 // pred_fallthru
    _
  // Predicated region
  $region50: #{net_forward.1} parent=0 // pred_check
    _
  $region51: #{net_forward.1} parent=0 // pred_check_branch
    %58 = sbr.rel (0) target = $region53
  $region52: #{net_forward.1} parent=0 // pred_region
    _
  $region53: #{net_forward.1} parent=0 // pred_fallthru
    _
  // Predicated region
  $region54: #{net_forward.1} parent=0 // pred_check
    _
  $region55: #{net_forward.1} parent=0 // pred_check_branch
    %60 = sbr.rel (0) target = $region57
  $region56: #{net_forward.1} parent=0 // pred_region
    _
  $region57: #{net_forward.1} parent=0 // pred_fallthru
    _
  // Predicated region
  $region58: #{net_forward.1} parent=0 // pred_check
    _
  $region59: #{net_forward.1} parent=0 // pred_check_branch
    %62 = sbr.rel (0) target = $region61
  $region60: #{net_forward.1} parent=0 // pred_region
    _
  $region61: #{net_forward.1} parent=0 // pred_fallthru
    _
  // Predicated region
  $region62: #{net_forward.1} parent=0 // pred_check
    _
  $region63: #{net_forward.1} parent=0 // pred_check_branch
    %64 = sbr.rel (0) target = $region65
  $region64: #{net_forward.1} parent=0 // pred_region
    _
  $region65: #{net_forward.1} parent=0 // pred_fallthru
    _
  // Predicated region
  $region66: #{net_forward.1} parent=0 // pred_check
    _
  $region67: #{net_forward.1} parent=0 // pred_check_branch
    %66 = sbr.rel (0) target = $region69
  $region68: #{net_forward.1} parent=0 // pred_region
    _
  $region69: #{net_forward.1} parent=0 // pred_fallthru
    _
  // Predicated region
  $region70: #{net_forward.1} parent=0 // pred_check
    _
  $region71: #{net_forward.1} parent=0 // pred_check_branch
    %68 = sbr.rel (0) target = $region73
  $region72: #{net_forward.1} parent=0 // pred_region
    _
  $region73: #{net_forward.1} parent=0 // pred_fallthru
    _
  // Predicated region
  $region74: #{net_forward.1} parent=0 // pred_check
    _
  $region75: #{net_forward.1} parent=0 // pred_check_branch
    %70 = sbr.rel (0) target = $region77
  $region76: #{net_forward.1} parent=0 // pred_region
    _
  $region77: #{net_forward.1} parent=0 // pred_fallthru
    _
  // Predicated region
  $region78: #{net_forward.1} parent=0 // pred_check
    _
  $region79: #{net_forward.1} parent=0 // pred_check_branch
    %72 = sbr.rel (0) target = $region81
  $region80: #{net_forward.1} parent=0 // pred_region
    _
  $region81: #{net_forward.1} parent=0 // pred_fallthru
    _
  // Predicated region
  $region82: #{net_forward.1} parent=0 // pred_check
    _
  $region83: #{net_forward.1} parent=0 // pred_check_branch
    %74 = sbr.rel (0) target = $region85
  $region84: #{net_forward.1} parent=0 // pred_region
    _
  $region85: #{net_forward.1} parent=0 // pred_fallthru
    _
  // Predicated region
  $region86: #{net_forward.1} parent=0 // pred_check
    _
  $region87: #{net_forward.1} parent=0 // pred_check_branch
    %76 = sbr.rel (0) target = $region89
  $region88: #{net_forward.1} parent=0 // pred_region
    _
  $region89: #{net_forward.1} parent=0 // pred_fallthru
    _
  // Predicated region
  $region90: #{net_forward.1} parent=0 // pred_check
    _
  $region91: #{net_forward.1} parent=0 // pred_check_branch
    %78 = sbr.rel (0) target = $region93
  $region92: #{net_forward.1} parent=0 // pred_region
    _
  $region93: #{net_forward.1} parent=0 // pred_fallthru
    _
  // Predicated region
  $region94: #{net_forward.1} parent=0 // pred_check
    _
  $region95: #{net_forward.1} parent=0 // pred_check_branch
    %80 = sbr.rel (0) target = $region97
  $region96: #{net_forward.1} parent=0 // pred_region
    _
  $region97: #{net_forward.1} parent=0 // pred_fallthru
    _
  // Predicated region
  $region98: #{net_forward.1} parent=0 // pred_check
    _
  $region99: #{net_forward.1} parent=0 // pred_check_branch
    %82 = sbr.rel (0) target = $region101
  $region100: #{net_forward.1} parent=0 // pred_region
    _
  $region101: #{net_forward.1} parent=0 // pred_fallthru
    _
  // Predicated region
  $region102: #{net_forward.1} parent=0 // pred_check
    _
  $region103: #{net_forward.1} parent=0 // pred_check_branch
    %84 = sbr.rel (0) target = $region105
  $region104: #{net_forward.1} parent=0 // pred_region
    _
  $region105: #{net_forward.1} parent=0 // pred_fallthru
    _
  // Predicated region
  $region106: #{net_forward.1} parent=0 // pred_check
    _
  $region107: #{net_forward.1} parent=0 // pred_check_branch
    %86 = sbr.rel (0) target = $region109
  $region108: #{net_forward.1} parent=0 // pred_region
    _
  $region109: #{net_forward.1} parent=0 // pred_fallthru
    _
  // Predicated region
  $region110: #{net_forward.1} parent=0 // pred_check
    _
  $region111: #{net_forward.1} parent=0 // pred_check_branch
    %88 = sbr.rel (0) target = $region113
  $region112: #{net_forward.1} parent=0 // pred_region
    _
  $region113: #{net_forward.1} parent=0 // pred_fallthru
    _
  %v89 = vld [vmem:[%s0] sm:$0xff]
  %v90 = vld [vmem:[%s0 + $0x8] sm:$0xff]
  %v91 = vld [vmem:[%s1] sm:$0xff]
  %v92 = vld [vmem:[%s1 + $0x8] sm:$0xff]
  %v93 = vld [vmem:[%s2] sm:$0xff]
  %v94 = vld [vmem:[%s2 + $0x8] sm:$0xff]
  %v95 = vld [vmem:[%s3] sm:$0xff]
  %v96 = vld [vmem:[%s3 + $0x8] sm:$0xff]
  %v97 = vld [vmem:[%s4] sm:$0xff]
  %v98 = vld [vmem:[%s4 + $0x8] sm:$0xff]
  %v99 = vld [vmem:[%s5] sm:$0xff]
  %v100 = vld [vmem:[%s6] sm:$0xff]
  %v101 = vld [vmem:[%s6 + $0x8] sm:$0xff]
  %v102 = vld [vmem:[%s6 + $0x10] sm:$0xff]
  %v103 = vld [vmem:[%s6 + $0x18] sm:$0xff]
  %v104 = vld [vmem:[%s6 + $0x20] sm:$0xff]
  %v105 = vld [vmem:[%s6 + $0x28] sm:$0xff]
  %v106 = vld [vmem:[%s6 + $0x30] sm:$0xff]
  %v107 = vld [vmem:[%s6 + $0x38] sm:$0xff]
  %v108 = vld [vmem:[%s6 + $0x40] sm:$0xff]
  %v109 = vld [vmem:[%s6 + $0x48] sm:$0xff]
  %v110 = vld [vmem:[%s6 + $0x50] sm:$0xff]
  %v111 = vld [vmem:[%s6 + $0x58] sm:$0xff]
  %v112 = vld [vmem:[%s6 + $0x60] sm:$0xff]
  %v113 = vld [vmem:[%s6 + $0x68] sm:$0xff]
  %v114 = vld [vmem:[%s6 + $0x70] sm:$0xff]
  %v115 = vld [vmem:[%s6 + $0x78] sm:$0xff]
  %v116 = vld [vmem:[%s7] sm:$0xff]
  %vm117 = vcmask 130048
  %v119 = vsel %vm117, %v93, 0
  %v122 = vsel %vm117, %v94, 0
  %124 = vmatprep.subr.mxu0 0.0
  %125 = vmatpush1.msra.mxu0 %v89
  %126 = vmatprep.subr.mxu0 0.0
  %127 = vmatpush1.msra.mxu0 %v90
  %128 = vmatprep.subr.mxu0 0.0
  %129 = vmatpush1.msra.mxu0 0.0
  %130 = vmatprep.subr.mxu0 0.0
  %131 = vmatpush1.msra.mxu0 0.0
  %132 = vmatprep.subr.mxu0 0.0
  %133 = vmatpush1.msra.mxu0 0.0
  %134 = vmatprep.subr.mxu0 0.0
  %135 = vmatpush1.msra.mxu0 0.0
  %136 = vmatprep.subr.mxu0 0.0
  %137 = vmatpush1.msra.mxu0 0.0
  %138 = vmatprep.subr.mxu0 0.0
  %139 = vmatpush1.msra.mxu0 0.0
  %140 = vmatprep.subr.mxu0 0.0
  %141 = vmatpush1.msra.mxu0 0.0
  %142 = vmatprep.subr.mxu0 0.0
  %143 = vmatpush1.msra.mxu0 0.0
  %144 = vmatprep.subr.mxu0 0.0
  %145 = vmatpush1.msra.mxu0 0.0
  %146 = vmatprep.subr.mxu0 0.0
  %147 = vmatpush1.msra.mxu0 0.0
  %148 = vmatprep.subr.mxu0 0.0
  %149 = vmatpush1.msra.mxu0 0.0
  %150 = vmatprep.subr.mxu0 0.0
  %151 = vmatpush1.msra.mxu0 0.0
  %152 = vmatprep.subr.mxu0 0.0
  %153 = vmatpush1.msra.mxu0 0.0
  %154 = vmatprep.subr.mxu0 0.0
  %155 = vmatpush1.msra.mxu0 0.0
  %156 = vmatprep.subr.mxu0 0.0
  %157 = vmatpush1.msra.mxu0 0.0
  %158 = vmatprep.subr.mxu0 0.0
  %159 = vmatpush1.msra.mxu0 0.0
  %160 = vmatprep.subr.mxu0 0.0
  %161 = vmatpush1.msra.mxu0 0.0
  %162 = vmatprep.subr.mxu0 0.0
  %163 = vmatpush1.msra.mxu0 0.0
  %164 = vmatprep.subr.mxu0 0.0
  %165 = vmatpush1.msra.mxu0 0.0
  %166 = vmatprep.subr.mxu0 0.0
  %167 = vmatpush1.msra.mxu0 0.0
  %168 = vmatprep.subr.mxu0 0.0
  %169 = vmatpush1.msra.mxu0 0.0
  %170 = vmatprep.subr.mxu0 0.0
  %171 = vmatpush1.msra.mxu0 0.0
  %172 = vmatprep.subr.mxu0 0.0
  %173 = vmatpush1.msra.mxu0 0.0
  %174 = vmatprep.subr.mxu0 0.0
  %175 = vmatpush1.msra.mxu0 0.0
  %176 = vmatprep.subr.mxu0 0.0
  %177 = vmatpush1.msra.mxu0 0.0
  %178 = vmatprep.subr.mxu0 0.0
  %179 = vmatpush1.msra.mxu0 0.0
  %180 = vmatprep.subr.mxu0 0.0
  %181 = vmatpush1.msra.mxu0 0.0
  %182 = vmatprep.subr.mxu0 0.0
  %183 = vmatpush1.msra.mxu0 0.0
  %184 = vmatprep.subr.mxu0 0.0
  %185 = vmatpush1.msra.mxu0 0.0
  %186 = vmatprep.subr.mxu0 0.0
  %187 = vmatpush1.msra.mxu0 0.0
  %188 = vmatprep.mubr.f32.mxu0 0.0
  %189 = vmatmul.mubr.f32.gmra.mrb[0].mxu0 %v119
  %v190 = vpop.f32.mrb[0].mxu0
  %v191 = vadd.f32 0.0, %v190
  %v192 = vpop.f32.mrb[0].mxu0
  %193 = vmatprep.mubr.f32.mxu0 0.0
  %194 = vmatmul.mubr.f32.gmra.mrb[0].mxu0 %v122
  %v195 = vpop.f32.mrb[0].mxu0
  %v196 = vadd.f32 0.0, %v195
  %v197 = vpop.f32.mrb[0].mxu0
  %198 = vdwg.mxu0
  %200 = vset.pattern.permute.xlu0 0
  %201 = vperm.xlu0 %200, %v95
  %v202 = vpop.permute.xlu0 %201
  %205 = vset.pattern.permute.xlu0 0
  %206 = vperm.xlu0 %205, %v96
  %v207 = vpop.permute.xlu0 %206
  %v209 = vmul.f32 %v202, %v191
  %v210 = vmul.f32 %v207, %v196
  %v212 = vsel %vm117, %v91, 0
  %v215 = vsel %vm117, %v92, 0
  %217 = vmatprep.subr.mxu0 0.0
  %218 = vmatpush1.msra.mxu0 %v209
  %219 = vmatprep.subr.mxu0 0.0
  %220 = vmatpush1.msra.mxu0 %v210
  %221 = vmatprep.subr.mxu0 0.0
  %222 = vmatpush1.msra.mxu0 0.0
  %223 = vmatprep.subr.mxu0 0.0
  %224 = vmatpush1.msra.mxu0 0.0
  %225 = vmatprep.subr.mxu0 0.0
  %226 = vmatpush1.msra.mxu0 0.0
  %227 = vmatprep.subr.mxu0 0.0
  %228 = vmatpush1.msra.mxu0 0.0
  %229 = vmatprep.subr.mxu0 0.0
  %230 = vmatpush1.msra.mxu0 0.0
  %231 = vmatprep.subr.mxu0 0.0
  %232 = vmatpush1.msra.mxu0 0.0
  %233 = vmatprep.subr.mxu0 0.0
  %234 = vmatpush1.msra.mxu0 0.0
  %235 = vmatprep.subr.mxu0 0.0
  %236 = vmatpush1.msra.mxu0 0.0
  %237 = vmatprep.subr.mxu0 0.0
  %238 = vmatpush1.msra.mxu0 0.0
  %239 = vmatprep.subr.mxu0 0.0
  %240 = vmatpush1.msra.mxu0 0.0
  %241 = vmatprep.subr.mxu0 0.0
  %242 = vmatpush1.msra.mxu0 0.0
  %243 = vmatprep.subr.mxu0 0.0
  %244 = vmatpush1.msra.mxu0 0.0
  %245 = vmatprep.subr.mxu0 0.0
  %246 = vmatpush1.msra.mxu0 0.0
  %247 = vmatprep.subr.mxu0 0.0
  %248 = vmatpush1.msra.mxu0 0.0
  %249 = vmatprep.subr.mxu0 0.0
  %250 = vmatpush1.msra.mxu0 0.0
  %251 = vmatprep.subr.mxu0 0.0
  %252 = vmatpush1.msra.mxu0 0.0
  %253 = vmatprep.subr.mxu0 0.0
  %254 = vmatpush1.msra.mxu0 0.0
  %255 = vmatprep.subr.mxu0 0.0
  %256 = vmatpush1.msra.mxu0 0.0
  %257 = vmatprep.subr.mxu0 0.0
  %258 = vmatpush1.msra.mxu0 0.0
  %259 = vmatprep.subr.mxu0 0.0
  %260 = vmatpush1.msra.mxu0 0.0
  %261 = vmatprep.subr.mxu0 0.0
  %262 = vmatpush1.msra.mxu0 0.0
  %263 = vmatprep.subr.mxu0 0.0
  %264 = vmatpush1.msra.mxu0 0.0
  %265 = vmatprep.subr.mxu0 0.0
  %266 = vmatpush1.msra.mxu0 0.0
  %267 = vmatprep.subr.mxu0 0.0
  %268 = vmatpush1.msra.mxu0 0.0
  %269 = vmatprep.subr.mxu0 0.0
  %270 = vmatpush1.msra.mxu0 0.0
  %271 = vmatprep.subr.mxu0 0.0
  %272 = vmatpush1.msra.mxu0 0.0
  %273 = vmatprep.subr.mxu0 0.0
  %274 = vmatpush1.msra.mxu0 0.0
  %275 = vmatprep.subr.mxu0 0.0
  %276 = vmatpush1.msra.mxu0 0.0
  %277 = vmatprep.subr.mxu0 0.0
  %278 = vmatpush1.msra.mxu0 0.0
  %279 = vmatprep.subr.mxu0 0.0
  %280 = vmatpush1.msra.mxu0 0.0
  %281 = vmatprep.mubr.f32.mxu0 0.0
  %282 = vmatmul.mubr.f32.gmra.mrb[0].mxu0 %v212
  %v283 = vpop.f32.mrb[0].mxu0
  %v284 = vadd.f32 0.0, %v283
  %v285 = vpop.f32.mrb[0].mxu0
  %286 = vmatprep.mubr.f32.mxu0 0.0
  %287 = vmatmul.mubr.f32.gmra.mrb[0].mxu0 %v215
  %v288 = vpop.f32.mrb[0].mxu0
  %v289 = vadd.f32 0.0, %v288
  %v290 = vpop.f32.mrb[0].mxu0
  %291 = vdwg.mxu0
  %292 = vset.pattern.permute.xlu0 1
  %293 = vperm.xlu0 %292, %v95
  %v294 = vpop.permute.xlu0 %293
  %296 = vset.pattern.permute.xlu0 1
  %297 = vperm.xlu0 %296, %v96
  %v298 = vpop.permute.xlu0 %297
  %v300 = vmul.f32 %v294, %v191
  %v301 = vmul.f32 %v298, %v196
  %302 = vmatprep.subr.mxu0 0.0
  %303 = vmatpush1.msra.mxu0 %v300
  %304 = vmatprep.subr.mxu0 0.0
  %305 = vmatpush1.msra.mxu0 %v301
  %306 = vmatprep.subr.mxu0 0.0
  %307 = vmatpush1.msra.mxu0 0.0
  %308 = vmatprep.subr.mxu0 0.0
  %309 = vmatpush1.msra.mxu0 0.0
  %310 = vmatprep.subr.mxu0 0.0
  %311 = vmatpush1.msra.mxu0 0.0
  %312 = vmatprep.subr.mxu0 0.0
  %313 = vmatpush1.msra.mxu0 0.0
  %314 = vmatprep.subr.mxu0 0.0
  %315 = vmatpush1.msra.mxu0 0.0
  %316 = vmatprep.subr.mxu0 0.0
  %317 = vmatpush1.msra.mxu0 0.0
  %318 = vmatprep.subr.mxu0 0.0
  %319 = vmatpush1.msra.mxu0 0.0
  %320 = vmatprep.subr.mxu0 0.0
  %321 = vmatpush1.msra.mxu0 0.0
  %322 = vmatprep.subr.mxu0 0.0
  %323 = vmatpush1.msra.mxu0 0.0
  %324 = vmatprep.subr.mxu0 0.0
  %325 = vmatpush1.msra.mxu0 0.0
  %326 = vmatprep.subr.mxu0 0.0
  %327 = vmatpush1.msra.mxu0 0.0
  %328 = vmatprep.subr.mxu0 0.0
  %329 = vmatpush1.msra.mxu0 0.0
  %330 = vmatprep.subr.mxu0 0.0
  %331 = vmatpush1.msra.mxu0 0.0
  %332 = vmatprep.subr.mxu0 0.0
  %333 = vmatpush1.msra.mxu0 0.0
  %334 = vmatprep.subr.mxu0 0.0
  %335 = vmatpush1.msra.mxu0 0.0
  %336 = vmatprep.subr.mxu0 0.0
  %337 = vmatpush1.msra.mxu0 0.0
  %338 = vmatprep.subr.mxu0 0.0
  %339 = vmatpush1.msra.mxu0 0.0
  %340 = vmatprep.subr.mxu0 0.0
  %341 = vmatpush1.msra.mxu0 0.0
  %342 = vmatprep.subr.mxu0 0.0
  %343 = vmatpush1.msra.mxu0 0.0
  %344 = vmatprep.subr.mxu0 0.0
  %345 = vmatpush1.msra.mxu0 0.0
  %346 = vmatprep.subr.mxu0 0.0
  %347 = vmatpush1.msra.mxu0 0.0
  %348 = vmatprep.subr.mxu0 0.0
  %349 = vmatpush1.msra.mxu0 0.0
  %350 = vmatprep.subr.mxu0 0.0
  %351 = vmatpush1.msra.mxu0 0.0
  %352 = vmatprep.subr.mxu0 0.0
  %353 = vmatpush1.msra.mxu0 0.0
  %354 = vmatprep.subr.mxu0 0.0
  %355 = vmatpush1.msra.mxu0 0.0
  %356 = vmatprep.subr.mxu0 0.0
  %357 = vmatpush1.msra.mxu0 0.0
  %358 = vmatprep.subr.mxu0 0.0
  %359 = vmatpush1.msra.mxu0 0.0
  %360 = vmatprep.subr.mxu0 0.0
  %361 = vmatpush1.msra.mxu0 0.0
  %362 = vmatprep.subr.mxu0 0.0
  %363 = vmatpush1.msra.mxu0 0.0
  %364 = vmatprep.subr.mxu0 0.0
  %365 = vmatpush1.msra.mxu0 0.0
  %366 = vmatprep.mubr.f32.mxu0 0.0
  %367 = vmatmul.mubr.f32.gmra.mrb[0].mxu0 %v212
  %v368 = vpop.f32.mrb[0].mxu0
  %v369 = vadd.f32 0.0, %v368
  %v370 = vpop.f32.mrb[0].mxu0
  %371 = vmatprep.mubr.f32.mxu0 0.0
  %372 = vmatmul.mubr.f32.gmra.mrb[0].mxu0 %v215
  %v373 = vpop.f32.mrb[0].mxu0
  %v374 = vadd.f32 0.0, %v373
  %v375 = vpop.f32.mrb[0].mxu0
  %376 = vdwg.mxu0
  %377 = vset.pattern.permute.xlu0 2
  %378 = vperm.xlu0 %377, %v95
  %v379 = vpop.permute.xlu0 %378
  %381 = vset.pattern.permute.xlu0 2
  %382 = vperm.xlu0 %381, %v96
  %v383 = vpop.permute.xlu0 %382
  %v385 = vmul.f32 %v379, %v191
  %v386 = vmul.f32 %v383, %v196
  %387 = vmatprep.subr.mxu0 0.0
  %388 = vmatpush1.msra.mxu0 %v385
  %389 = vmatprep.subr.mxu0 0.0
  %390 = vmatpush1.msra.mxu0 %v386
  %391 = vmatprep.subr.mxu0 0.0
  %392 = vmatpush1.msra.mxu0 0.0
  %393 = vmatprep.subr.mxu0 0.0
  %394 = vmatpush1.msra.mxu0 0.0
  %395 = vmatprep.subr.mxu0 0.0
  %396 = vmatpush1.msra.mxu0 0.0
  %397 = vmatprep.subr.mxu0 0.0
  %398 = vmatpush1.msra.mxu0 0.0
  %399 = vmatprep.subr.mxu0 0.0
  %400 = vmatpush1.msra.mxu0 0.0
  %401 = vmatprep.subr.mxu0 0.0
  %402 = vmatpush1.msra.mxu0 0.0
  %403 = vmatprep.subr.mxu0 0.0
  %404 = vmatpush1.msra.mxu0 0.0
  %405 = vmatprep.subr.mxu0 0.0
  %406 = vmatpush1.msra.mxu0 0.0
  %407 = vmatprep.subr.mxu0 0.0
  %408 = vmatpush1.msra.mxu0 0.0
  %409 = vmatprep.subr.mxu0 0.0
  %410 = vmatpush1.msra.mxu0 0.0
  %411 = vmatprep.subr.mxu0 0.0
  %412 = vmatpush1.msra.mxu0 0.0
  %413 = vmatprep.subr.mxu0 0.0
  %414 = vmatpush1.msra.mxu0 0.0
  %415 = vmatprep.subr.mxu0 0.0
  %416 = vmatpush1.msra.mxu0 0.0
  %417 = vmatprep.subr.mxu0 0.0
  %418 = vmatpush1.msra.mxu0 0.0
  %419 = vmatprep.subr.mxu0 0.0
  %420 = vmatpush1.msra.mxu0 0.0
  %421 = vmatprep.subr.mxu0 0.0
  %422 = vmatpush1.msra.mxu0 0.0
  %423 = vmatprep.subr.mxu0 0.0
  %424 = vmatpush1.msra.mxu0 0.0
  %425 = vmatprep.subr.mxu0 0.0
  %426 = vmatpush1.msra.mxu0 0.0
  %427 = vmatprep.subr.mxu0 0.0
  %428 = vmatpush1.msra.mxu0 0.0
  %429 = vmatprep.subr.mxu0 0.0
  %430 = vmatpush1.msra.mxu0 0.0
  %431 = vmatprep.subr.mxu0 0.0
  %432 = vmatpush1.msra.mxu0 0.0
  %433 = vmatprep.subr.mxu0 0.0
  %434 = vmatpush1.msra.mxu0 0.0
  %435 = vmatprep.subr.mxu0 0.0
  %436 = vmatpush1.msra.mxu0 0.0
  %437 = vmatprep.subr.mxu0 0.0
  %438 = vmatpush1.msra.mxu0 0.0
  %439 = vmatprep.subr.mxu0 0.0
  %440 = vmatpush1.msra.mxu0 0.0
  %441 = vmatprep.subr.mxu0 0.0
  %442 = vmatpush1.msra.mxu0 0.0
  %443 = vmatprep.subr.mxu0 0.0
  %444 = vmatpush1.msra.mxu0 0.0
  %445 = vmatprep.subr.mxu0 0.0
  %446 = vmatpush1.msra.mxu0 0.0
  %447 = vmatprep.subr.mxu0 0.0
  %448 = vmatpush1.msra.mxu0 0.0
  %449 = vmatprep.subr.mxu0 0.0
  %450 = vmatpush1.msra.mxu0 0.0
  %451 = vmatprep.mubr.f32.mxu0 0.0
  %452 = vmatmul.mubr.f32.gmra.mrb[0].mxu0 %v212
  %v453 = vpop.f32.mrb[0].mxu0
  %v454 = vadd.f32 0.0, %v453
  %v455 = vpop.f32.mrb[0].mxu0
  %456 = vmatprep.mubr.f32.mxu0 0.0
  %457 = vmatmul.mubr.f32.gmra.mrb[0].mxu0 %v215
  %v458 = vpop.f32.mrb[0].mxu0
  %v459 = vadd.f32 0.0, %v458
  %v460 = vpop.f32.mrb[0].mxu0
  %461 = vdwg.mxu0
  %v462 = vld [vmem:[%s8] sm:$0xff]
  %v463 = vld [vmem:[%s9] sm:$0xff]
  %v464 = vld [vmem:[%s9 + $0x8] sm:$0xff]
  %v465 = vld [vmem:[%s10] sm:$0xff]
  %v466 = vld [vmem:[%s10 + $0x8] sm:$0xff]
  %v467 = vld [vmem:[%s11] sm:$0xff]
  %v468 = vld [vmem:[%s11 + $0x8] sm:$0xff]
  %v469 = vld [vmem:[%s12] sm:$0xf]
  %vm470 = vcmask 64512
  %v472 = vsel %vm470, %v284, 0
  %v475 = vsel %vm470, %v289, 0
  %477 = vmatprep.subr.mxu0 0.0
  %478 = vmatpush1.msra.mxu0 %v462
  %479 = vmatprep.subr.mxu0 0.0
  %480 = vmatpush1.msra.mxu0 0.0
  %481 = vmatprep.subr.mxu0 0.0
  %482 = vmatpush1.msra.mxu0 0.0
  %483 = vmatprep.subr.mxu0 0.0
  %484 = vmatpush1.msra.mxu0 0.0
  %485 = vmatprep.subr.mxu0 0.0
  %486 = vmatpush1.msra.mxu0 0.0
  %487 = vmatprep.subr.mxu0 0.0
  %488 = vmatpush1.msra.mxu0 0.0
  %489 = vmatprep.subr.mxu0 0.0
  %490 = vmatpush1.msra.mxu0 0.0
  %491 = vmatprep.subr.mxu0 0.0
  %492 = vmatpush1.msra.mxu0 0.0
  %493 = vmatprep.subr.mxu0 0.0
  %494 = vmatpush1.msra.mxu0 0.0
  %495 = vmatprep.subr.mxu0 0.0
  %496 = vmatpush1.msra.mxu0 0.0
  %497 = vmatprep.subr.mxu0 0.0
  %498 = vmatpush1.msra.mxu0 0.0
  %499 = vmatprep.subr.mxu0 0.0
  %500 = vmatpush1.msra.mxu0 0.0
  %501 = vmatprep.subr.mxu0 0.0
  %502 = vmatpush1.msra.mxu0 0.0
  %503 = vmatprep.subr.mxu0 0.0
  %504 = vmatpush1.msra.mxu0 0.0
  %505 = vmatprep.subr.mxu0 0.0
  %506 = vmatpush1.msra.mxu0 0.0
  %507 = vmatprep.subr.mxu0 0.0
  %508 = vmatpush1.msra.mxu0 0.0
  %509 = vmatprep.subr.mxu0 0.0
  %510 = vmatpush1.msra.mxu0 0.0
  %511 = vmatprep.subr.mxu0 0.0
  %512 = vmatpush1.msra.mxu0 0.0
  %513 = vmatprep.subr.mxu0 0.0
  %514 = vmatpush1.msra.mxu0 0.0
  %515 = vmatprep.subr.mxu0 0.0
  %516 = vmatpush1.msra.mxu0 0.0
  %517 = vmatprep.subr.mxu0 0.0
  %518 = vmatpush1.msra.mxu0 0.0
  %519 = vmatprep.subr.mxu0 0.0
  %520 = vmatpush1.msra.mxu0 0.0
  %521 = vmatprep.subr.mxu0 0.0
  %522 = vmatpush1.msra.mxu0 0.0
  %523 = vmatprep.subr.mxu0 0.0
  %524 = vmatpush1.msra.mxu0 0.0
  %525 = vmatprep.subr.mxu0 0.0
  %526 = vmatpush1.msra.mxu0 0.0
  %527 = vmatprep.subr.mxu0 0.0
  %528 = vmatpush1.msra.mxu0 0.0
  %529 = vmatprep.subr.mxu0 0.0
  %530 = vmatpush1.msra.mxu0 0.0
  %531 = vmatprep.subr.mxu0 0.0
  %532 = vmatpush1.msra.mxu0 0.0
  %533 = vmatprep.subr.mxu0 0.0
  %534 = vmatpush1.msra.mxu0 0.0
  %535 = vmatprep.subr.mxu0 0.0
  %536 = vmatpush1.msra.mxu0 0.0
  %537 = vmatprep.subr.mxu0 0.0
  %538 = vmatpush1.msra.mxu0 0.0
  %539 = vmatprep.subr.mxu0 0.0
  %540 = vmatpush1.msra.mxu0 0.0
  %541 = vmatprep.mubr.f32.mxu0 0.0
  %542 = vmatmul.mubr.f32.gmra.mrb[0].mxu0 %v472
  %v543 = vpop.f32.mrb[0].mxu0
  %v544 = vadd.f32 0.0, %v543
  %v545 = vpop.f32.mrb[0].mxu0
  %546 = vmatprep.mubr.f32.mxu0 0.0
  %547 = vmatmul.mubr.f32.gmra.mrb[0].mxu0 %v475
  %v548 = vpop.f32.mrb[0].mxu0
  %v549 = vadd.f32 0.0, %v548
  %v550 = vpop.f32.mrb[0].mxu0
  %551 = vdwg.mxu0
  %v553 = vsel %vm117, %v544, 0
  %v556 = vsel %vm117, %v549, 0
  %558 = vmatprep.subr.mxu0 0.0
  %559 = vmatpush1.msra.mxu0 %v465
  %560 = vmatprep.subr.mxu0 0.0
  %561 = vmatpush1.msra.mxu0 %v466
  %562 = vmatprep.subr.mxu0 0.0
  %563 = vmatpush1.msra.mxu0 0.0
  %564 = vmatprep.subr.mxu0 0.0
  %565 = vmatpush1.msra.mxu0 0.0
  %566 = vmatprep.subr.mxu0 0.0
  %567 = vmatpush1.msra.mxu0 0.0
  %568 = vmatprep.subr.mxu0 0.0
  %569 = vmatpush1.msra.mxu0 0.0
  %570 = vmatprep.subr.mxu0 0.0
  %571 = vmatpush1.msra.mxu0 0.0
  %572 = vmatprep.subr.mxu0 0.0
  %573 = vmatpush1.msra.mxu0 0.0
  %574 = vmatprep.subr.mxu0 0.0
  %575 = vmatpush1.msra.mxu0 0.0
  %576 = vmatprep.subr.mxu0 0.0
  %577 = vmatpush1.msra.mxu0 0.0
  %578 = vmatprep.subr.mxu0 0.0
  %579 = vmatpush1.msra.mxu0 0.0
  %580 = vmatprep.subr.mxu0 0.0
  %581 = vmatpush1.msra.mxu0 0.0
  %582 = vmatprep.subr.mxu0 0.0
  %583 = vmatpush1.msra.mxu0 0.0
  %584 = vmatprep.subr.mxu0 0.0
  %585 = vmatpush1.msra.mxu0 0.0
  %586 = vmatprep.subr.mxu0 0.0
  %587 = vmatpush1.msra.mxu0 0.0
  %588 = vmatprep.subr.mxu0 0.0
  %589 = vmatpush1.msra.mxu0 0.0
  %590 = vmatprep.subr.mxu0 0.0
  %591 = vmatpush1.msra.mxu0 0.0
  %592 = vmatprep.subr.mxu0 0.0
  %593 = vmatpush1.msra.mxu0 0.0
  %594 = vmatprep.subr.mxu0 0.0
  %595 = vmatpush1.msra.mxu0 0.0
  %596 = vmatprep.subr.mxu0 0.0
  %597 = vmatpush1.msra.mxu0 0.0
  %598 = vmatprep.subr.mxu0 0.0
  %599 = vmatpush1.msra.mxu0 0.0
  %600 = vmatprep.subr.mxu0 0.0
  %601 = vmatpush1.msra.mxu0 0.0
  %602 = vmatprep.subr.mxu0 0.0
  %603 = vmatpush1.msra.mxu0 0.0
  %604 = vmatprep.subr.mxu0 0.0
  %605 = vmatpush1.msra.mxu0 0.0
  %606 = vmatprep.subr.mxu0 0.0
  %607 = vmatpush1.msra.mxu0 0.0
  %608 = vmatprep.subr.mxu0 0.0
  %609 = vmatpush1.msra.mxu0 0.0
  %610 = vmatprep.subr.mxu0 0.0
  %611 = vmatpush1.msra.mxu0 0.0
  %612 = vmatprep.subr.mxu0 0.0
  %613 = vmatpush1.msra.mxu0 0.0
  %614 = vmatprep.subr.mxu0 0.0
  %615 = vmatpush1.msra.mxu0 0.0
  %616 = vmatprep.subr.mxu0 0.0
  %617 = vmatpush1.msra.mxu0 0.0
  %618 = vmatprep.subr.mxu0 0.0
  %619 = vmatpush1.msra.mxu0 0.0
  %620 = vmatprep.subr.mxu0 0.0
  %621 = vmatpush1.msra.mxu0 0.0
  %622 = vmatprep.mubr.f32.mxu0 0.0
  %623 = vmatmul.mubr.f32.gmra.mrb[0].mxu0 %v553
  %v624 = vpop.f32.mrb[0].mxu0
  %v625 = vadd.f32 0.0, %v624
  %v626 = vpop.f32.mrb[0].mxu0
  %627 = vmatprep.mubr.f32.mxu0 0.0
  %628 = vmatmul.mubr.f32.gmra.mrb[0].mxu0 %v556
  %v629 = vpop.f32.mrb[0].mxu0
  %v630 = vadd.f32 0.0, %v629
  %v631 = vpop.f32.mrb[0].mxu0
  %632 = vdwg.mxu0
  %633 = vmatprep.subr.mxu0 0.0
  %634 = vmatpush1.msra.mxu0 %v463
  %635 = vmatprep.subr.mxu0 0.0
  %636 = vmatpush1.msra.mxu0 %v464
  %637 = vmatprep.subr.mxu0 0.0
  %638 = vmatpush1.msra.mxu0 0.0
  %639 = vmatprep.subr.mxu0 0.0
  %640 = vmatpush1.msra.mxu0 0.0
  %641 = vmatprep.subr.mxu0 0.0
  %642 = vmatpush1.msra.mxu0 0.0
  %643 = vmatprep.subr.mxu0 0.0
  %644 = vmatpush1.msra.mxu0 0.0
  %645 = vmatprep.subr.mxu0 0.0
  %646 = vmatpush1.msra.mxu0 0.0
  %647 = vmatprep.subr.mxu0 0.0
  %648 = vmatpush1.msra.mxu0 0.0
  %649 = vmatprep.subr.mxu0 0.0
  %650 = vmatpush1.msra.mxu0 0.0
  %651 = vmatprep.subr.mxu0 0.0
  %652 = vmatpush1.msra.mxu0 0.0
  %653 = vmatprep.subr.mxu0 0.0
  %654 = vmatpush1.msra.mxu0 0.0
  %655 = vmatprep.subr.mxu0 0.0
  %656 = vmatpush1.msra.mxu0 0.0
  %657 = vmatprep.subr.mxu0 0.0
  %658 = vmatpush1.msra.mxu0 0.0
  %659 = vmatprep.subr.mxu0 0.0
  %660 = vmatpush1.msra.mxu0 0.0
  %661 = vmatprep.subr.mxu0 0.0
  %662 = vmatpush1.msra.mxu0 0.0
  %663 = vmatprep.subr.mxu0 0.0
  %664 = vmatpush1.msra.mxu0 0.0
  %665 = vmatprep.subr.mxu0 0.0
  %666 = vmatpush1.msra.mxu0 0.0
  %667 = vmatprep.subr.mxu0 0.0
  %668 = vmatpush1.msra.mxu0 0.0
  %669 = vmatprep.subr.mxu0 0.0
  %670 = vmatpush1.msra.mxu0 0.0
  %671 = vmatprep.subr.mxu0 0.0
  %672 = vmatpush1.msra.mxu0 0.0
  %673 = vmatprep.subr.mxu0 0.0
  %674 = vmatpush1.msra.mxu0 0.0
  %675 = vmatprep.subr.mxu0 0.0
  %676 = vmatpush1.msra.mxu0 0.0
  %677 = vmatprep.subr.mxu0 0.0
  %678 = vmatpush1.msra.mxu0 0.0
  %679 = vmatprep.subr.mxu0 0.0
  %680 = vmatpush1.msra.mxu0 0.0
  %681 = vmatprep.subr.mxu0 0.0
  %682 = vmatpush1.msra.mxu0 0.0
  %683 = vmatprep.subr.mxu0 0.0
  %684 = vmatpush1.msra.mxu0 0.0
  %685 = vmatprep.subr.mxu0 0.0
  %686 = vmatpush1.msra.mxu0 0.0
  %687 = vmatprep.subr.mxu0 0.0
  %688 = vmatpush1.msra.mxu0 0.0
  %689 = vmatprep.subr.mxu0 0.0
  %690 = vmatpush1.msra.mxu0 0.0
  %691 = vmatprep.subr.mxu0 0.0
  %692 = vmatpush1.msra.mxu0 0.0
  %693 = vmatprep.subr.mxu0 0.0
  %694 = vmatpush1.msra.mxu0 0.0
  %695 = vmatprep.subr.mxu0 0.0
  %696 = vmatpush1.msra.mxu0 0.0
  %697 = vmatprep.mubr.f32.mxu0 0.0
  %698 = vmatmul.mubr.f32.gmra.mrb[0].mxu0 %v553
  %v699 = vpop.f32.mrb[0].mxu0
  %v700 = vadd.f32 0.0, %v699
  %v701 = vpop.f32.mrb[0].mxu0
  %702 = vmatprep.mubr.f32.mxu0 0.0
  %703 = vmatmul.mubr.f32.gmra.mrb[0].mxu0 %v556
  %v704 = vpop.f32.mrb[0].mxu0
  %v705 = vadd.f32 0.0, %v704
  %v706 = vpop.f32.mrb[0].mxu0
  %707 = vdwg.mxu0
  %708 = vxpose.xlu0.b32.start [1/16] %v700, 128
  %709 = vxpose.xlu0.b32.cont [2/16] %v705, 128
  %710 = vxpose.xlu0.b32.cont [3/16] 0.0, 128
  %711 = vxpose.xlu0.b32.cont [4/16] 0.0, 128
  %712 = vxpose.xlu0.b32.cont [5/16] 0.0, 128
  %713 = vxpose.xlu0.b32.cont [6/16] 0.0, 128
  %714 = vxpose.xlu0.b32.cont [7/16] 0.0, 128
  %715 = vxpose.xlu0.b32.cont [8/16] 0.0, 128
  %716 = vxpose.xlu0.b32.cont [9/16] 0.0, 128
  %717 = vxpose.xlu0.b32.cont [10/16] 0.0, 128
  %718 = vxpose.xlu0.b32.cont [11/16] 0.0, 128
  %719 = vxpose.xlu0.b32.cont [12/16] 0.0, 128
  %720 = vxpose.xlu0.b32.cont [13/16] 0.0, 128
  %721 = vxpose.xlu0.b32.cont [14/16] 0.0, 128
  %722 = vxpose.xlu0.b32.cont [15/16] 0.0, 128
  %723 = vxpose.xlu0.b32.end [16/16] 0.0, 128
  %v724 = vpop.trf.xlu0
  %v725 = vpop.trf.xlu0
  %v726 = vpop.trf.xlu0
  %v727 = vpop.trf.xlu0
  %v728 = vpop.trf.xlu0
  %v729 = vpop.trf.xlu0
  %v730 = vpop.trf.xlu0
  %v731 = vpop.trf.xlu0
  %v732 = vpop.trf.xlu0
  %v733 = vpop.trf.xlu0
  %v734 = vpop.trf.xlu0
  %v735 = vpop.trf.xlu0
  %v736 = vpop.trf.xlu0
  %v737 = vpop.trf.xlu0
  %v738 = vpop.trf.xlu0
  %v739 = vpop.trf.xlu0
  %742 = vrot.lane.b32.xlu0 %v700, 127
  %v743 = vpop.permute.xlu0 %742
  %744 = vrot.lane.b32.xlu0 %v705, 127
  %v745 = vpop.permute.xlu0 %744
  %748 = vxpose.xlu0.b32.start [1/16] %v743, 128
  %749 = vxpose.xlu0.b32.cont [2/16] %v745, 128
  %750 = vxpose.xlu0.b32.cont [3/16] 0.0, 128
  %751 = vxpose.xlu0.b32.cont [4/16] 0.0, 128
  %752 = vxpose.xlu0.b32.cont [5/16] 0.0, 128
  %753 = vxpose.xlu0.b32.cont [6/16] 0.0, 128
  %754 = vxpose.xlu0.b32.cont [7/16] 0.0, 128
  %755 = vxpose.xlu0.b32.cont [8/16] 0.0, 128
  %756 = vxpose.xlu0.b32.cont [9/16] 0.0, 128
  %757 = vxpose.xlu0.b32.cont [10/16] 0.0, 128
  %758 = vxpose.xlu0.b32.cont [11/16] 0.0, 128
  %759 = vxpose.xlu0.b32.cont [12/16] 0.0, 128
  %760 = vxpose.xlu0.b32.cont [13/16] 0.0, 128
  %761 = vxpose.xlu0.b32.cont [14/16] 0.0, 128
  %762 = vxpose.xlu0.b32.cont [15/16] 0.0, 128
  %763 = vxpose.xlu0.b32.end [16/16] 0.0, 128
  %v764 = vpop.trf.xlu0
  %v765 = vpop.trf.xlu0
  %v766 = vpop.trf.xlu0
  %v767 = vpop.trf.xlu0
  %v768 = vpop.trf.xlu0
  %v769 = vpop.trf.xlu0
  %v770 = vpop.trf.xlu0
  %v771 = vpop.trf.xlu0
  %v772 = vpop.trf.xlu0
  %v773 = vpop.trf.xlu0
  %v774 = vpop.trf.xlu0
  %v775 = vpop.trf.xlu0
  %v776 = vpop.trf.xlu0
  %v777 = vpop.trf.xlu0
  %v778 = vpop.trf.xlu0
  %v779 = vpop.trf.xlu0
  %781 = vrot.lane.b32.xlu0 %v764, 16
  %v782 = vpop.permute.xlu0 %781
  %v784 = vsel %vm117, %v724, %v782
  %v785 = vlaneseq
  %v786 = vshrl.u32 %v785, 7
  %v787 = vsub.s32 0, %v786
  %v788 = vrot.slane %v784, %v787
  %vm789 = vcmask 15360
  %v791 = vsel %vm789, %v625, 0
  %v794 = vsel %vm789, %v630, 0
  %vm796 = vcmask 1041408
  %v798 = vsel %vm796, %v99, 0
  %800 = vmatprep.subr.mxu0 0.0
  %801 = vmatpush1.msra.mxu0 %v798
  %802 = vmatprep.subr.mxu0 0.0
  %803 = vmatpush1.msra.mxu0 0.0
  %804 = vmatprep.subr.mxu0 0.0
  %805 = vmatpush1.msra.mxu0 0.0
  %806 = vmatprep.subr.mxu0 0.0
  %807 = vmatpush1.msra.mxu0 0.0
  %808 = vmatprep.subr.mxu0 0.0
  %809 = vmatpush1.msra.mxu0 0.0
  %810 = vmatprep.subr.mxu0 0.0
  %811 = vmatpush1.msra.mxu0 0.0
  %812 = vmatprep.subr.mxu0 0.0
  %813 = vmatpush1.msra.mxu0 0.0
  %814 = vmatprep.subr.mxu0 0.0
  %815 = vmatpush1.msra.mxu0 0.0
  %816 = vmatprep.subr.mxu0 0.0
  %817 = vmatpush1.msra.mxu0 0.0
  %818 = vmatprep.subr.mxu0 0.0
  %819 = vmatpush1.msra.mxu0 0.0
  %820 = vmatprep.subr.mxu0 0.0
  %821 = vmatpush1.msra.mxu0 0.0
  %822 = vmatprep.subr.mxu0 0.0
  %823 = vmatpush1.msra.mxu0 0.0
  %824 = vmatprep.subr.mxu0 0.0
  %825 = vmatpush1.msra.mxu0 0.0
  %826 = vmatprep.subr.mxu0 0.0
  %827 = vmatpush1.msra.mxu0 0.0
  %828 = vmatprep.subr.mxu0 0.0
  %829 = vmatpush1.msra.mxu0 0.0
  %830 = vmatprep.subr.mxu0 0.0
  %831 = vmatpush1.msra.mxu0 0.0
  %832 = vmatprep.subr.mxu0 0.0
  %833 = vmatpush1.msra.mxu0 0.0
  %834 = vmatprep.subr.mxu0 0.0
  %835 = vmatpush1.msra.mxu0 0.0
  %836 = vmatprep.subr.mxu0 0.0
  %837 = vmatpush1.msra.mxu0 0.0
  %838 = vmatprep.subr.mxu0 0.0
  %839 = vmatpush1.msra.mxu0 0.0
  %840 = vmatprep.subr.mxu0 0.0
  %841 = vmatpush1.msra.mxu0 0.0
  %842 = vmatprep.subr.mxu0 0.0
  %843 = vmatpush1.msra.mxu0 0.0
  %844 = vmatprep.subr.mxu0 0.0
  %845 = vmatpush1.msra.mxu0 0.0
  %846 = vmatprep.subr.mxu0 0.0
  %847 = vmatpush1.msra.mxu0 0.0
  %848 = vmatprep.subr.mxu0 0.0
  %849 = vmatpush1.msra.mxu0 0.0
  %850 = vmatprep.subr.mxu0 0.0
  %851 = vmatpush1.msra.mxu0 0.0
  %852 = vmatprep.subr.mxu0 0.0
  %853 = vmatpush1.msra.mxu0 0.0
  %854 = vmatprep.subr.mxu0 0.0
  %855 = vmatpush1.msra.mxu0 0.0
  %856 = vmatprep.subr.mxu0 0.0
  %857 = vmatpush1.msra.mxu0 0.0
  %858 = vmatprep.subr.mxu0 0.0
  %859 = vmatpush1.msra.mxu0 0.0
  %860 = vmatprep.subr.mxu0 0.0
  %861 = vmatpush1.msra.mxu0 0.0
  %862 = vmatprep.subr.mxu0 0.0
  %863 = vmatpush1.msra.mxu0 0.0
  %864 = vmatprep.mubr.f32.mxu0 0.0
  %865 = vmatmul.mubr.f32.gmra.mrb[0].mxu0 %v791
  %v866 = vpop.f32.mrb[0].mxu0
  %v867 = vadd.f32 %v788, %v866
  %v868 = vpop.f32.mrb[0].mxu0
  %869 = vmatprep.mubr.f32.mxu0 0.0
  %870 = vmatmul.mubr.f32.gmra.mrb[0].mxu0 %v794
  %v871 = vpop.f32.mrb[0].mxu0
  %v872 = vadd.f32 %v788, %v871
  %v873 = vpop.f32.mrb[0].mxu0
  %874 = vdwg.mxu0
  %vm875 = vcmp.ge.f32.partialorder %v867, 0.0
  %vm876 = vcmp.ge.f32.partialorder %v872, 0.0
  %v877 = vmul.f32 %v867, 0.2
  %v878 = vmul.f32 %v872, 0.2
  %v879 = vsel %vm875, %v867, %v877
  %v880 = vsel %vm876, %v872, %v878
  %vm881 = vcmp.gt.f32.partialorder %v97, 0.0
  %vm882 = vcmp.gt.f32.partialorder %v98, 0.0
  %v883 = vsel %vm881, %v879, -1e+30
  %v884 = vsel %vm882, %v880, -1e+30
  %v885 = vsel %vm117, %v883, -inf
  %886 = vmax.xlane.f32.xlu0 %v885
  %v887 = vpop.xlane.xlu0 %886
  %v888 = vsel %vm117, %v884, -inf
  %889 = vmax.xlane.f32.xlu0 %v888
  %v890 = vpop.xlane.xlu0 %889
  %vm891 = vcmask 261248
  %v892 = vsel %vm891, %v883, -inf
  %893 = vmax.xlane.f32.xlu0 %v892
  %v894 = vpop.xlane.xlu0 %893
  %v895 = vsel %vm891, %v884, -inf
  %896 = vmax.xlane.f32.xlu0 %v895
  %v897 = vpop.xlane.xlu0 %896
  %vm898 = vcmask 7168
  %v899 = vsel %vm898, %v887, %v894
  %v900 = vsel %vm898, %v890, %v897
  %v902 = vsel %vm789, %v899, 0
  %v905 = vsel %vm789, %v900, 0
  %907 = vmatprep.subr.mxu0 0.0
  %908 = vmatpush1.msra.mxu0 %v798
  %909 = vmatprep.subr.mxu0 0.0
  %910 = vmatpush1.msra.mxu0 0.0
  %911 = vmatprep.subr.mxu0 0.0
  %912 = vmatpush1.msra.mxu0 0.0
  %913 = vmatprep.subr.mxu0 0.0
  %914 = vmatpush1.msra.mxu0 0.0
  %915 = vmatprep.subr.mxu0 0.0
  %916 = vmatpush1.msra.mxu0 0.0
  %917 = vmatprep.subr.mxu0 0.0
  %918 = vmatpush1.msra.mxu0 0.0
  %919 = vmatprep.subr.mxu0 0.0
  %920 = vmatpush1.msra.mxu0 0.0
  %921 = vmatprep.subr.mxu0 0.0
  %922 = vmatpush1.msra.mxu0 0.0
  %923 = vmatprep.subr.mxu0 0.0
  %924 = vmatpush1.msra.mxu0 0.0
  %925 = vmatprep.subr.mxu0 0.0
  %926 = vmatpush1.msra.mxu0 0.0
  %927 = vmatprep.subr.mxu0 0.0
  %928 = vmatpush1.msra.mxu0 0.0
  %929 = vmatprep.subr.mxu0 0.0
  %930 = vmatpush1.msra.mxu0 0.0
  %931 = vmatprep.subr.mxu0 0.0
  %932 = vmatpush1.msra.mxu0 0.0
  %933 = vmatprep.subr.mxu0 0.0
  %934 = vmatpush1.msra.mxu0 0.0
  %935 = vmatprep.subr.mxu0 0.0
  %936 = vmatpush1.msra.mxu0 0.0
  %937 = vmatprep.subr.mxu0 0.0
  %938 = vmatpush1.msra.mxu0 0.0
  %939 = vmatprep.subr.mxu0 0.0
  %940 = vmatpush1.msra.mxu0 0.0
  %941 = vmatprep.subr.mxu0 0.0
  %942 = vmatpush1.msra.mxu0 0.0
  %943 = vmatprep.subr.mxu0 0.0
  %944 = vmatpush1.msra.mxu0 0.0
  %945 = vmatprep.subr.mxu0 0.0
  %946 = vmatpush1.msra.mxu0 0.0
  %947 = vmatprep.subr.mxu0 0.0
  %948 = vmatpush1.msra.mxu0 0.0
  %949 = vmatprep.subr.mxu0 0.0
  %950 = vmatpush1.msra.mxu0 0.0
  %951 = vmatprep.subr.mxu0 0.0
  %952 = vmatpush1.msra.mxu0 0.0
  %953 = vmatprep.subr.mxu0 0.0
  %954 = vmatpush1.msra.mxu0 0.0
  %955 = vmatprep.subr.mxu0 0.0
  %956 = vmatpush1.msra.mxu0 0.0
  %957 = vmatprep.subr.mxu0 0.0
  %958 = vmatpush1.msra.mxu0 0.0
  %959 = vmatprep.subr.mxu0 0.0
  %960 = vmatpush1.msra.mxu0 0.0
  %961 = vmatprep.subr.mxu0 0.0
  %962 = vmatpush1.msra.mxu0 0.0
  %963 = vmatprep.subr.mxu0 0.0
  %964 = vmatpush1.msra.mxu0 0.0
  %965 = vmatprep.subr.mxu0 0.0
  %966 = vmatpush1.msra.mxu0 0.0
  %967 = vmatprep.subr.mxu0 0.0
  %968 = vmatpush1.msra.mxu0 0.0
  %969 = vmatprep.subr.mxu0 0.0
  %970 = vmatpush1.msra.mxu0 0.0
  %971 = vmatprep.mubr.f32.mxu0 0.0
  %972 = vmatmul.mubr.f32.gmra.mrb[0].mxu0 %v902
  %v973 = vpop.f32.mrb[0].mxu0
  %v974 = vadd.f32 0.0, %v973
  %v975 = vpop.f32.mrb[0].mxu0
  %976 = vmatprep.mubr.f32.mxu0 0.0
  %977 = vmatmul.mubr.f32.gmra.mrb[0].mxu0 %v905
  %v978 = vpop.f32.mrb[0].mxu0
  %v979 = vadd.f32 0.0, %v978
  %v980 = vpop.f32.mrb[0].mxu0
  %981 = vdwg.mxu0
  %v982 = vsub.f32 %v883, %v974
  %v983 = vsub.f32 %v884, %v979
  %v984 = vmul.f32 %v982, 1.442695
  %v985 = vpow.pop %v984
  %v986 = vmul.f32 %v983, 1.442695
  %v987 = vpow.pop %v986
  %v988 = vsel %vm881, %v985, 0.0
  %v989 = vsel %vm882, %v987, 0.0
  %vm990 = vcmask 261120
  %v992 = vsel %vm990, %v988, 0
  %v995 = vsel %vm990, %v989, 0
  %997 = vmatprep.subr.mxu0 0.0
  %998 = vmatpush1.msra.mxu0 %v100
  %999 = vmatprep.subr.mxu0 0.0
  %1000 = vmatpush1.msra.mxu0 %v101
  %1001 = vmatprep.subr.mxu0 0.0
  %1002 = vmatpush1.msra.mxu0 %v102
  %1003 = vmatprep.subr.mxu0 0.0
  %1004 = vmatpush1.msra.mxu0 %v103
  %1005 = vmatprep.subr.mxu0 0.0
  %1006 = vmatpush1.msra.mxu0 0.0
  %1007 = vmatprep.subr.mxu0 0.0
  %1008 = vmatpush1.msra.mxu0 0.0
  %1009 = vmatprep.subr.mxu0 0.0
  %1010 = vmatpush1.msra.mxu0 0.0
  %1011 = vmatprep.subr.mxu0 0.0
  %1012 = vmatpush1.msra.mxu0 0.0
  %1013 = vmatprep.subr.mxu0 0.0
  %1014 = vmatpush1.msra.mxu0 0.0
  %1015 = vmatprep.subr.mxu0 0.0
  %1016 = vmatpush1.msra.mxu0 0.0
  %1017 = vmatprep.subr.mxu0 0.0
  %1018 = vmatpush1.msra.mxu0 0.0
  %1019 = vmatprep.subr.mxu0 0.0
  %1020 = vmatpush1.msra.mxu0 0.0
  %1021 = vmatprep.subr.mxu0 0.0
  %1022 = vmatpush1.msra.mxu0 0.0
  %1023 = vmatprep.subr.mxu0 0.0
  %1024 = vmatpush1.msra.mxu0 0.0
  %1025 = vmatprep.subr.mxu0 0.0
  %1026 = vmatpush1.msra.mxu0 0.0
  %1027 = vmatprep.subr.mxu0 0.0
  %1028 = vmatpush1.msra.mxu0 0.0
  %1029 = vmatprep.subr.mxu0 0.0
  %1030 = vmatpush1.msra.mxu0 0.0
  %1031 = vmatprep.subr.mxu0 0.0
  %1032 = vmatpush1.msra.mxu0 0.0
  %1033 = vmatprep.subr.mxu0 0.0
  %1034 = vmatpush1.msra.mxu0 0.0
  %1035 = vmatprep.subr.mxu0 0.0
  %1036 = vmatpush1.msra.mxu0 0.0
  %1037 = vmatprep.subr.mxu0 0.0
  %1038 = vmatpush1.msra.mxu0 0.0
  %1039 = vmatprep.subr.mxu0 0.0
  %1040 = vmatpush1.msra.mxu0 0.0
  %1041 = vmatprep.subr.mxu0 0.0
  %1042 = vmatpush1.msra.mxu0 0.0
  %1043 = vmatprep.subr.mxu0 0.0
  %1044 = vmatpush1.msra.mxu0 0.0
  %1045 = vmatprep.subr.mxu0 0.0
  %1046 = vmatpush1.msra.mxu0 0.0
  %1047 = vmatprep.subr.mxu0 0.0
  %1048 = vmatpush1.msra.mxu0 0.0
  %1049 = vmatprep.subr.mxu0 0.0
  %1050 = vmatpush1.msra.mxu0 0.0
  %1051 = vmatprep.subr.mxu0 0.0
  %1052 = vmatpush1.msra.mxu0 0.0
  %1053 = vmatprep.subr.mxu0 0.0
  %1054 = vmatpush1.msra.mxu0 0.0
  %1055 = vmatprep.subr.mxu0 0.0
  %1056 = vmatpush1.msra.mxu0 0.0
  %1057 = vmatprep.subr.mxu0 0.0
  %1058 = vmatpush1.msra.mxu0 0.0
  %1059 = vmatprep.subr.mxu0 0.0
  %1060 = vmatpush1.msra.mxu0 0.0
  %1061 = vmatprep.mubr.f32.mxu0 0.0
  %1062 = vmatmul.mubr.f32.gmra.mrb[0].mxu0 %v992
  %v1063 = vpop.f32.mrb[0].mxu0
  %v1064 = vadd.f32 0.0, %v1063
  %v1065 = vpop.f32.mrb[0].mxu0
  %1066 = vmatprep.mubr.f32.mxu0 0.0
  %1067 = vmatmul.mubr.f32.gmra.mrb[0].mxu0 %v995
  %v1068 = vpop.f32.mrb[0].mxu0
  %v1069 = vadd.f32 0.0, %v1068
  %v1070 = vpop.f32.mrb[0].mxu0
  %1071 = vdwg.mxu0
  %v1072 = vrcp.pop %v1064
  %v1073 = vrcp.pop %v1069
  %v1075 = vsel %vm789, %v1072, 0
  %v1078 = vsel %vm789, %v1073, 0
  %1080 = vmatprep.subr.mxu0 0.0
  %1081 = vmatpush1.msra.mxu0 %v798
  %1082 = vmatprep.subr.mxu0 0.0
  %1083 = vmatpush1.msra.mxu0 0.0
  %1084 = vmatprep.subr.mxu0 0.0
  %1085 = vmatpush1.msra.mxu0 0.0
  %1086 = vmatprep.subr.mxu0 0.0
  %1087 = vmatpush1.msra.mxu0 0.0
  %1088 = vmatprep.subr.mxu0 0.0
  %1089 = vmatpush1.msra.mxu0 0.0
  %1090 = vmatprep.subr.mxu0 0.0
  %1091 = vmatpush1.msra.mxu0 0.0
  %1092 = vmatprep.subr.mxu0 0.0
  %1093 = vmatpush1.msra.mxu0 0.0
  %1094 = vmatprep.subr.mxu0 0.0
  %1095 = vmatpush1.msra.mxu0 0.0
  %1096 = vmatprep.subr.mxu0 0.0
  %1097 = vmatpush1.msra.mxu0 0.0
  %1098 = vmatprep.subr.mxu0 0.0
  %1099 = vmatpush1.msra.mxu0 0.0
  %1100 = vmatprep.subr.mxu0 0.0
  %1101 = vmatpush1.msra.mxu0 0.0
  %1102 = vmatprep.subr.mxu0 0.0
  %1103 = vmatpush1.msra.mxu0 0.0
  %1104 = vmatprep.subr.mxu0 0.0
  %1105 = vmatpush1.msra.mxu0 0.0
  %1106 = vmatprep.subr.mxu0 0.0
  %1107 = vmatpush1.msra.mxu0 0.0
  %1108 = vmatprep.subr.mxu0 0.0
  %1109 = vmatpush1.msra.mxu0 0.0
  %1110 = vmatprep.subr.mxu0 0.0
  %1111 = vmatpush1.msra.mxu0 0.0
  %1112 = vmatprep.subr.mxu0 0.0
  %1113 = vmatpush1.msra.mxu0 0.0
  %1114 = vmatprep.subr.mxu0 0.0
  %1115 = vmatpush1.msra.mxu0 0.0
  %1116 = vmatprep.subr.mxu0 0.0
  %1117 = vmatpush1.msra.mxu0 0.0
  %1118 = vmatprep.subr.mxu0 0.0
  %1119 = vmatpush1.msra.mxu0 0.0
  %1120 = vmatprep.subr.mxu0 0.0
  %1121 = vmatpush1.msra.mxu0 0.0
  %1122 = vmatprep.subr.mxu0 0.0
  %1123 = vmatpush1.msra.mxu0 0.0
  %1124 = vmatprep.subr.mxu0 0.0
  %1125 = vmatpush1.msra.mxu0 0.0
  %1126 = vmatprep.subr.mxu0 0.0
  %1127 = vmatpush1.msra.mxu0 0.0
  %1128 = vmatprep.subr.mxu0 0.0
  %1129 = vmatpush1.msra.mxu0 0.0
  %1130 = vmatprep.subr.mxu0 0.0
  %1131 = vmatpush1.msra.mxu0 0.0
  %1132 = vmatprep.subr.mxu0 0.0
  %1133 = vmatpush1.msra.mxu0 0.0
  %1134 = vmatprep.subr.mxu0 0.0
  %1135 = vmatpush1.msra.mxu0 0.0
  %1136 = vmatprep.subr.mxu0 0.0
  %1137 = vmatpush1.msra.mxu0 0.0
  %1138 = vmatprep.subr.mxu0 0.0
  %1139 = vmatpush1.msra.mxu0 0.0
  %1140 = vmatprep.subr.mxu0 0.0
  %1141 = vmatpush1.msra.mxu0 0.0
  %1142 = vmatprep.subr.mxu0 0.0
  %1143 = vmatpush1.msra.mxu0 0.0
  %1144 = vmatprep.mubr.f32.mxu0 0.0
  %1145 = vmatmul.mubr.f32.gmra.mrb[0].mxu0 %v1075
  %v1146 = vpop.f32.mrb[0].mxu0
  %v1147 = vadd.f32 0.0, %v1146
  %v1148 = vpop.f32.mrb[0].mxu0
  %1149 = vmatprep.mubr.f32.mxu0 0.0
  %1150 = vmatmul.mubr.f32.gmra.mrb[0].mxu0 %v1078
  %v1151 = vpop.f32.mrb[0].mxu0
  %v1152 = vadd.f32 0.0, %v1151
  %v1153 = vpop.f32.mrb[0].mxu0
  %1154 = vdwg.mxu0
  %v1155 = vmul.f32 %v988, %v1147
  %v1156 = vmul.f32 %v989, %v1152
  %v1157 = vlaneseq
  %v1158 = vshrl.u32 %v1157, 7
  %v1159 = vsub.s32 0, %v1158
  %v1160 = vrot.slane %v116, %v1159
  %v1161 = vmul.f32 %v544, %v1160
  %v1162 = vmul.f32 %v549, %v1160
  %v1163 = vlaneseq
  %v1164 = vshrl.u32 %v1163, 7
  %v1165 = vsub.s32 1, %v1164
  %v1166 = vrot.slane %v116, %v1165
  %v1167 = vmul.f32 %v544, %v1166
  %v1168 = vmul.f32 %v549, %v1166
  %v1169 = vlaneseq
  %v1170 = vshrl.u32 %v1169, 7
  %v1171 = vsub.s32 0, %v1170
  %v1172 = vrot.slane %v469, %v1171
  %v1174 = vsel %vm990, %v1155, 0
  %v1177 = vsel %vm990, %v1156, 0
  %1179 = vmatprep.subr.mxu0 0.0
  %1180 = vmatpush1.msra.mxu0 %v1161
  %1181 = vmatprep.subr.mxu0 0.0
  %1182 = vmatpush1.msra.mxu0 %v1162
  %1183 = vmatprep.subr.mxu0 0.0
  %1184 = vmatpush1.msra.mxu0 %v1167
  %1185 = vmatprep.subr.mxu0 0.0
  %1186 = vmatpush1.msra.mxu0 %v1168
  %1187 = vmatprep.subr.mxu0 0.0
  %1188 = vmatpush1.msra.mxu0 0.0
  %1189 = vmatprep.subr.mxu0 0.0
  %1190 = vmatpush1.msra.mxu0 0.0
  %1191 = vmatprep.subr.mxu0 0.0
  %1192 = vmatpush1.msra.mxu0 0.0
  %1193 = vmatprep.subr.mxu0 0.0
  %1194 = vmatpush1.msra.mxu0 0.0
  %1195 = vmatprep.subr.mxu0 0.0
  %1196 = vmatpush1.msra.mxu0 0.0
  %1197 = vmatprep.subr.mxu0 0.0
  %1198 = vmatpush1.msra.mxu0 0.0
  %1199 = vmatprep.subr.mxu0 0.0
  %1200 = vmatpush1.msra.mxu0 0.0
  %1201 = vmatprep.subr.mxu0 0.0
  %1202 = vmatpush1.msra.mxu0 0.0
  %1203 = vmatprep.subr.mxu0 0.0
  %1204 = vmatpush1.msra.mxu0 0.0
  %1205 = vmatprep.subr.mxu0 0.0
  %1206 = vmatpush1.msra.mxu0 0.0
  %1207 = vmatprep.subr.mxu0 0.0
  %1208 = vmatpush1.msra.mxu0 0.0
  %1209 = vmatprep.subr.mxu0 0.0
  %1210 = vmatpush1.msra.mxu0 0.0
  %1211 = vmatprep.subr.mxu0 0.0
  %1212 = vmatpush1.msra.mxu0 0.0
  %1213 = vmatprep.subr.mxu0 0.0
  %1214 = vmatpush1.msra.mxu0 0.0
  %1215 = vmatprep.subr.mxu0 0.0
  %1216 = vmatpush1.msra.mxu0 0.0
  %1217 = vmatprep.subr.mxu0 0.0
  %1218 = vmatpush1.msra.mxu0 0.0
  %1219 = vmatprep.subr.mxu0 0.0
  %1220 = vmatpush1.msra.mxu0 0.0
  %1221 = vmatprep.subr.mxu0 0.0
  %1222 = vmatpush1.msra.mxu0 0.0
  %1223 = vmatprep.subr.mxu0 0.0
  %1224 = vmatpush1.msra.mxu0 0.0
  %1225 = vmatprep.subr.mxu0 0.0
  %1226 = vmatpush1.msra.mxu0 0.0
  %1227 = vmatprep.subr.mxu0 0.0
  %1228 = vmatpush1.msra.mxu0 0.0
  %1229 = vmatprep.subr.mxu0 0.0
  %1230 = vmatpush1.msra.mxu0 0.0
  %1231 = vmatprep.subr.mxu0 0.0
  %1232 = vmatpush1.msra.mxu0 0.0
  %1233 = vmatprep.subr.mxu0 0.0
  %1234 = vmatpush1.msra.mxu0 0.0
  %1235 = vmatprep.subr.mxu0 0.0
  %1236 = vmatpush1.msra.mxu0 0.0
  %1237 = vmatprep.subr.mxu0 0.0
  %1238 = vmatpush1.msra.mxu0 0.0
  %1239 = vmatprep.subr.mxu0 0.0
  %1240 = vmatpush1.msra.mxu0 0.0
  %1241 = vmatprep.subr.mxu0 0.0
  %1242 = vmatpush1.msra.mxu0 0.0
  %1243 = vmatprep.mubr.f32.mxu0 0.0
  %1244 = vmatmul.mubr.f32.gmra.mrb[0].mxu0 %v1174
  %v1245 = vpop.f32.mrb[0].mxu0
  %v1246 = vadd.f32 %v1172, %v1245
  %v1247 = vpop.f32.mrb[0].mxu0
  %1248 = vmatprep.mubr.f32.mxu0 0.0
  %1249 = vmatmul.mubr.f32.gmra.mrb[0].mxu0 %v1177
  %v1250 = vpop.f32.mrb[0].mxu0
  %v1251 = vadd.f32 %v1172, %v1250
  %v1252 = vpop.f32.mrb[0].mxu0
  %1253 = vdwg.mxu0
  %v1254 = vlaneseq
  %v1255 = vshrl.u32 %v1254, 7
  %v1256 = vsub.s32 1, %v1255
  %v1257 = vrot.slane %v469, %v1256
  %v1258 = vmul.f32 %v1246, %v1257
  %v1259 = vmul.f32 %v1251, %v1257
  %v1260 = vlaneseq
  %v1261 = vshrl.u32 %v1260, 7
  %v1262 = vsub.s32 2, %v1261
  %v1263 = vrot.slane %v469, %v1262
  %v1264 = vadd.f32 %v1258, %v1263
  %v1265 = vadd.f32 %v1259, %v1263
  %vm1266 = vcmp.gt.f32.partialorder %v1264, 0.0
  %vm1267 = vcmp.gt.f32.partialorder %v1265, 0.0
  %v1268 = vmin.f32 %v1264, 0.0
  %v1269 = vmin.f32 %v1265, 0.0
  %v1270 = vmul.f32 %v1268, 1.442695
  %v1271 = vpow.pop %v1270
  %v1272 = vmul.f32 %v1269, 1.442695
  %v1273 = vpow.pop %v1272
  %v1274 = vsub.f32 %v1271, 1.0
  %v1275 = vsub.f32 %v1273, 1.0
  %v1276 = vsel %vm1266, %v1264, %v1274
  %v1277 = vsel %vm1267, %v1265, %v1275
  %v1278 = vlaneseq
  %v1279 = vshrl.u32 %v1278, 7
  %v1280 = vsub.s32 3, %v1279
  %v1281 = vrot.slane %v469, %v1280
  %v1283 = vsel %vm117, %v1276, 0
  %v1286 = vsel %vm117, %v1277, 0
  %1288 = vmatprep.subr.mxu0 0.0
  %1289 = vmatpush1.msra.mxu0 %v467
  %1290 = vmatprep.subr.mxu0 0.0
  %1291 = vmatpush1.msra.mxu0 %v468
  %1292 = vmatprep.subr.mxu0 0.0
  %1293 = vmatpush1.msra.mxu0 0.0
  %1294 = vmatprep.subr.mxu0 0.0
  %1295 = vmatpush1.msra.mxu0 0.0
  %1296 = vmatprep.subr.mxu0 0.0
  %1297 = vmatpush1.msra.mxu0 0.0
  %1298 = vmatprep.subr.mxu0 0.0
  %1299 = vmatpush1.msra.mxu0 0.0
  %1300 = vmatprep.subr.mxu0 0.0
  %1301 = vmatpush1.msra.mxu0 0.0
  %1302 = vmatprep.subr.mxu0 0.0
  %1303 = vmatpush1.msra.mxu0 0.0
  %1304 = vmatprep.subr.mxu0 0.0
  %1305 = vmatpush1.msra.mxu0 0.0
  %1306 = vmatprep.subr.mxu0 0.0
  %1307 = vmatpush1.msra.mxu0 0.0
  %1308 = vmatprep.subr.mxu0 0.0
  %1309 = vmatpush1.msra.mxu0 0.0
  %1310 = vmatprep.subr.mxu0 0.0
  %1311 = vmatpush1.msra.mxu0 0.0
  %1312 = vmatprep.subr.mxu0 0.0
  %1313 = vmatpush1.msra.mxu0 0.0
  %1314 = vmatprep.subr.mxu0 0.0
  %1315 = vmatpush1.msra.mxu0 0.0
  %1316 = vmatprep.subr.mxu0 0.0
  %1317 = vmatpush1.msra.mxu0 0.0
  %1318 = vmatprep.subr.mxu0 0.0
  %1319 = vmatpush1.msra.mxu0 0.0
  %1320 = vmatprep.subr.mxu0 0.0
  %1321 = vmatpush1.msra.mxu0 0.0
  %1322 = vmatprep.subr.mxu0 0.0
  %1323 = vmatpush1.msra.mxu0 0.0
  %1324 = vmatprep.subr.mxu0 0.0
  %1325 = vmatpush1.msra.mxu0 0.0
  %1326 = vmatprep.subr.mxu0 0.0
  %1327 = vmatpush1.msra.mxu0 0.0
  %1328 = vmatprep.subr.mxu0 0.0
  %1329 = vmatpush1.msra.mxu0 0.0
  %1330 = vmatprep.subr.mxu0 0.0
  %1331 = vmatpush1.msra.mxu0 0.0
  %1332 = vmatprep.subr.mxu0 0.0
  %1333 = vmatpush1.msra.mxu0 0.0
  %1334 = vmatprep.subr.mxu0 0.0
  %1335 = vmatpush1.msra.mxu0 0.0
  %1336 = vmatprep.subr.mxu0 0.0
  %1337 = vmatpush1.msra.mxu0 0.0
  %1338 = vmatprep.subr.mxu0 0.0
  %1339 = vmatpush1.msra.mxu0 0.0
  %1340 = vmatprep.subr.mxu0 0.0
  %1341 = vmatpush1.msra.mxu0 0.0
  %1342 = vmatprep.subr.mxu0 0.0
  %1343 = vmatpush1.msra.mxu0 0.0
  %1344 = vmatprep.subr.mxu0 0.0
  %1345 = vmatpush1.msra.mxu0 0.0
  %1346 = vmatprep.subr.mxu0 0.0
  %1347 = vmatpush1.msra.mxu0 0.0
  %1348 = vmatprep.subr.mxu0 0.0
  %1349 = vmatpush1.msra.mxu0 0.0
  %1350 = vmatprep.subr.mxu0 0.0
  %1351 = vmatpush1.msra.mxu0 0.0
  %1352 = vmatprep.mubr.f32.mxu0 0.0
  %1353 = vmatmul.mubr.f32.gmra.mrb[0].mxu0 %v1283
  %v1354 = vpop.f32.mrb[0].mxu0
  %v1355 = vadd.f32 %v1281, %v1354
  %v1356 = vpop.f32.mrb[0].mxu0
  %1357 = vmatprep.mubr.f32.mxu0 0.0
  %1358 = vmatmul.mubr.f32.gmra.mrb[0].mxu0 %v1286
  %v1359 = vpop.f32.mrb[0].mxu0
  %v1360 = vadd.f32 %v1281, %v1359
  %v1361 = vpop.f32.mrb[0].mxu0
  %1362 = vdwg.mxu0
  %1365 = vrot.lane.b32.xlu0 %v454, 8
  %v1366 = vpop.permute.xlu0 %1365
  %1367 = vrot.lane.b32.xlu0 %v459, 8
  %v1368 = vpop.permute.xlu0 %1367
  %v1371 = vsel %vm470, %v369, %v1366
  %v1372 = vsel %vm470, %v374, %v1368
  %v1373 = vand.u32 2147483647, %v1371
  %v1374 = vand.u32 2147483647, %v1372
  %1375 = vmatprep.subr.mxu0 0.0
  %1376 = vmatpush1.msra.mxu0 %v1373
  %1377 = vmatprep.subr.mxu0 0.0
  %1378 = vmatpush1.msra.mxu0 %v1374
  %1379 = vmatprep.subr.mxu0 0.0
  %1380 = vmatpush1.msra.mxu0 0.0
  %1381 = vmatprep.subr.mxu0 0.0
  %1382 = vmatpush1.msra.mxu0 0.0
  %1383 = vmatprep.subr.mxu0 0.0
  %1384 = vmatpush1.msra.mxu0 0.0
  %1385 = vmatprep.subr.mxu0 0.0
  %1386 = vmatpush1.msra.mxu0 0.0
  %1387 = vmatprep.subr.mxu0 0.0
  %1388 = vmatpush1.msra.mxu0 0.0
  %1389 = vmatprep.subr.mxu0 0.0
  %1390 = vmatpush1.msra.mxu0 0.0
  %1391 = vmatprep.subr.mxu0 0.0
  %1392 = vmatpush1.msra.mxu0 0.0
  %1393 = vmatprep.subr.mxu0 0.0
  %1394 = vmatpush1.msra.mxu0 0.0
  %1395 = vmatprep.subr.mxu0 0.0
  %1396 = vmatpush1.msra.mxu0 0.0
  %1397 = vmatprep.subr.mxu0 0.0
  %1398 = vmatpush1.msra.mxu0 0.0
  %1399 = vmatprep.subr.mxu0 0.0
  %1400 = vmatpush1.msra.mxu0 0.0
  %1401 = vmatprep.subr.mxu0 0.0
  %1402 = vmatpush1.msra.mxu0 0.0
  %1403 = vmatprep.subr.mxu0 0.0
  %1404 = vmatpush1.msra.mxu0 0.0
  %1405 = vmatprep.subr.mxu0 0.0
  %1406 = vmatpush1.msra.mxu0 0.0
  %1407 = vmatprep.subr.mxu0 0.0
  %1408 = vmatpush1.msra.mxu0 0.0
  %1409 = vmatprep.subr.mxu0 0.0
  %1410 = vmatpush1.msra.mxu0 0.0
  %1411 = vmatprep.subr.mxu0 0.0
  %1412 = vmatpush1.msra.mxu0 0.0
  %1413 = vmatprep.subr.mxu0 0.0
  %1414 = vmatpush1.msra.mxu0 0.0
  %1415 = vmatprep.subr.mxu0 0.0
  %1416 = vmatpush1.msra.mxu0 0.0
  %1417 = vmatprep.subr.mxu0 0.0
  %1418 = vmatpush1.msra.mxu0 0.0
  %1419 = vmatprep.subr.mxu0 0.0
  %1420 = vmatpush1.msra.mxu0 0.0
  %1421 = vmatprep.subr.mxu0 0.0
  %1422 = vmatpush1.msra.mxu0 0.0
  %1423 = vmatprep.subr.mxu0 0.0
  %1424 = vmatpush1.msra.mxu0 0.0
  %1425 = vmatprep.subr.mxu0 0.0
  %1426 = vmatpush1.msra.mxu0 0.0
  %1427 = vmatprep.subr.mxu0 0.0
  %1428 = vmatpush1.msra.mxu0 0.0
  %1429 = vmatprep.subr.mxu0 0.0
  %1430 = vmatpush1.msra.mxu0 0.0
  %1431 = vmatprep.subr.mxu0 0.0
  %1432 = vmatpush1.msra.mxu0 0.0
  %1433 = vmatprep.subr.mxu0 0.0
  %1434 = vmatpush1.msra.mxu0 0.0
  %1435 = vmatprep.subr.mxu0 0.0
  %1436 = vmatpush1.msra.mxu0 0.0
  %1437 = vmatprep.subr.mxu0 0.0
  %1438 = vmatpush1.msra.mxu0 0.0
  %1439 = vmatprep.mubr.f32.mxu0 0.0
  %1440 = vmatmul.mubr.f32.gmra.mrb[0].mxu0 %v119
  %v1441 = vpop.f32.mrb[0].mxu0
  %v1442 = vadd.f32 0.0, %v1441
  %v1443 = vpop.f32.mrb[0].mxu0
  %1444 = vmatprep.mubr.f32.mxu0 0.0
  %1445 = vmatmul.mubr.f32.gmra.mrb[0].mxu0 %v122
  %v1446 = vpop.f32.mrb[0].mxu0
  %v1447 = vadd.f32 0.0, %v1446
  %v1448 = vpop.f32.mrb[0].mxu0
  %1449 = vdwg.mxu0
  %v1450 = vmul.f32 %v202, %v1442
  %v1451 = vmul.f32 %v207, %v1447
  %1452 = vmatprep.subr.mxu0 0.0
  %1453 = vmatpush1.msra.mxu0 %v1450
  %1454 = vmatprep.subr.mxu0 0.0
  %1455 = vmatpush1.msra.mxu0 %v1451
  %1456 = vmatprep.subr.mxu0 0.0
  %1457 = vmatpush1.msra.mxu0 0.0
  %1458 = vmatprep.subr.mxu0 0.0
  %1459 = vmatpush1.msra.mxu0 0.0
  %1460 = vmatprep.subr.mxu0 0.0
  %1461 = vmatpush1.msra.mxu0 0.0
  %1462 = vmatprep.subr.mxu0 0.0
  %1463 = vmatpush1.msra.mxu0 0.0
  %1464 = vmatprep.subr.mxu0 0.0
  %1465 = vmatpush1.msra.mxu0 0.0
  %1466 = vmatprep.subr.mxu0 0.0
  %1467 = vmatpush1.msra.mxu0 0.0
  %1468 = vmatprep.subr.mxu0 0.0
  %1469 = vmatpush1.msra.mxu0 0.0
  %1470 = vmatprep.subr.mxu0 0.0
  %1471 = vmatpush1.msra.mxu0 0.0
  %1472 = vmatprep.subr.mxu0 0.0
  %1473 = vmatpush1.msra.mxu0 0.0
  %1474 = vmatprep.subr.mxu0 0.0
  %1475 = vmatpush1.msra.mxu0 0.0
  %1476 = vmatprep.subr.mxu0 0.0
  %1477 = vmatpush1.msra.mxu0 0.0
  %1478 = vmatprep.subr.mxu0 0.0
  %1479 = vmatpush1.msra.mxu0 0.0
  %1480 = vmatprep.subr.mxu0 0.0
  %1481 = vmatpush1.msra.mxu0 0.0
  %1482 = vmatprep.subr.mxu0 0.0
  %1483 = vmatpush1.msra.mxu0 0.0
  %1484 = vmatprep.subr.mxu0 0.0
  %1485 = vmatpush1.msra.mxu0 0.0
  %1486 = vmatprep.subr.mxu0 0.0
  %1487 = vmatpush1.msra.mxu0 0.0
  %1488 = vmatprep.subr.mxu0 0.0
  %1489 = vmatpush1.msra.mxu0 0.0
  %1490 = vmatprep.subr.mxu0 0.0
  %1491 = vmatpush1.msra.mxu0 0.0
  %1492 = vmatprep.subr.mxu0 0.0
  %1493 = vmatpush1.msra.mxu0 0.0
  %1494 = vmatprep.subr.mxu0 0.0
  %1495 = vmatpush1.msra.mxu0 0.0
  %1496 = vmatprep.subr.mxu0 0.0
  %1497 = vmatpush1.msra.mxu0 0.0
  %1498 = vmatprep.subr.mxu0 0.0
  %1499 = vmatpush1.msra.mxu0 0.0
  %1500 = vmatprep.subr.mxu0 0.0
  %1501 = vmatpush1.msra.mxu0 0.0
  %1502 = vmatprep.subr.mxu0 0.0
  %1503 = vmatpush1.msra.mxu0 0.0
  %1504 = vmatprep.subr.mxu0 0.0
  %1505 = vmatpush1.msra.mxu0 0.0
  %1506 = vmatprep.subr.mxu0 0.0
  %1507 = vmatpush1.msra.mxu0 0.0
  %1508 = vmatprep.subr.mxu0 0.0
  %1509 = vmatpush1.msra.mxu0 0.0
  %1510 = vmatprep.subr.mxu0 0.0
  %1511 = vmatpush1.msra.mxu0 0.0
  %1512 = vmatprep.subr.mxu0 0.0
  %1513 = vmatpush1.msra.mxu0 0.0
  %1514 = vmatprep.subr.mxu0 0.0
  %1515 = vmatpush1.msra.mxu0 0.0
  %1516 = vmatprep.mubr.f32.mxu0 0.0
  %1517 = vmatmul.mubr.f32.gmra.mrb[0].mxu0 %v212
  %v1518 = vpop.f32.mrb[0].mxu0
  %v1519 = vadd.f32 0.0, %v1518
  %v1520 = vpop.f32.mrb[0].mxu0
  %1521 = vmatprep.mubr.f32.mxu0 0.0
  %1522 = vmatmul.mubr.f32.gmra.mrb[0].mxu0 %v215
  %v1523 = vpop.f32.mrb[0].mxu0
  %v1524 = vadd.f32 0.0, %v1523
  %v1525 = vpop.f32.mrb[0].mxu0
  %1526 = vdwg.mxu0
  %v1527 = vmul.f32 %v294, %v1442
  %v1528 = vmul.f32 %v298, %v1447
  %1529 = vmatprep.subr.mxu0 0.0
  %1530 = vmatpush1.msra.mxu0 %v1527
  %1531 = vmatprep.subr.mxu0 0.0
  %1532 = vmatpush1.msra.mxu0 %v1528
  %1533 = vmatprep.subr.mxu0 0.0
  %1534 = vmatpush1.msra.mxu0 0.0
  %1535 = vmatprep.subr.mxu0 0.0
  %1536 = vmatpush1.msra.mxu0 0.0
  %1537 = vmatprep.subr.mxu0 0.0
  %1538 = vmatpush1.msra.mxu0 0.0
  %1539 = vmatprep.subr.mxu0 0.0
  %1540 = vmatpush1.msra.mxu0 0.0
  %1541 = vmatprep.subr.mxu0 0.0
  %1542 = vmatpush1.msra.mxu0 0.0
  %1543 = vmatprep.subr.mxu0 0.0
  %1544 = vmatpush1.msra.mxu0 0.0
  %1545 = vmatprep.subr.mxu0 0.0
  %1546 = vmatpush1.msra.mxu0 0.0
  %1547 = vmatprep.subr.mxu0 0.0
  %1548 = vmatpush1.msra.mxu0 0.0
  %1549 = vmatprep.subr.mxu0 0.0
  %1550 = vmatpush1.msra.mxu0 0.0
  %1551 = vmatprep.subr.mxu0 0.0
  %1552 = vmatpush1.msra.mxu0 0.0
  %1553 = vmatprep.subr.mxu0 0.0
  %1554 = vmatpush1.msra.mxu0 0.0
  %1555 = vmatprep.subr.mxu0 0.0
  %1556 = vmatpush1.msra.mxu0 0.0
  %1557 = vmatprep.subr.mxu0 0.0
  %1558 = vmatpush1.msra.mxu0 0.0
  %1559 = vmatprep.subr.mxu0 0.0
  %1560 = vmatpush1.msra.mxu0 0.0
  %1561 = vmatprep.subr.mxu0 0.0
  %1562 = vmatpush1.msra.mxu0 0.0
  %1563 = vmatprep.subr.mxu0 0.0
  %1564 = vmatpush1.msra.mxu0 0.0
  %1565 = vmatprep.subr.mxu0 0.0
  %1566 = vmatpush1.msra.mxu0 0.0
  %1567 = vmatprep.subr.mxu0 0.0
  %1568 = vmatpush1.msra.mxu0 0.0
  %1569 = vmatprep.subr.mxu0 0.0
  %1570 = vmatpush1.msra.mxu0 0.0
  %1571 = vmatprep.subr.mxu0 0.0
  %1572 = vmatpush1.msra.mxu0 0.0
  %1573 = vmatprep.subr.mxu0 0.0
  %1574 = vmatpush1.msra.mxu0 0.0
  %1575 = vmatprep.subr.mxu0 0.0
  %1576 = vmatpush1.msra.mxu0 0.0
  %1577 = vmatprep.subr.mxu0 0.0
  %1578 = vmatpush1.msra.mxu0 0.0
  %1579 = vmatprep.subr.mxu0 0.0
  %1580 = vmatpush1.msra.mxu0 0.0
  %1581 = vmatprep.subr.mxu0 0.0
  %1582 = vmatpush1.msra.mxu0 0.0
  %1583 = vmatprep.subr.mxu0 0.0
  %1584 = vmatpush1.msra.mxu0 0.0
  %1585 = vmatprep.subr.mxu0 0.0
  %1586 = vmatpush1.msra.mxu0 0.0
  %1587 = vmatprep.subr.mxu0 0.0
  %1588 = vmatpush1.msra.mxu0 0.0
  %1589 = vmatprep.subr.mxu0 0.0
  %1590 = vmatpush1.msra.mxu0 0.0
  %1591 = vmatprep.subr.mxu0 0.0
  %1592 = vmatpush1.msra.mxu0 0.0
  %1593 = vmatprep.mubr.f32.mxu0 0.0
  %1594 = vmatmul.mubr.f32.gmra.mrb[0].mxu0 %v212
  %v1595 = vpop.f32.mrb[0].mxu0
  %v1596 = vadd.f32 0.0, %v1595
  %v1597 = vpop.f32.mrb[0].mxu0
  %1598 = vmatprep.mubr.f32.mxu0 0.0
  %1599 = vmatmul.mubr.f32.gmra.mrb[0].mxu0 %v215
  %v1600 = vpop.f32.mrb[0].mxu0
  %v1601 = vadd.f32 0.0, %v1600
  %v1602 = vpop.f32.mrb[0].mxu0
  %1603 = vdwg.mxu0
  %v1604 = vmul.f32 %v379, %v1442
  %v1605 = vmul.f32 %v383, %v1447
  %1606 = vmatprep.subr.mxu0 0.0
  %1607 = vmatpush1.msra.mxu0 %v1604
  %1608 = vmatprep.subr.mxu0 0.0
  %1609 = vmatpush1.msra.mxu0 %v1605
  %1610 = vmatprep.subr.mxu0 0.0
  %1611 = vmatpush1.msra.mxu0 0.0
  %1612 = vmatprep.subr.mxu0 0.0
  %1613 = vmatpush1.msra.mxu0 0.0
  %1614 = vmatprep.subr.mxu0 0.0
  %1615 = vmatpush1.msra.mxu0 0.0
  %1616 = vmatprep.subr.mxu0 0.0
  %1617 = vmatpush1.msra.mxu0 0.0
  %1618 = vmatprep.subr.mxu0 0.0
  %1619 = vmatpush1.msra.mxu0 0.0
  %1620 = vmatprep.subr.mxu0 0.0
  %1621 = vmatpush1.msra.mxu0 0.0
  %1622 = vmatprep.subr.mxu0 0.0
  %1623 = vmatpush1.msra.mxu0 0.0
  %1624 = vmatprep.subr.mxu0 0.0
  %1625 = vmatpush1.msra.mxu0 0.0
  %1626 = vmatprep.subr.mxu0 0.0
  %1627 = vmatpush1.msra.mxu0 0.0
  %1628 = vmatprep.subr.mxu0 0.0
  %1629 = vmatpush1.msra.mxu0 0.0
  %1630 = vmatprep.subr.mxu0 0.0
  %1631 = vmatpush1.msra.mxu0 0.0
  %1632 = vmatprep.subr.mxu0 0.0
  %1633 = vmatpush1.msra.mxu0 0.0
  %1634 = vmatprep.subr.mxu0 0.0
  %1635 = vmatpush1.msra.mxu0 0.0
  %1636 = vmatprep.subr.mxu0 0.0
  %1637 = vmatpush1.msra.mxu0 0.0
  %1638 = vmatprep.subr.mxu0 0.0
  %1639 = vmatpush1.msra.mxu0 0.0
  %1640 = vmatprep.subr.mxu0 0.0
  %1641 = vmatpush1.msra.mxu0 0.0
  %1642 = vmatprep.subr.mxu0 0.0
  %1643 = vmatpush1.msra.mxu0 0.0
  %1644 = vmatprep.subr.mxu0 0.0
  %1645 = vmatpush1.msra.mxu0 0.0
  %1646 = vmatprep.subr.mxu0 0.0
  %1647 = vmatpush1.msra.mxu0 0.0
  %1648 = vmatprep.subr.mxu0 0.0
  %1649 = vmatpush1.msra.mxu0 0.0
  %1650 = vmatprep.subr.mxu0 0.0
  %1651 = vmatpush1.msra.mxu0 0.0
  %1652 = vmatprep.subr.mxu0 0.0
  %1653 = vmatpush1.msra.mxu0 0.0
  %1654 = vmatprep.subr.mxu0 0.0
  %1655 = vmatpush1.msra.mxu0 0.0
  %1656 = vmatprep.subr.mxu0 0.0
  %1657 = vmatpush1.msra.mxu0 0.0
  %1658 = vmatprep.subr.mxu0 0.0
  %1659 = vmatpush1.msra.mxu0 0.0
  %1660 = vmatprep.subr.mxu0 0.0
  %1661 = vmatpush1.msra.mxu0 0.0
  %1662 = vmatprep.subr.mxu0 0.0
  %1663 = vmatpush1.msra.mxu0 0.0
  %1664 = vmatprep.subr.mxu0 0.0
  %1665 = vmatpush1.msra.mxu0 0.0
  %1666 = vmatprep.subr.mxu0 0.0
  %1667 = vmatpush1.msra.mxu0 0.0
  %1668 = vmatprep.subr.mxu0 0.0
  %1669 = vmatpush1.msra.mxu0 0.0
  %1670 = vmatprep.mubr.f32.mxu0 0.0
  %1671 = vmatmul.mubr.f32.gmra.mrb[0].mxu0 %v212
  %v1672 = vpop.f32.mrb[0].mxu0
  %v1673 = vadd.f32 0.0, %v1672
  %v1674 = vpop.f32.mrb[0].mxu0
  %1675 = vmatprep.mubr.f32.mxu0 0.0
  %1676 = vmatmul.mubr.f32.gmra.mrb[0].mxu0 %v215
  %v1677 = vpop.f32.mrb[0].mxu0
  %v1678 = vadd.f32 0.0, %v1677
  %v1679 = vpop.f32.mrb[0].mxu0
  %1680 = vdwg.mxu0
  %v1681 = vld [vmem:[%s13] sm:$0xff]
  %v1682 = vld [vmem:[%s13 + $0x8] sm:$0xff]
  %v1683 = vld [vmem:[%s14] sm:$0xff]
  %v1684 = vld [vmem:[%s14 + $0x8] sm:$0xff]
  %v1685 = vld [vmem:[%s14 + $0x10] sm:$0xff]
  %v1686 = vld [vmem:[%s14 + $0x18] sm:$0xff]
  %v1687 = vld [vmem:[%s15] sm:$0xff]
  %v1688 = vld [vmem:[%s15 + $0x8] sm:$0xff]
  %v1689 = vld [vmem:[%s15 + $0x10] sm:$0xff]
  %v1690 = vld [vmem:[%s15 + $0x18] sm:$0xff]
  %v1691 = vld [vmem:[%s16] sm:$0xff]
  %v1692 = vld [vmem:[%s16 + $0x8] sm:$0xff]
  %v1693 = vld [vmem:[%s16 + $0x10] sm:$0xff]
  %v1694 = vld [vmem:[%s16 + $0x18] sm:$0xff]
  %v1695 = vld [vmem:[%s17] sm:$0xf]
  %v1697 = vsel %vm117, %v1519, 0
  %v1700 = vsel %vm117, %v1524, 0
  %1702 = vmatprep.subr.mxu0 0.0
  %1703 = vmatpush1.msra.mxu0 %v1681
  %1704 = vmatprep.subr.mxu0 0.0
  %1705 = vmatpush1.msra.mxu0 %v1682
  %1706 = vmatprep.subr.mxu0 0.0
  %1707 = vmatpush1.msra.mxu0 0.0
  %1708 = vmatprep.subr.mxu0 0.0
  %1709 = vmatpush1.msra.mxu0 0.0
  %1710 = vmatprep.subr.mxu0 0.0
  %1711 = vmatpush1.msra.mxu0 0.0
  %1712 = vmatprep.subr.mxu0 0.0
  %1713 = vmatpush1.msra.mxu0 0.0
  %1714 = vmatprep.subr.mxu0 0.0
  %1715 = vmatpush1.msra.mxu0 0.0
  %1716 = vmatprep.subr.mxu0 0.0
  %1717 = vmatpush1.msra.mxu0 0.0
  %1718 = vmatprep.subr.mxu0 0.0
  %1719 = vmatpush1.msra.mxu0 0.0
  %1720 = vmatprep.subr.mxu0 0.0
  %1721 = vmatpush1.msra.mxu0 0.0
  %1722 = vmatprep.subr.mxu0 0.0
  %1723 = vmatpush1.msra.mxu0 0.0
  %1724 = vmatprep.subr.mxu0 0.0
  %1725 = vmatpush1.msra.mxu0 0.0
  %1726 = vmatprep.subr.mxu0 0.0
  %1727 = vmatpush1.msra.mxu0 0.0
  %1728 = vmatprep.subr.mxu0 0.0
  %1729 = vmatpush1.msra.mxu0 0.0
  %1730 = vmatprep.subr.mxu0 0.0
  %1731 = vmatpush1.msra.mxu0 0.0
  %1732 = vmatprep.subr.mxu0 0.0
  %1733 = vmatpush1.msra.mxu0 0.0
  %1734 = vmatprep.subr.mxu0 0.0
  %1735 = vmatpush1.msra.mxu0 0.0
  %1736 = vmatprep.subr.mxu0 0.0
  %1737 = vmatpush1.msra.mxu0 0.0
  %1738 = vmatprep.subr.mxu0 0.0
  %1739 = vmatpush1.msra.mxu0 0.0
  %1740 = vmatprep.subr.mxu0 0.0
  %1741 = vmatpush1.msra.mxu0 0.0
  %1742 = vmatprep.subr.mxu0 0.0
  %1743 = vmatpush1.msra.mxu0 0.0
  %1744 = vmatprep.subr.mxu0 0.0
  %1745 = vmatpush1.msra.mxu0 0.0
  %1746 = vmatprep.subr.mxu0 0.0
  %1747 = vmatpush1.msra.mxu0 0.0
  %1748 = vmatprep.subr.mxu0 0.0
  %1749 = vmatpush1.msra.mxu0 0.0
  %1750 = vmatprep.subr.mxu0 0.0
  %1751 = vmatpush1.msra.mxu0 0.0
  %1752 = vmatprep.subr.mxu0 0.0
  %1753 = vmatpush1.msra.mxu0 0.0
  %1754 = vmatprep.subr.mxu0 0.0
  %1755 = vmatpush1.msra.mxu0 0.0
  %1756 = vmatprep.subr.mxu0 0.0
  %1757 = vmatpush1.msra.mxu0 0.0
  %1758 = vmatprep.subr.mxu0 0.0
  %1759 = vmatpush1.msra.mxu0 0.0
  %1760 = vmatprep.subr.mxu0 0.0
  %1761 = vmatpush1.msra.mxu0 0.0
  %1762 = vmatprep.subr.mxu0 0.0
  %1763 = vmatpush1.msra.mxu0 0.0
  %1764 = vmatprep.subr.mxu0 0.0
  %1765 = vmatpush1.msra.mxu0 0.0
  %1766 = vmatprep.mubr.f32.mxu0 0.0
  %1767 = vmatmul.mubr.f32.gmra.mrb[0].mxu0 %v1697
  %v1768 = vpop.f32.mrb[0].mxu0
  %v1769 = vadd.f32 0.0, %v1768
  %v1770 = vpop.f32.mrb[0].mxu0
  %1771 = vmatprep.mubr.f32.mxu0 0.0
  %1772 = vmatmul.mubr.f32.gmra.mrb[0].mxu0 %v1700
  %v1773 = vpop.f32.mrb[0].mxu0
  %v1774 = vadd.f32 0.0, %v1773
  %v1775 = vpop.f32.mrb[0].mxu0
  %1776 = vdwg.mxu0
  %v1778 = vsel %vm990, %v1769, 0
  %v1781 = vsel %vm990, %v1774, 0
  %1783 = vmatprep.subr.mxu0 0.0
  %1784 = vmatpush1.msra.mxu0 %v1687
  %1785 = vmatprep.subr.mxu0 0.0
  %1786 = vmatpush1.msra.mxu0 %v1688
  %1787 = vmatprep.subr.mxu0 0.0
  %1788 = vmatpush1.msra.mxu0 %v1689
  %1789 = vmatprep.subr.mxu0 0.0
  %1790 = vmatpush1.msra.mxu0 %v1690
  %1791 = vmatprep.subr.mxu0 0.0
  %1792 = vmatpush1.msra.mxu0 0.0
  %1793 = vmatprep.subr.mxu0 0.0
  %1794 = vmatpush1.msra.mxu0 0.0
  %1795 = vmatprep.subr.mxu0 0.0
  %1796 = vmatpush1.msra.mxu0 0.0
  %1797 = vmatprep.subr.mxu0 0.0
  %1798 = vmatpush1.msra.mxu0 0.0
  %1799 = vmatprep.subr.mxu0 0.0
  %1800 = vmatpush1.msra.mxu0 0.0
  %1801 = vmatprep.subr.mxu0 0.0
  %1802 = vmatpush1.msra.mxu0 0.0
  %1803 = vmatprep.subr.mxu0 0.0
  %1804 = vmatpush1.msra.mxu0 0.0
  %1805 = vmatprep.subr.mxu0 0.0
  %1806 = vmatpush1.msra.mxu0 0.0
  %1807 = vmatprep.subr.mxu0 0.0
  %1808 = vmatpush1.msra.mxu0 0.0
  %1809 = vmatprep.subr.mxu0 0.0
  %1810 = vmatpush1.msra.mxu0 0.0
  %1811 = vmatprep.subr.mxu0 0.0
  %1812 = vmatpush1.msra.mxu0 0.0
  %1813 = vmatprep.subr.mxu0 0.0
  %1814 = vmatpush1.msra.mxu0 0.0
  %1815 = vmatprep.subr.mxu0 0.0
  %1816 = vmatpush1.msra.mxu0 0.0
  %1817 = vmatprep.subr.mxu0 0.0
  %1818 = vmatpush1.msra.mxu0 0.0
  %1819 = vmatprep.subr.mxu0 0.0
  %1820 = vmatpush1.msra.mxu0 0.0
  %1821 = vmatprep.subr.mxu0 0.0
  %1822 = vmatpush1.msra.mxu0 0.0
  %1823 = vmatprep.subr.mxu0 0.0
  %1824 = vmatpush1.msra.mxu0 0.0
  %1825 = vmatprep.subr.mxu0 0.0
  %1826 = vmatpush1.msra.mxu0 0.0
  %1827 = vmatprep.subr.mxu0 0.0
  %1828 = vmatpush1.msra.mxu0 0.0
  %1829 = vmatprep.subr.mxu0 0.0
  %1830 = vmatpush1.msra.mxu0 0.0
  %1831 = vmatprep.subr.mxu0 0.0
  %1832 = vmatpush1.msra.mxu0 0.0
  %1833 = vmatprep.subr.mxu0 0.0
  %1834 = vmatpush1.msra.mxu0 0.0
  %1835 = vmatprep.subr.mxu0 0.0
  %1836 = vmatpush1.msra.mxu0 0.0
  %1837 = vmatprep.subr.mxu0 0.0
  %1838 = vmatpush1.msra.mxu0 0.0
  %1839 = vmatprep.subr.mxu0 0.0
  %1840 = vmatpush1.msra.mxu0 0.0
  %1841 = vmatprep.subr.mxu0 0.0
  %1842 = vmatpush1.msra.mxu0 0.0
  %1843 = vmatprep.subr.mxu0 0.0
  %1844 = vmatpush1.msra.mxu0 0.0
  %1845 = vmatprep.subr.mxu0 0.0
  %1846 = vmatpush1.msra.mxu0 0.0
  %1847 = vmatprep.mubr.f32.mxu0 0.0
  %1848 = vmatmul.mubr.f32.gmra.mrb[0].mxu0 %v1778
  %v1849 = vpop.f32.mrb[0].mxu0
  %v1850 = vadd.f32 0.0, %v1849
  %v1851 = vpop.f32.mrb[0].mxu0
  %1852 = vmatprep.mubr.f32.mxu0 0.0
  %1853 = vmatmul.mubr.f32.gmra.mrb[0].mxu0 %v1781
  %v1854 = vpop.f32.mrb[0].mxu0
  %v1855 = vadd.f32 0.0, %v1854
  %v1856 = vpop.f32.mrb[0].mxu0
  %1857 = vdwg.mxu0
  %1858 = vmatprep.subr.mxu0 0.0
  %1859 = vmatpush1.msra.mxu0 %v1683
  %1860 = vmatprep.subr.mxu0 0.0
  %1861 = vmatpush1.msra.mxu0 %v1684
  %1862 = vmatprep.subr.mxu0 0.0
  %1863 = vmatpush1.msra.mxu0 %v1685
  %1864 = vmatprep.subr.mxu0 0.0
  %1865 = vmatpush1.msra.mxu0 %v1686
  %1866 = vmatprep.subr.mxu0 0.0
  %1867 = vmatpush1.msra.mxu0 0.0
  %1868 = vmatprep.subr.mxu0 0.0
  %1869 = vmatpush1.msra.mxu0 0.0
  %1870 = vmatprep.subr.mxu0 0.0
  %1871 = vmatpush1.msra.mxu0 0.0
  %1872 = vmatprep.subr.mxu0 0.0
  %1873 = vmatpush1.msra.mxu0 0.0
  %1874 = vmatprep.subr.mxu0 0.0
  %1875 = vmatpush1.msra.mxu0 0.0
  %1876 = vmatprep.subr.mxu0 0.0
  %1877 = vmatpush1.msra.mxu0 0.0
  %1878 = vmatprep.subr.mxu0 0.0
  %1879 = vmatpush1.msra.mxu0 0.0
  %1880 = vmatprep.subr.mxu0 0.0
  %1881 = vmatpush1.msra.mxu0 0.0
  %1882 = vmatprep.subr.mxu0 0.0
  %1883 = vmatpush1.msra.mxu0 0.0
  %1884 = vmatprep.subr.mxu0 0.0
  %1885 = vmatpush1.msra.mxu0 0.0
  %1886 = vmatprep.subr.mxu0 0.0
  %1887 = vmatpush1.msra.mxu0 0.0
  %1888 = vmatprep.subr.mxu0 0.0
  %1889 = vmatpush1.msra.mxu0 0.0
  %1890 = vmatprep.subr.mxu0 0.0
  %1891 = vmatpush1.msra.mxu0 0.0
  %1892 = vmatprep.subr.mxu0 0.0
  %1893 = vmatpush1.msra.mxu0 0.0
  %1894 = vmatprep.subr.mxu0 0.0
  %1895 = vmatpush1.msra.mxu0 0.0
  %1896 = vmatprep.subr.mxu0 0.0
  %1897 = vmatpush1.msra.mxu0 0.0
  %1898 = vmatprep.subr.mxu0 0.0
  %1899 = vmatpush1.msra.mxu0 0.0
  %1900 = vmatprep.subr.mxu0 0.0
  %1901 = vmatpush1.msra.mxu0 0.0
  %1902 = vmatprep.subr.mxu0 0.0
  %1903 = vmatpush1.msra.mxu0 0.0
  %1904 = vmatprep.subr.mxu0 0.0
  %1905 = vmatpush1.msra.mxu0 0.0
  %1906 = vmatprep.subr.mxu0 0.0
  %1907 = vmatpush1.msra.mxu0 0.0
  %1908 = vmatprep.subr.mxu0 0.0
  %1909 = vmatpush1.msra.mxu0 0.0
  %1910 = vmatprep.subr.mxu0 0.0
  %1911 = vmatpush1.msra.mxu0 0.0
  %1912 = vmatprep.subr.mxu0 0.0
  %1913 = vmatpush1.msra.mxu0 0.0
  %1914 = vmatprep.subr.mxu0 0.0
  %1915 = vmatpush1.msra.mxu0 0.0
  %1916 = vmatprep.subr.mxu0 0.0
  %1917 = vmatpush1.msra.mxu0 0.0
  %1918 = vmatprep.subr.mxu0 0.0
  %1919 = vmatpush1.msra.mxu0 0.0
  %1920 = vmatprep.subr.mxu0 0.0
  %1921 = vmatpush1.msra.mxu0 0.0
  %1922 = vmatprep.mubr.f32.mxu0 0.0
  %1923 = vmatmul.mubr.f32.gmra.mrb[0].mxu0 %v1778
  %v1924 = vpop.f32.mrb[0].mxu0
  %v1925 = vadd.f32 0.0, %v1924
  %v1926 = vpop.f32.mrb[0].mxu0
  %1927 = vmatprep.mubr.f32.mxu0 0.0
  %1928 = vmatmul.mubr.f32.gmra.mrb[0].mxu0 %v1781
  %v1929 = vpop.f32.mrb[0].mxu0
  %v1930 = vadd.f32 0.0, %v1929
  %v1931 = vpop.f32.mrb[0].mxu0
  %1932 = vdwg.mxu0
  %1933 = vxpose.xlu0.b32.start [1/16] %v1925, 128
  %1934 = vxpose.xlu0.b32.cont [2/16] %v1930, 128
  %1935 = vxpose.xlu0.b32.cont [3/16] 0.0, 128
  %1936 = vxpose.xlu0.b32.cont [4/16] 0.0, 128
  %1937 = vxpose.xlu0.b32.cont [5/16] 0.0, 128
  %1938 = vxpose.xlu0.b32.cont [6/16] 0.0, 128
  %1939 = vxpose.xlu0.b32.cont [7/16] 0.0, 128
  %1940 = vxpose.xlu0.b32.cont [8/16] 0.0, 128
  %1941 = vxpose.xlu0.b32.cont [9/16] 0.0, 128
  %1942 = vxpose.xlu0.b32.cont [10/16] 0.0, 128
  %1943 = vxpose.xlu0.b32.cont [11/16] 0.0, 128
  %1944 = vxpose.xlu0.b32.cont [12/16] 0.0, 128
  %1945 = vxpose.xlu0.b32.cont [13/16] 0.0, 128
  %1946 = vxpose.xlu0.b32.cont [14/16] 0.0, 128
  %1947 = vxpose.xlu0.b32.cont [15/16] 0.0, 128
  %1948 = vxpose.xlu0.b32.end [16/16] 0.0, 128
  %v1949 = vpop.trf.xlu0
  %v1950 = vpop.trf.xlu0
  %v1951 = vpop.trf.xlu0
  %v1952 = vpop.trf.xlu0
  %v1953 = vpop.trf.xlu0
  %v1954 = vpop.trf.xlu0
  %v1955 = vpop.trf.xlu0
  %v1956 = vpop.trf.xlu0
  %v1957 = vpop.trf.xlu0
  %v1958 = vpop.trf.xlu0
  %v1959 = vpop.trf.xlu0
  %v1960 = vpop.trf.xlu0
  %v1961 = vpop.trf.xlu0
  %v1962 = vpop.trf.xlu0
  %v1963 = vpop.trf.xlu0
  %v1964 = vpop.trf.xlu0
  %1967 = vrot.lane.b32.xlu0 %v1925, 127
  %v1968 = vpop.permute.xlu0 %1967
  %1969 = vrot.lane.b32.xlu0 %v1930, 127
  %v1970 = vpop.permute.xlu0 %1969
  %1973 = vxpose.xlu0.b32.start [1/16] %v1968, 128
  %1974 = vxpose.xlu0.b32.cont [2/16] %v1970, 128
  %1975 = vxpose.xlu0.b32.cont [3/16] 0.0, 128
  %1976 = vxpose.xlu0.b32.cont [4/16] 0.0, 128
  %1977 = vxpose.xlu0.b32.cont [5/16] 0.0, 128
  %1978 = vxpose.xlu0.b32.cont [6/16] 0.0, 128
  %1979 = vxpose.xlu0.b32.cont [7/16] 0.0, 128
  %1980 = vxpose.xlu0.b32.cont [8/16] 0.0, 128
  %1981 = vxpose.xlu0.b32.cont [9/16] 0.0, 128
  %1982 = vxpose.xlu0.b32.cont [10/16] 0.0, 128
  %1983 = vxpose.xlu0.b32.cont [11/16] 0.0, 128
  %1984 = vxpose.xlu0.b32.cont [12/16] 0.0, 128
  %1985 = vxpose.xlu0.b32.cont [13/16] 0.0, 128
  %1986 = vxpose.xlu0.b32.cont [14/16] 0.0, 128
  %1987 = vxpose.xlu0.b32.cont [15/16] 0.0, 128
  %1988 = vxpose.xlu0.b32.end [16/16] 0.0, 128
  %v1989 = vpop.trf.xlu0
  %v1990 = vpop.trf.xlu0
  %v1991 = vpop.trf.xlu0
  %v1992 = vpop.trf.xlu0
  %v1993 = vpop.trf.xlu0
  %v1994 = vpop.trf.xlu0
  %v1995 = vpop.trf.xlu0
  %v1996 = vpop.trf.xlu0
  %v1997 = vpop.trf.xlu0
  %v1998 = vpop.trf.xlu0
  %v1999 = vpop.trf.xlu0
  %v2000 = vpop.trf.xlu0
  %v2001 = vpop.trf.xlu0
  %v2002 = vpop.trf.xlu0
  %v2003 = vpop.trf.xlu0
  %v2004 = vpop.trf.xlu0
  %2005 = vrot.lane.b32.xlu0 %v1925, 126
  %v2006 = vpop.permute.xlu0 %2005
  %2007 = vrot.lane.b32.xlu0 %v1930, 126
  %v2008 = vpop.permute.xlu0 %2007
  %2011 = vxpose.xlu0.b32.start [1/16] %v2006, 128
  %2012 = vxpose.xlu0.b32.cont [2/16] %v2008, 128
  %2013 = vxpose.xlu0.b32.cont [3/16] 0.0, 128
  %2014 = vxpose.xlu0.b32.cont [4/16] 0.0, 128
  %2015 = vxpose.xlu0.b32.cont [5/16] 0.0, 128
  %2016 = vxpose.xlu0.b32.cont [6/16] 0.0, 128
  %2017 = vxpose.xlu0.b32.cont [7/16] 0.0, 128
  %2018 = vxpose.xlu0.b32.cont [8/16] 0.0, 128
  %2019 = vxpose.xlu0.b32.cont [9/16] 0.0, 128
  %2020 = vxpose.xlu0.b32.cont [10/16] 0.0, 128
  %2021 = vxpose.xlu0.b32.cont [11/16] 0.0, 128
  %2022 = vxpose.xlu0.b32.cont [12/16] 0.0, 128
  %2023 = vxpose.xlu0.b32.cont [13/16] 0.0, 128
  %2024 = vxpose.xlu0.b32.cont [14/16] 0.0, 128
  %2025 = vxpose.xlu0.b32.cont [15/16] 0.0, 128
  %2026 = vxpose.xlu0.b32.end [16/16] 0.0, 128
  %v2027 = vpop.trf.xlu0
  %v2028 = vpop.trf.xlu0
  %v2029 = vpop.trf.xlu0
  %v2030 = vpop.trf.xlu0
  %v2031 = vpop.trf.xlu0
  %v2032 = vpop.trf.xlu0
  %v2033 = vpop.trf.xlu0
  %v2034 = vpop.trf.xlu0
  %v2035 = vpop.trf.xlu0
  %v2036 = vpop.trf.xlu0
  %v2037 = vpop.trf.xlu0
  %v2038 = vpop.trf.xlu0
  %v2039 = vpop.trf.xlu0
  %v2040 = vpop.trf.xlu0
  %v2041 = vpop.trf.xlu0
  %v2042 = vpop.trf.xlu0
  %2043 = vrot.lane.b32.xlu0 %v1925, 125
  %v2044 = vpop.permute.xlu0 %2043
  %2045 = vrot.lane.b32.xlu0 %v1930, 125
  %v2046 = vpop.permute.xlu0 %2045
  %2049 = vxpose.xlu0.b32.start [1/16] %v2044, 128
  %2050 = vxpose.xlu0.b32.cont [2/16] %v2046, 128
  %2051 = vxpose.xlu0.b32.cont [3/16] 0.0, 128
  %2052 = vxpose.xlu0.b32.cont [4/16] 0.0, 128
  %2053 = vxpose.xlu0.b32.cont [5/16] 0.0, 128
  %2054 = vxpose.xlu0.b32.cont [6/16] 0.0, 128
  %2055 = vxpose.xlu0.b32.cont [7/16] 0.0, 128
  %2056 = vxpose.xlu0.b32.cont [8/16] 0.0, 128
  %2057 = vxpose.xlu0.b32.cont [9/16] 0.0, 128
  %2058 = vxpose.xlu0.b32.cont [10/16] 0.0, 128
  %2059 = vxpose.xlu0.b32.cont [11/16] 0.0, 128
  %2060 = vxpose.xlu0.b32.cont [12/16] 0.0, 128
  %2061 = vxpose.xlu0.b32.cont [13/16] 0.0, 128
  %2062 = vxpose.xlu0.b32.cont [14/16] 0.0, 128
  %2063 = vxpose.xlu0.b32.cont [15/16] 0.0, 128
  %2064 = vxpose.xlu0.b32.end [16/16] 0.0, 128
  %v2065 = vpop.trf.xlu0
  %v2066 = vpop.trf.xlu0
  %v2067 = vpop.trf.xlu0
  %v2068 = vpop.trf.xlu0
  %v2069 = vpop.trf.xlu0
  %v2070 = vpop.trf.xlu0
  %v2071 = vpop.trf.xlu0
  %v2072 = vpop.trf.xlu0
  %v2073 = vpop.trf.xlu0
  %v2074 = vpop.trf.xlu0
  %v2075 = vpop.trf.xlu0
  %v2076 = vpop.trf.xlu0
  %v2077 = vpop.trf.xlu0
  %v2078 = vpop.trf.xlu0
  %v2079 = vpop.trf.xlu0
  %v2080 = vpop.trf.xlu0
  %2082 = vrot.lane.b32.xlu0 %v1989, 16
  %v2083 = vpop.permute.xlu0 %2082
  %2086 = vrot.lane.b32.xlu0 %v2027, 32
  %v2087 = vpop.permute.xlu0 %2086
  %2090 = vrot.lane.b32.xlu0 %v2065, 48
  %v2091 = vpop.permute.xlu0 %2090
  %v2093 = vsel %vm117, %v1949, %v2083
  %v2094 = vsel %vm990, %v2093, %v2087
  %vm2095 = vcmask 392192
  %v2096 = vsel %vm2095, %v2094, %v2091
  %v2097 = vlaneseq
  %v2098 = vshrl.u32 %v2097, 7
  %v2099 = vsub.s32 0, %v2098
  %v2100 = vrot.slane %v2096, %v2099
  %vm2101 = vcmask 31744
  %v2103 = vsel %vm2101, %v1850, 0
  %v2106 = vsel %vm2101, %v1855, 0
  %vm2108 = vcmask 1043456
  %v2109 = vsel %vm2108, %v99, 0
  %2111 = vmatprep.subr.mxu0 0.0
  %2112 = vmatpush1.msra.mxu0 %v2109
  %2113 = vmatprep.subr.mxu0 0.0
  %2114 = vmatpush1.msra.mxu0 0.0
  %2115 = vmatprep.subr.mxu0 0.0
  %2116 = vmatpush1.msra.mxu0 0.0
  %2117 = vmatprep.subr.mxu0 0.0
  %2118 = vmatpush1.msra.mxu0 0.0
  %2119 = vmatprep.subr.mxu0 0.0
  %2120 = vmatpush1.msra.mxu0 0.0
  %2121 = vmatprep.subr.mxu0 0.0
  %2122 = vmatpush1.msra.mxu0 0.0
  %2123 = vmatprep.subr.mxu0 0.0
  %2124 = vmatpush1.msra.mxu0 0.0
  %2125 = vmatprep.subr.mxu0 0.0
  %2126 = vmatpush1.msra.mxu0 0.0
  %2127 = vmatprep.subr.mxu0 0.0
  %2128 = vmatpush1.msra.mxu0 0.0
  %2129 = vmatprep.subr.mxu0 0.0
  %2130 = vmatpush1.msra.mxu0 0.0
  %2131 = vmatprep.subr.mxu0 0.0
  %2132 = vmatpush1.msra.mxu0 0.0
  %2133 = vmatprep.subr.mxu0 0.0
  %2134 = vmatpush1.msra.mxu0 0.0
  %2135 = vmatprep.subr.mxu0 0.0
  %2136 = vmatpush1.msra.mxu0 0.0
  %2137 = vmatprep.subr.mxu0 0.0
  %2138 = vmatpush1.msra.mxu0 0.0
  %2139 = vmatprep.subr.mxu0 0.0
  %2140 = vmatpush1.msra.mxu0 0.0
  %2141 = vmatprep.subr.mxu0 0.0
  %2142 = vmatpush1.msra.mxu0 0.0
  %2143 = vmatprep.subr.mxu0 0.0
  %2144 = vmatpush1.msra.mxu0 0.0
  %2145 = vmatprep.subr.mxu0 0.0
  %2146 = vmatpush1.msra.mxu0 0.0
  %2147 = vmatprep.subr.mxu0 0.0
  %2148 = vmatpush1.msra.mxu0 0.0
  %2149 = vmatprep.subr.mxu0 0.0
  %2150 = vmatpush1.msra.mxu0 0.0
  %2151 = vmatprep.subr.mxu0 0.0
  %2152 = vmatpush1.msra.mxu0 0.0
  %2153 = vmatprep.subr.mxu0 0.0
  %2154 = vmatpush1.msra.mxu0 0.0
  %2155 = vmatprep.subr.mxu0 0.0
  %2156 = vmatpush1.msra.mxu0 0.0
  %2157 = vmatprep.subr.mxu0 0.0
  %2158 = vmatpush1.msra.mxu0 0.0
  %2159 = vmatprep.subr.mxu0 0.0
  %2160 = vmatpush1.msra.mxu0 0.0
  %2161 = vmatprep.subr.mxu0 0.0
  %2162 = vmatpush1.msra.mxu0 0.0
  %2163 = vmatprep.subr.mxu0 0.0
  %2164 = vmatpush1.msra.mxu0 0.0
  %2165 = vmatprep.subr.mxu0 0.0
  %2166 = vmatpush1.msra.mxu0 0.0
  %2167 = vmatprep.subr.mxu0 0.0
  %2168 = vmatpush1.msra.mxu0 0.0
  %2169 = vmatprep.subr.mxu0 0.0
  %2170 = vmatpush1.msra.mxu0 0.0
  %2171 = vmatprep.subr.mxu0 0.0
  %2172 = vmatpush1.msra.mxu0 0.0
  %2173 = vmatprep.subr.mxu0 0.0
  %2174 = vmatpush1.msra.mxu0 0.0
  %2175 = vmatprep.mubr.f32.mxu0 0.0
  %2176 = vmatmul.mubr.f32.gmra.mrb[0].mxu0 %v2103
  %v2177 = vpop.f32.mrb[0].mxu0
  %v2178 = vadd.f32 %v2100, %v2177
  %v2179 = vpop.f32.mrb[0].mxu0
  %2180 = vmatprep.mubr.f32.mxu0 0.0
  %2181 = vmatmul.mubr.f32.gmra.mrb[0].mxu0 %v2106
  %v2182 = vpop.f32.mrb[0].mxu0
  %v2183 = vadd.f32 %v2100, %v2182
  %v2184 = vpop.f32.mrb[0].mxu0
  %2185 = vdwg.mxu0
  %vm2186 = vcmp.ge.f32.partialorder %v2178, 0.0
  %vm2187 = vcmp.ge.f32.partialorder %v2183, 0.0
  %v2188 = vmul.f32 %v2178, 0.2
  %v2189 = vmul.f32 %v2183, 0.2
  %v2190 = vsel %vm2186, %v2178, %v2188
  %v2191 = vsel %vm2187, %v2183, %v2189
  %v2192 = vsel %vm881, %v2190, -1e+30
  %v2193 = vsel %vm882, %v2191, -1e+30
  %v2194 = vsel %vm117, %v2192, -inf
  %2195 = vmax.xlane.f32.xlu0 %v2194
  %v2196 = vpop.xlane.xlu0 %2195
  %v2197 = vsel %vm117, %v2193, -inf
  %2198 = vmax.xlane.f32.xlu0 %v2197
  %v2199 = vpop.xlane.xlu0 %2198
  %v2200 = vsel %vm891, %v2192, -inf
  %2201 = vmax.xlane.f32.xlu0 %v2200
  %v2202 = vpop.xlane.xlu0 %2201
  %v2203 = vsel %vm891, %v2193, -inf
  %2204 = vmax.xlane.f32.xlu0 %v2203
  %v2205 = vpop.xlane.xlu0 %2204
  %vm2206 = vcmask 392448
  %v2207 = vsel %vm2206, %v2192, -inf
  %2208 = vmax.xlane.f32.xlu0 %v2207
  %v2209 = vpop.xlane.xlu0 %2208
  %v2210 = vsel %vm2206, %v2193, -inf
  %2211 = vmax.xlane.f32.xlu0 %v2210
  %v2212 = vpop.xlane.xlu0 %2211
  %vm2213 = vcmask 523648
  %v2214 = vsel %vm2213, %v2192, -inf
  %2215 = vmax.xlane.f32.xlu0 %v2214
  %v2216 = vpop.xlane.xlu0 %2215
  %v2217 = vsel %vm2213, %v2193, -inf
  %2218 = vmax.xlane.f32.xlu0 %v2217
  %v2219 = vpop.xlane.xlu0 %2218
  %v2220 = vsel %vm898, %v2196, %v2202
  %v2221 = vsel %vm898, %v2199, %v2205
  %v2222 = vsel %vm789, %v2220, %v2209
  %v2223 = vsel %vm789, %v2221, %v2212
  %vm2224 = vcmask 23552
  %v2225 = vsel %vm2224, %v2222, %v2216
  %v2226 = vsel %vm2224, %v2223, %v2219
  %v2228 = vsel %vm2101, %v2225, 0
  %v2231 = vsel %vm2101, %v2226, 0
  %2233 = vmatprep.subr.mxu0 0.0
  %2234 = vmatpush1.msra.mxu0 %v2109
  %2235 = vmatprep.subr.mxu0 0.0
  %2236 = vmatpush1.msra.mxu0 0.0
  %2237 = vmatprep.subr.mxu0 0.0
  %2238 = vmatpush1.msra.mxu0 0.0
  %2239 = vmatprep.subr.mxu0 0.0
  %2240 = vmatpush1.msra.mxu0 0.0
  %2241 = vmatprep.subr.mxu0 0.0
  %2242 = vmatpush1.msra.mxu0 0.0
  %2243 = vmatprep.subr.mxu0 0.0
  %2244 = vmatpush1.msra.mxu0 0.0
  %2245 = vmatprep.subr.mxu0 0.0
  %2246 = vmatpush1.msra.mxu0 0.0
  %2247 = vmatprep.subr.mxu0 0.0
  %2248 = vmatpush1.msra.mxu0 0.0
  %2249 = vmatprep.subr.mxu0 0.0
  %2250 = vmatpush1.msra.mxu0 0.0
  %2251 = vmatprep.subr.mxu0 0.0
  %2252 = vmatpush1.msra.mxu0 0.0
  %2253 = vmatprep.subr.mxu0 0.0
  %2254 = vmatpush1.msra.mxu0 0.0
  %2255 = vmatprep.subr.mxu0 0.0
  %2256 = vmatpush1.msra.mxu0 0.0
  %2257 = vmatprep.subr.mxu0 0.0
  %2258 = vmatpush1.msra.mxu0 0.0
  %2259 = vmatprep.subr.mxu0 0.0
  %2260 = vmatpush1.msra.mxu0 0.0
  %2261 = vmatprep.subr.mxu0 0.0
  %2262 = vmatpush1.msra.mxu0 0.0
  %2263 = vmatprep.subr.mxu0 0.0
  %2264 = vmatpush1.msra.mxu0 0.0
  %2265 = vmatprep.subr.mxu0 0.0
  %2266 = vmatpush1.msra.mxu0 0.0
  %2267 = vmatprep.subr.mxu0 0.0
  %2268 = vmatpush1.msra.mxu0 0.0
  %2269 = vmatprep.subr.mxu0 0.0
  %2270 = vmatpush1.msra.mxu0 0.0
  %2271 = vmatprep.subr.mxu0 0.0
  %2272 = vmatpush1.msra.mxu0 0.0
  %2273 = vmatprep.subr.mxu0 0.0
  %2274 = vmatpush1.msra.mxu0 0.0
  %2275 = vmatprep.subr.mxu0 0.0
  %2276 = vmatpush1.msra.mxu0 0.0
  %2277 = vmatprep.subr.mxu0 0.0
  %2278 = vmatpush1.msra.mxu0 0.0
  %2279 = vmatprep.subr.mxu0 0.0
  %2280 = vmatpush1.msra.mxu0 0.0
  %2281 = vmatprep.subr.mxu0 0.0
  %2282 = vmatpush1.msra.mxu0 0.0
  %2283 = vmatprep.subr.mxu0 0.0
  %2284 = vmatpush1.msra.mxu0 0.0
  %2285 = vmatprep.subr.mxu0 0.0
  %2286 = vmatpush1.msra.mxu0 0.0
  %2287 = vmatprep.subr.mxu0 0.0
  %2288 = vmatpush1.msra.mxu0 0.0
  %2289 = vmatprep.subr.mxu0 0.0
  %2290 = vmatpush1.msra.mxu0 0.0
  %2291 = vmatprep.subr.mxu0 0.0
  %2292 = vmatpush1.msra.mxu0 0.0
  %2293 = vmatprep.subr.mxu0 0.0
  %2294 = vmatpush1.msra.mxu0 0.0
  %2295 = vmatprep.subr.mxu0 0.0
  %2296 = vmatpush1.msra.mxu0 0.0
  %2297 = vmatprep.mubr.f32.mxu0 0.0
  %2298 = vmatmul.mubr.f32.gmra.mrb[0].mxu0 %v2228
  %v2299 = vpop.f32.mrb[0].mxu0
  %v2300 = vadd.f32 0.0, %v2299
  %v2301 = vpop.f32.mrb[0].mxu0
  %2302 = vmatprep.mubr.f32.mxu0 0.0
  %2303 = vmatmul.mubr.f32.gmra.mrb[0].mxu0 %v2231
  %v2304 = vpop.f32.mrb[0].mxu0
  %v2305 = vadd.f32 0.0, %v2304
  %v2306 = vpop.f32.mrb[0].mxu0
  %2307 = vdwg.mxu0
  %v2308 = vsub.f32 %v2192, %v2300
  %v2309 = vsub.f32 %v2193, %v2305
  %v2310 = vmul.f32 %v2308, 1.442695
  %v2311 = vpow.pop %v2310
  %v2312 = vmul.f32 %v2309, 1.442695
  %v2313 = vpow.pop %v2312
  %v2314 = vsel %vm881, %v2311, 0.0
  %v2315 = vsel %vm882, %v2313, 0.0
  %vm2316 = vcmask 523264
  %v2318 = vsel %vm2316, %v2314, 0
  %v2321 = vsel %vm2316, %v2315, 0
  %2323 = vmatprep.subr.mxu0 0.0
  %2324 = vmatpush1.msra.mxu0 %v100
  %2325 = vmatprep.subr.mxu0 0.0
  %2326 = vmatpush1.msra.mxu0 %v101
  %2327 = vmatprep.subr.mxu0 0.0
  %2328 = vmatpush1.msra.mxu0 %v102
  %2329 = vmatprep.subr.mxu0 0.0
  %2330 = vmatpush1.msra.mxu0 %v103
  %2331 = vmatprep.subr.mxu0 0.0
  %2332 = vmatpush1.msra.mxu0 %v104
  %2333 = vmatprep.subr.mxu0 0.0
  %2334 = vmatpush1.msra.mxu0 %v105
  %2335 = vmatprep.subr.mxu0 0.0
  %2336 = vmatpush1.msra.mxu0 %v106
  %2337 = vmatprep.subr.mxu0 0.0
  %2338 = vmatpush1.msra.mxu0 %v107
  %2339 = vmatprep.subr.mxu0 0.0
  %2340 = vmatpush1.msra.mxu0 0.0
  %2341 = vmatprep.subr.mxu0 0.0
  %2342 = vmatpush1.msra.mxu0 0.0
  %2343 = vmatprep.subr.mxu0 0.0
  %2344 = vmatpush1.msra.mxu0 0.0
  %2345 = vmatprep.subr.mxu0 0.0
  %2346 = vmatpush1.msra.mxu0 0.0
  %2347 = vmatprep.subr.mxu0 0.0
  %2348 = vmatpush1.msra.mxu0 0.0
  %2349 = vmatprep.subr.mxu0 0.0
  %2350 = vmatpush1.msra.mxu0 0.0
  %2351 = vmatprep.subr.mxu0 0.0
  %2352 = vmatpush1.msra.mxu0 0.0
  %2353 = vmatprep.subr.mxu0 0.0
  %2354 = vmatpush1.msra.mxu0 0.0
  %2355 = vmatprep.subr.mxu0 0.0
  %2356 = vmatpush1.msra.mxu0 0.0
  %2357 = vmatprep.subr.mxu0 0.0
  %2358 = vmatpush1.msra.mxu0 0.0
  %2359 = vmatprep.subr.mxu0 0.0
  %2360 = vmatpush1.msra.mxu0 0.0
  %2361 = vmatprep.subr.mxu0 0.0
  %2362 = vmatpush1.msra.mxu0 0.0
  %2363 = vmatprep.subr.mxu0 0.0
  %2364 = vmatpush1.msra.mxu0 0.0
  %2365 = vmatprep.subr.mxu0 0.0
  %2366 = vmatpush1.msra.mxu0 0.0
  %2367 = vmatprep.subr.mxu0 0.0
  %2368 = vmatpush1.msra.mxu0 0.0
  %2369 = vmatprep.subr.mxu0 0.0
  %2370 = vmatpush1.msra.mxu0 0.0
  %2371 = vmatprep.subr.mxu0 0.0
  %2372 = vmatpush1.msra.mxu0 0.0
  %2373 = vmatprep.subr.mxu0 0.0
  %2374 = vmatpush1.msra.mxu0 0.0
  %2375 = vmatprep.subr.mxu0 0.0
  %2376 = vmatpush1.msra.mxu0 0.0
  %2377 = vmatprep.subr.mxu0 0.0
  %2378 = vmatpush1.msra.mxu0 0.0
  %2379 = vmatprep.subr.mxu0 0.0
  %2380 = vmatpush1.msra.mxu0 0.0
  %2381 = vmatprep.subr.mxu0 0.0
  %2382 = vmatpush1.msra.mxu0 0.0
  %2383 = vmatprep.subr.mxu0 0.0
  %2384 = vmatpush1.msra.mxu0 0.0
  %2385 = vmatprep.subr.mxu0 0.0
  %2386 = vmatpush1.msra.mxu0 0.0
  %2387 = vmatprep.mubr.f32.mxu0 0.0
  %2388 = vmatmul.mubr.f32.gmra.mrb[0].mxu0 %v2318
  %v2389 = vpop.f32.mrb[0].mxu0
  %v2390 = vadd.f32 0.0, %v2389
  %v2391 = vpop.f32.mrb[0].mxu0
  %2392 = vmatprep.mubr.f32.mxu0 0.0
  %2393 = vmatmul.mubr.f32.gmra.mrb[0].mxu0 %v2321
  %v2394 = vpop.f32.mrb[0].mxu0
  %v2395 = vadd.f32 0.0, %v2394
  %v2396 = vpop.f32.mrb[0].mxu0
  %2397 = vdwg.mxu0
  %v2398 = vrcp.pop %v2390
  %v2399 = vrcp.pop %v2395
  %v2401 = vsel %vm2101, %v2398, 0
  %v2404 = vsel %vm2101, %v2399, 0
  %2406 = vmatprep.subr.mxu0 0.0
  %2407 = vmatpush1.msra.mxu0 %v2109
  %2408 = vmatprep.subr.mxu0 0.0
  %2409 = vmatpush1.msra.mxu0 0.0
  %2410 = vmatprep.subr.mxu0 0.0
  %2411 = vmatpush1.msra.mxu0 0.0
  %2412 = vmatprep.subr.mxu0 0.0
  %2413 = vmatpush1.msra.mxu0 0.0
  %2414 = vmatprep.subr.mxu0 0.0
  %2415 = vmatpush1.msra.mxu0 0.0
  %2416 = vmatprep.subr.mxu0 0.0
  %2417 = vmatpush1.msra.mxu0 0.0
  %2418 = vmatprep.subr.mxu0 0.0
  %2419 = vmatpush1.msra.mxu0 0.0
  %2420 = vmatprep.subr.mxu0 0.0
  %2421 = vmatpush1.msra.mxu0 0.0
  %2422 = vmatprep.subr.mxu0 0.0
  %2423 = vmatpush1.msra.mxu0 0.0
  %2424 = vmatprep.subr.mxu0 0.0
  %2425 = vmatpush1.msra.mxu0 0.0
  %2426 = vmatprep.subr.mxu0 0.0
  %2427 = vmatpush1.msra.mxu0 0.0
  %2428 = vmatprep.subr.mxu0 0.0
  %2429 = vmatpush1.msra.mxu0 0.0
  %2430 = vmatprep.subr.mxu0 0.0
  %2431 = vmatpush1.msra.mxu0 0.0
  %2432 = vmatprep.subr.mxu0 0.0
  %2433 = vmatpush1.msra.mxu0 0.0
  %2434 = vmatprep.subr.mxu0 0.0
  %2435 = vmatpush1.msra.mxu0 0.0
  %2436 = vmatprep.subr.mxu0 0.0
  %2437 = vmatpush1.msra.mxu0 0.0
  %2438 = vmatprep.subr.mxu0 0.0
  %2439 = vmatpush1.msra.mxu0 0.0
  %2440 = vmatprep.subr.mxu0 0.0
  %2441 = vmatpush1.msra.mxu0 0.0
  %2442 = vmatprep.subr.mxu0 0.0
  %2443 = vmatpush1.msra.mxu0 0.0
  %2444 = vmatprep.subr.mxu0 0.0
  %2445 = vmatpush1.msra.mxu0 0.0
  %2446 = vmatprep.subr.mxu0 0.0
  %2447 = vmatpush1.msra.mxu0 0.0
  %2448 = vmatprep.subr.mxu0 0.0
  %2449 = vmatpush1.msra.mxu0 0.0
  %2450 = vmatprep.subr.mxu0 0.0
  %2451 = vmatpush1.msra.mxu0 0.0
  %2452 = vmatprep.subr.mxu0 0.0
  %2453 = vmatpush1.msra.mxu0 0.0
  %2454 = vmatprep.subr.mxu0 0.0
  %2455 = vmatpush1.msra.mxu0 0.0
  %2456 = vmatprep.subr.mxu0 0.0
  %2457 = vmatpush1.msra.mxu0 0.0
  %2458 = vmatprep.subr.mxu0 0.0
  %2459 = vmatpush1.msra.mxu0 0.0
  %2460 = vmatprep.subr.mxu0 0.0
  %2461 = vmatpush1.msra.mxu0 0.0
  %2462 = vmatprep.subr.mxu0 0.0
  %2463 = vmatpush1.msra.mxu0 0.0
  %2464 = vmatprep.subr.mxu0 0.0
  %2465 = vmatpush1.msra.mxu0 0.0
  %2466 = vmatprep.subr.mxu0 0.0
  %2467 = vmatpush1.msra.mxu0 0.0
  %2468 = vmatprep.subr.mxu0 0.0
  %2469 = vmatpush1.msra.mxu0 0.0
  %2470 = vmatprep.mubr.f32.mxu0 0.0
  %2471 = vmatmul.mubr.f32.gmra.mrb[0].mxu0 %v2401
  %v2472 = vpop.f32.mrb[0].mxu0
  %v2473 = vadd.f32 0.0, %v2472
  %v2474 = vpop.f32.mrb[0].mxu0
  %2475 = vmatprep.mubr.f32.mxu0 0.0
  %2476 = vmatmul.mubr.f32.gmra.mrb[0].mxu0 %v2404
  %v2477 = vpop.f32.mrb[0].mxu0
  %v2478 = vadd.f32 0.0, %v2477
  %v2479 = vpop.f32.mrb[0].mxu0
  %2480 = vdwg.mxu0
  %v2481 = vmul.f32 %v2314, %v2473
  %v2482 = vmul.f32 %v2315, %v2478
  %v2483 = vmul.f32 %v1769, %v1160
  %v2484 = vmul.f32 %v1774, %v1160
  %v2485 = vmul.f32 %v1769, %v1166
  %v2486 = vmul.f32 %v1774, %v1166
  %v2487 = vlaneseq
  %v2488 = vshrl.u32 %v2487, 7
  %v2489 = vsub.s32 2, %v2488
  %v2490 = vrot.slane %v116, %v2489
  %v2491 = vmul.f32 %v1769, %v2490
  %v2492 = vmul.f32 %v1774, %v2490
  %v2493 = vlaneseq
  %v2494 = vshrl.u32 %v2493, 7
  %v2495 = vsub.s32 3, %v2494
  %v2496 = vrot.slane %v116, %v2495
  %v2497 = vmul.f32 %v1769, %v2496
  %v2498 = vmul.f32 %v1774, %v2496
  %v2499 = vlaneseq
  %v2500 = vshrl.u32 %v2499, 7
  %v2501 = vsub.s32 0, %v2500
  %v2502 = vrot.slane %v1695, %v2501
  %v2504 = vsel %vm2316, %v2481, 0
  %v2507 = vsel %vm2316, %v2482, 0
  %2509 = vmatprep.subr.mxu0 0.0
  %2510 = vmatpush1.msra.mxu0 %v2483
  %2511 = vmatprep.subr.mxu0 0.0
  %2512 = vmatpush1.msra.mxu0 %v2484
  %2513 = vmatprep.subr.mxu0 0.0
  %2514 = vmatpush1.msra.mxu0 %v2485
  %2515 = vmatprep.subr.mxu0 0.0
  %2516 = vmatpush1.msra.mxu0 %v2486
  %2517 = vmatprep.subr.mxu0 0.0
  %2518 = vmatpush1.msra.mxu0 %v2491
  %2519 = vmatprep.subr.mxu0 0.0
  %2520 = vmatpush1.msra.mxu0 %v2492
  %2521 = vmatprep.subr.mxu0 0.0
  %2522 = vmatpush1.msra.mxu0 %v2497
  %2523 = vmatprep.subr.mxu0 0.0
  %2524 = vmatpush1.msra.mxu0 %v2498
  %2525 = vmatprep.subr.mxu0 0.0
  %2526 = vmatpush1.msra.mxu0 0.0
  %2527 = vmatprep.subr.mxu0 0.0
  %2528 = vmatpush1.msra.mxu0 0.0
  %2529 = vmatprep.subr.mxu0 0.0
  %2530 = vmatpush1.msra.mxu0 0.0
  %2531 = vmatprep.subr.mxu0 0.0
  %2532 = vmatpush1.msra.mxu0 0.0
  %2533 = vmatprep.subr.mxu0 0.0
  %2534 = vmatpush1.msra.mxu0 0.0
  %2535 = vmatprep.subr.mxu0 0.0
  %2536 = vmatpush1.msra.mxu0 0.0
  %2537 = vmatprep.subr.mxu0 0.0
  %2538 = vmatpush1.msra.mxu0 0.0
  %2539 = vmatprep.subr.mxu0 0.0
  %2540 = vmatpush1.msra.mxu0 0.0
  %2541 = vmatprep.subr.mxu0 0.0
  %2542 = vmatpush1.msra.mxu0 0.0
  %2543 = vmatprep.subr.mxu0 0.0
  %2544 = vmatpush1.msra.mxu0 0.0
  %2545 = vmatprep.subr.mxu0 0.0
  %2546 = vmatpush1.msra.mxu0 0.0
  %2547 = vmatprep.subr.mxu0 0.0
  %2548 = vmatpush1.msra.mxu0 0.0
  %2549 = vmatprep.subr.mxu0 0.0
  %2550 = vmatpush1.msra.mxu0 0.0
  %2551 = vmatprep.subr.mxu0 0.0
  %2552 = vmatpush1.msra.mxu0 0.0
  %2553 = vmatprep.subr.mxu0 0.0
  %2554 = vmatpush1.msra.mxu0 0.0
  %2555 = vmatprep.subr.mxu0 0.0
  %2556 = vmatpush1.msra.mxu0 0.0
  %2557 = vmatprep.subr.mxu0 0.0
  %2558 = vmatpush1.msra.mxu0 0.0
  %2559 = vmatprep.subr.mxu0 0.0
  %2560 = vmatpush1.msra.mxu0 0.0
  %2561 = vmatprep.subr.mxu0 0.0
  %2562 = vmatpush1.msra.mxu0 0.0
  %2563 = vmatprep.subr.mxu0 0.0
  %2564 = vmatpush1.msra.mxu0 0.0
  %2565 = vmatprep.subr.mxu0 0.0
  %2566 = vmatpush1.msra.mxu0 0.0
  %2567 = vmatprep.subr.mxu0 0.0
  %2568 = vmatpush1.msra.mxu0 0.0
  %2569 = vmatprep.subr.mxu0 0.0
  %2570 = vmatpush1.msra.mxu0 0.0
  %2571 = vmatprep.subr.mxu0 0.0
  %2572 = vmatpush1.msra.mxu0 0.0
  %2573 = vmatprep.mubr.f32.mxu0 0.0
  %2574 = vmatmul.mubr.f32.gmra.mrb[0].mxu0 %v2504
  %v2575 = vpop.f32.mrb[0].mxu0
  %v2576 = vadd.f32 %v2502, %v2575
  %v2577 = vpop.f32.mrb[0].mxu0
  %2578 = vmatprep.mubr.f32.mxu0 0.0
  %2579 = vmatmul.mubr.f32.gmra.mrb[0].mxu0 %v2507
  %v2580 = vpop.f32.mrb[0].mxu0
  %v2581 = vadd.f32 %v2502, %v2580
  %v2582 = vpop.f32.mrb[0].mxu0
  %2583 = vdwg.mxu0
  %v2584 = vlaneseq
  %v2585 = vshrl.u32 %v2584, 7
  %v2586 = vsub.s32 1, %v2585
  %v2587 = vrot.slane %v1695, %v2586
  %v2588 = vmul.f32 %v2576, %v2587
  %v2589 = vmul.f32 %v2581, %v2587
  %v2590 = vlaneseq
  %v2591 = vshrl.u32 %v2590, 7
  %v2592 = vsub.s32 2, %v2591
  %v2593 = vrot.slane %v1695, %v2592
  %v2594 = vadd.f32 %v2588, %v2593
  %v2595 = vadd.f32 %v2589, %v2593
  %vm2596 = vcmp.gt.f32.partialorder %v2594, 0.0
  %vm2597 = vcmp.gt.f32.partialorder %v2595, 0.0
  %v2598 = vmin.f32 %v2594, 0.0
  %v2599 = vmin.f32 %v2595, 0.0
  %v2600 = vmul.f32 %v2598, 1.442695
  %v2601 = vpow.pop %v2600
  %v2602 = vmul.f32 %v2599, 1.442695
  %v2603 = vpow.pop %v2602
  %v2604 = vsub.f32 %v2601, 1.0
  %v2605 = vsub.f32 %v2603, 1.0
  %v2606 = vsel %vm2596, %v2594, %v2604
  %v2607 = vsel %vm2597, %v2595, %v2605
  %v2608 = vlaneseq
  %v2609 = vshrl.u32 %v2608, 7
  %v2610 = vsub.s32 3, %v2609
  %v2611 = vrot.slane %v1695, %v2610
  %v2613 = vsel %vm990, %v2606, 0
  %v2616 = vsel %vm990, %v2607, 0
  %2618 = vmatprep.subr.mxu0 0.0
  %2619 = vmatpush1.msra.mxu0 %v1691
  %2620 = vmatprep.subr.mxu0 0.0
  %2621 = vmatpush1.msra.mxu0 %v1692
  %2622 = vmatprep.subr.mxu0 0.0
  %2623 = vmatpush1.msra.mxu0 %v1693
  %2624 = vmatprep.subr.mxu0 0.0
  %2625 = vmatpush1.msra.mxu0 %v1694
  %2626 = vmatprep.subr.mxu0 0.0
  %2627 = vmatpush1.msra.mxu0 0.0
  %2628 = vmatprep.subr.mxu0 0.0
  %2629 = vmatpush1.msra.mxu0 0.0
  %2630 = vmatprep.subr.mxu0 0.0
  %2631 = vmatpush1.msra.mxu0 0.0
  %2632 = vmatprep.subr.mxu0 0.0
  %2633 = vmatpush1.msra.mxu0 0.0
  %2634 = vmatprep.subr.mxu0 0.0
  %2635 = vmatpush1.msra.mxu0 0.0
  %2636 = vmatprep.subr.mxu0 0.0
  %2637 = vmatpush1.msra.mxu0 0.0
  %2638 = vmatprep.subr.mxu0 0.0
  %2639 = vmatpush1.msra.mxu0 0.0
  %2640 = vmatprep.subr.mxu0 0.0
  %2641 = vmatpush1.msra.mxu0 0.0
  %2642 = vmatprep.subr.mxu0 0.0
  %2643 = vmatpush1.msra.mxu0 0.0
  %2644 = vmatprep.subr.mxu0 0.0
  %2645 = vmatpush1.msra.mxu0 0.0
  %2646 = vmatprep.subr.mxu0 0.0
  %2647 = vmatpush1.msra.mxu0 0.0
  %2648 = vmatprep.subr.mxu0 0.0
  %2649 = vmatpush1.msra.mxu0 0.0
  %2650 = vmatprep.subr.mxu0 0.0
  %2651 = vmatpush1.msra.mxu0 0.0
  %2652 = vmatprep.subr.mxu0 0.0
  %2653 = vmatpush1.msra.mxu0 0.0
  %2654 = vmatprep.subr.mxu0 0.0
  %2655 = vmatpush1.msra.mxu0 0.0
  %2656 = vmatprep.subr.mxu0 0.0
  %2657 = vmatpush1.msra.mxu0 0.0
  %2658 = vmatprep.subr.mxu0 0.0
  %2659 = vmatpush1.msra.mxu0 0.0
  %2660 = vmatprep.subr.mxu0 0.0
  %2661 = vmatpush1.msra.mxu0 0.0
  %2662 = vmatprep.subr.mxu0 0.0
  %2663 = vmatpush1.msra.mxu0 0.0
  %2664 = vmatprep.subr.mxu0 0.0
  %2665 = vmatpush1.msra.mxu0 0.0
  %2666 = vmatprep.subr.mxu0 0.0
  %2667 = vmatpush1.msra.mxu0 0.0
  %2668 = vmatprep.subr.mxu0 0.0
  %2669 = vmatpush1.msra.mxu0 0.0
  %2670 = vmatprep.subr.mxu0 0.0
  %2671 = vmatpush1.msra.mxu0 0.0
  %2672 = vmatprep.subr.mxu0 0.0
  %2673 = vmatpush1.msra.mxu0 0.0
  %2674 = vmatprep.subr.mxu0 0.0
  %2675 = vmatpush1.msra.mxu0 0.0
  %2676 = vmatprep.subr.mxu0 0.0
  %2677 = vmatpush1.msra.mxu0 0.0
  %2678 = vmatprep.subr.mxu0 0.0
  %2679 = vmatpush1.msra.mxu0 0.0
  %2680 = vmatprep.subr.mxu0 0.0
  %2681 = vmatpush1.msra.mxu0 0.0
  %2682 = vmatprep.mubr.f32.mxu0 0.0
  %2683 = vmatmul.mubr.f32.gmra.mrb[0].mxu0 %v2613
  %v2684 = vpop.f32.mrb[0].mxu0
  %v2685 = vadd.f32 %v2611, %v2684
  %v2686 = vpop.f32.mrb[0].mxu0
  %2687 = vmatprep.mubr.f32.mxu0 0.0
  %2688 = vmatmul.mubr.f32.gmra.mrb[0].mxu0 %v2616
  %v2689 = vpop.f32.mrb[0].mxu0
  %v2690 = vadd.f32 %v2611, %v2689
  %v2691 = vpop.f32.mrb[0].mxu0
  %2692 = vdwg.mxu0
  %2695 = vrot.lane.b32.xlu0 %v1673, 8
  %v2696 = vpop.permute.xlu0 %2695
  %2697 = vrot.lane.b32.xlu0 %v1678, 8
  %v2698 = vpop.permute.xlu0 %2697
  %2703 = vrot.lane.b32.xlu0 %v1596, 8
  %v2704 = vpop.permute.xlu0 %2703
  %2705 = vrot.lane.b32.xlu0 %v1601, 8
  %v2706 = vpop.permute.xlu0 %2705
  %2709 = vrot.lane.b32.xlu0 %v1673, 16
  %v2710 = vpop.permute.xlu0 %2709
  %2711 = vrot.lane.b32.xlu0 %v1678, 16
  %v2712 = vpop.permute.xlu0 %2711
  %v2715 = vsel %vm470, %v1596, %v2696
  %v2716 = vsel %vm470, %v1601, %v2698
  %v2717 = vsel %vm117, %v2715, %v2704
  %v2718 = vsel %vm117, %v2716, %v2706
  %vm2719 = vcmask 195584
  %v2720 = vsel %vm2719, %v2717, %v2710
  %v2721 = vsel %vm2719, %v2718, %v2712
  %v2722 = vand.u32 2147483647, %v2720
  %v2723 = vand.u32 2147483647, %v2721
  %2724 = vmatprep.subr.mxu0 0.0
  %2725 = vmatpush1.msra.mxu0 %v2722
  %2726 = vmatprep.subr.mxu0 0.0
  %2727 = vmatpush1.msra.mxu0 %v2723
  %2728 = vmatprep.subr.mxu0 0.0
  %2729 = vmatpush1.msra.mxu0 0.0
  %2730 = vmatprep.subr.mxu0 0.0
  %2731 = vmatpush1.msra.mxu0 0.0
  %2732 = vmatprep.subr.mxu0 0.0
  %2733 = vmatpush1.msra.mxu0 0.0
  %2734 = vmatprep.subr.mxu0 0.0
  %2735 = vmatpush1.msra.mxu0 0.0
  %2736 = vmatprep.subr.mxu0 0.0
  %2737 = vmatpush1.msra.mxu0 0.0
  %2738 = vmatprep.subr.mxu0 0.0
  %2739 = vmatpush1.msra.mxu0 0.0
  %2740 = vmatprep.subr.mxu0 0.0
  %2741 = vmatpush1.msra.mxu0 0.0
  %2742 = vmatprep.subr.mxu0 0.0
  %2743 = vmatpush1.msra.mxu0 0.0
  %2744 = vmatprep.subr.mxu0 0.0
  %2745 = vmatpush1.msra.mxu0 0.0
  %2746 = vmatprep.subr.mxu0 0.0
  %2747 = vmatpush1.msra.mxu0 0.0
  %2748 = vmatprep.subr.mxu0 0.0
  %2749 = vmatpush1.msra.mxu0 0.0
  %2750 = vmatprep.subr.mxu0 0.0
  %2751 = vmatpush1.msra.mxu0 0.0
  %2752 = vmatprep.subr.mxu0 0.0
  %2753 = vmatpush1.msra.mxu0 0.0
  %2754 = vmatprep.subr.mxu0 0.0
  %2755 = vmatpush1.msra.mxu0 0.0
  %2756 = vmatprep.subr.mxu0 0.0
  %2757 = vmatpush1.msra.mxu0 0.0
  %2758 = vmatprep.subr.mxu0 0.0
  %2759 = vmatpush1.msra.mxu0 0.0
  %2760 = vmatprep.subr.mxu0 0.0
  %2761 = vmatpush1.msra.mxu0 0.0
  %2762 = vmatprep.subr.mxu0 0.0
  %2763 = vmatpush1.msra.mxu0 0.0
  %2764 = vmatprep.subr.mxu0 0.0
  %2765 = vmatpush1.msra.mxu0 0.0
  %2766 = vmatprep.subr.mxu0 0.0
  %2767 = vmatpush1.msra.mxu0 0.0
  %2768 = vmatprep.subr.mxu0 0.0
  %2769 = vmatpush1.msra.mxu0 0.0
  %2770 = vmatprep.subr.mxu0 0.0
  %2771 = vmatpush1.msra.mxu0 0.0
  %2772 = vmatprep.subr.mxu0 0.0
  %2773 = vmatpush1.msra.mxu0 0.0
  %2774 = vmatprep.subr.mxu0 0.0
  %2775 = vmatpush1.msra.mxu0 0.0
  %2776 = vmatprep.subr.mxu0 0.0
  %2777 = vmatpush1.msra.mxu0 0.0
  %2778 = vmatprep.subr.mxu0 0.0
  %2779 = vmatpush1.msra.mxu0 0.0
  %2780 = vmatprep.subr.mxu0 0.0
  %2781 = vmatpush1.msra.mxu0 0.0
  %2782 = vmatprep.subr.mxu0 0.0
  %2783 = vmatpush1.msra.mxu0 0.0
  %2784 = vmatprep.subr.mxu0 0.0
  %2785 = vmatpush1.msra.mxu0 0.0
  %2786 = vmatprep.subr.mxu0 0.0
  %2787 = vmatpush1.msra.mxu0 0.0
  %2788 = vmatprep.mubr.f32.mxu0 0.0
  %2789 = vmatmul.mubr.f32.gmra.mrb[0].mxu0 %v119
  %v2790 = vpop.f32.mrb[0].mxu0
  %v2791 = vadd.f32 0.0, %v2790
  %v2792 = vpop.f32.mrb[0].mxu0
  %2793 = vmatprep.mubr.f32.mxu0 0.0
  %2794 = vmatmul.mubr.f32.gmra.mrb[0].mxu0 %v122
  %v2795 = vpop.f32.mrb[0].mxu0
  %v2796 = vadd.f32 0.0, %v2795
  %v2797 = vpop.f32.mrb[0].mxu0
  %2798 = vdwg.mxu0
  %v2799 = vmul.f32 %v202, %v2791
  %v2800 = vmul.f32 %v207, %v2796
  %2801 = vmatprep.subr.mxu0 0.0
  %2802 = vmatpush1.msra.mxu0 %v2799
  %2803 = vmatprep.subr.mxu0 0.0
  %2804 = vmatpush1.msra.mxu0 %v2800
  %2805 = vmatprep.subr.mxu0 0.0
  %2806 = vmatpush1.msra.mxu0 0.0
  %2807 = vmatprep.subr.mxu0 0.0
  %2808 = vmatpush1.msra.mxu0 0.0
  %2809 = vmatprep.subr.mxu0 0.0
  %2810 = vmatpush1.msra.mxu0 0.0
  %2811 = vmatprep.subr.mxu0 0.0
  %2812 = vmatpush1.msra.mxu0 0.0
  %2813 = vmatprep.subr.mxu0 0.0
  %2814 = vmatpush1.msra.mxu0 0.0
  %2815 = vmatprep.subr.mxu0 0.0
  %2816 = vmatpush1.msra.mxu0 0.0
  %2817 = vmatprep.subr.mxu0 0.0
  %2818 = vmatpush1.msra.mxu0 0.0
  %2819 = vmatprep.subr.mxu0 0.0
  %2820 = vmatpush1.msra.mxu0 0.0
  %2821 = vmatprep.subr.mxu0 0.0
  %2822 = vmatpush1.msra.mxu0 0.0
  %2823 = vmatprep.subr.mxu0 0.0
  %2824 = vmatpush1.msra.mxu0 0.0
  %2825 = vmatprep.subr.mxu0 0.0
  %2826 = vmatpush1.msra.mxu0 0.0
  %2827 = vmatprep.subr.mxu0 0.0
  %2828 = vmatpush1.msra.mxu0 0.0
  %2829 = vmatprep.subr.mxu0 0.0
  %2830 = vmatpush1.msra.mxu0 0.0
  %2831 = vmatprep.subr.mxu0 0.0
  %2832 = vmatpush1.msra.mxu0 0.0
  %2833 = vmatprep.subr.mxu0 0.0
  %2834 = vmatpush1.msra.mxu0 0.0
  %2835 = vmatprep.subr.mxu0 0.0
  %2836 = vmatpush1.msra.mxu0 0.0
  %2837 = vmatprep.subr.mxu0 0.0
  %2838 = vmatpush1.msra.mxu0 0.0
  %2839 = vmatprep.subr.mxu0 0.0
  %2840 = vmatpush1.msra.mxu0 0.0
  %2841 = vmatprep.subr.mxu0 0.0
  %2842 = vmatpush1.msra.mxu0 0.0
  %2843 = vmatprep.subr.mxu0 0.0
  %2844 = vmatpush1.msra.mxu0 0.0
  %2845 = vmatprep.subr.mxu0 0.0
  %2846 = vmatpush1.msra.mxu0 0.0
  %2847 = vmatprep.subr.mxu0 0.0
  %2848 = vmatpush1.msra.mxu0 0.0
  %2849 = vmatprep.subr.mxu0 0.0
  %2850 = vmatpush1.msra.mxu0 0.0
  %2851 = vmatprep.subr.mxu0 0.0
  %2852 = vmatpush1.msra.mxu0 0.0
  %2853 = vmatprep.subr.mxu0 0.0
  %2854 = vmatpush1.msra.mxu0 0.0
  %2855 = vmatprep.subr.mxu0 0.0
  %2856 = vmatpush1.msra.mxu0 0.0
  %2857 = vmatprep.subr.mxu0 0.0
  %2858 = vmatpush1.msra.mxu0 0.0
  %2859 = vmatprep.subr.mxu0 0.0
  %2860 = vmatpush1.msra.mxu0 0.0
  %2861 = vmatprep.subr.mxu0 0.0
  %2862 = vmatpush1.msra.mxu0 0.0
  %2863 = vmatprep.subr.mxu0 0.0
  %2864 = vmatpush1.msra.mxu0 0.0
  %2865 = vmatprep.mubr.f32.mxu0 0.0
  %2866 = vmatmul.mubr.f32.gmra.mrb[0].mxu0 %v212
  %v2867 = vpop.f32.mrb[0].mxu0
  %v2868 = vadd.f32 0.0, %v2867
  %v2869 = vpop.f32.mrb[0].mxu0
  %2870 = vmatprep.mubr.f32.mxu0 0.0
  %2871 = vmatmul.mubr.f32.gmra.mrb[0].mxu0 %v215
  %v2872 = vpop.f32.mrb[0].mxu0
  %v2873 = vadd.f32 0.0, %v2872
  %v2874 = vpop.f32.mrb[0].mxu0
  %2875 = vdwg.mxu0
  %v2876 = vld [vmem:[%s18] sm:$0xff]
  %v2877 = vld [vmem:[%s18 + $0x8] sm:$0xff]
  %v2878 = vld [vmem:[%s18 + $0x10] sm:$0xff]
  %v2879 = vld [vmem:[%s18 + $0x18] sm:$0xff]
  %v2880 = vld [vmem:[%s19] sm:$0xff]
  %v2881 = vld [vmem:[%s19 + $0x8] sm:$0xff]
  %v2882 = vld [vmem:[%s19 + $0x10] sm:$0xff]
  %v2883 = vld [vmem:[%s19 + $0x18] sm:$0xff]
  %v2884 = vld [vmem:[%s19 + $0x20] sm:$0xff]
  %v2885 = vld [vmem:[%s19 + $0x28] sm:$0xff]
  %v2886 = vld [vmem:[%s19 + $0x30] sm:$0xff]
  %v2887 = vld [vmem:[%s19 + $0x38] sm:$0xff]
  %v2888 = vld [vmem:[%s20] sm:$0xff]
  %v2889 = vld [vmem:[%s20 + $0x8] sm:$0xff]
  %v2890 = vld [vmem:[%s20 + $0x10] sm:$0xff]
  %v2891 = vld [vmem:[%s20 + $0x18] sm:$0xff]
  %v2892 = vld [vmem:[%s20 + $0x20] sm:$0xff]
  %v2893 = vld [vmem:[%s20 + $0x28] sm:$0xff]
  %v2894 = vld [vmem:[%s20 + $0x30] sm:$0xff]
  %v2895 = vld [vmem:[%s20 + $0x38] sm:$0xff]
  %v2896 = vld [vmem:[%s21] sm:$0xff]
  %v2897 = vld [vmem:[%s21 + $0x8] sm:$0xff]
  %v2898 = vld [vmem:[%s21 + $0x10] sm:$0xff]
  %v2899 = vld [vmem:[%s21 + $0x18] sm:$0xff]
  %v2900 = vld [vmem:[%s21 + $0x20] sm:$0xff]
  %v2901 = vld [vmem:[%s21 + $0x28] sm:$0xff]
  %v2902 = vld [vmem:[%s21 + $0x30] sm:$0xff]
  %v2903 = vld [vmem:[%s21 + $0x38] sm:$0xff]
  %v2904 = vld [vmem:[%s22] sm:$0xf]
  %v2906 = vsel %vm990, %v2868, 0
  %v2909 = vsel %vm990, %v2873, 0
  %2911 = vmatprep.subr.mxu0 0.0
  %2912 = vmatpush1.msra.mxu0 %v2876
  %2913 = vmatprep.subr.mxu0 0.0
  %2914 = vmatpush1.msra.mxu0 %v2877
  %2915 = vmatprep.subr.mxu0 0.0
  %2916 = vmatpush1.msra.mxu0 %v2878
  %2917 = vmatprep.subr.mxu0 0.0
  %2918 = vmatpush1.msra.mxu0 %v2879
  %2919 = vmatprep.subr.mxu0 0.0
  %2920 = vmatpush1.msra.mxu0 0.0
  %2921 = vmatprep.subr.mxu0 0.0
  %2922 = vmatpush1.msra.mxu0 0.0
  %2923 = vmatprep.subr.mxu0 0.0
  %2924 = vmatpush1.msra.mxu0 0.0
  %2925 = vmatprep.subr.mxu0 0.0
  %2926 = vmatpush1.msra.mxu0 0.0
  %2927 = vmatprep.subr.mxu0 0.0
  %2928 = vmatpush1.msra.mxu0 0.0
  %2929 = vmatprep.subr.mxu0 0.0
  %2930 = vmatpush1.msra.mxu0 0.0
  %2931 = vmatprep.subr.mxu0 0.0
  %2932 = vmatpush1.msra.mxu0 0.0
  %2933 = vmatprep.subr.mxu0 0.0
  %2934 = vmatpush1.msra.mxu0 0.0
  %2935 = vmatprep.subr.mxu0 0.0
  %2936 = vmatpush1.msra.mxu0 0.0
  %2937 = vmatprep.subr.mxu0 0.0
  %2938 = vmatpush1.msra.mxu0 0.0
  %2939 = vmatprep.subr.mxu0 0.0
  %2940 = vmatpush1.msra.mxu0 0.0
  %2941 = vmatprep.subr.mxu0 0.0
  %2942 = vmatpush1.msra.mxu0 0.0
  %2943 = vmatprep.subr.mxu0 0.0
  %2944 = vmatpush1.msra.mxu0 0.0
  %2945 = vmatprep.subr.mxu0 0.0
  %2946 = vmatpush1.msra.mxu0 0.0
  %2947 = vmatprep.subr.mxu0 0.0
  %2948 = vmatpush1.msra.mxu0 0.0
  %2949 = vmatprep.subr.mxu0 0.0
  %2950 = vmatpush1.msra.mxu0 0.0
  %2951 = vmatprep.subr.mxu0 0.0
  %2952 = vmatpush1.msra.mxu0 0.0
  %2953 = vmatprep.subr.mxu0 0.0
  %2954 = vmatpush1.msra.mxu0 0.0
  %2955 = vmatprep.subr.mxu0 0.0
  %2956 = vmatpush1.msra.mxu0 0.0
  %2957 = vmatprep.subr.mxu0 0.0
  %2958 = vmatpush1.msra.mxu0 0.0
  %2959 = vmatprep.subr.mxu0 0.0
  %2960 = vmatpush1.msra.mxu0 0.0
  %2961 = vmatprep.subr.mxu0 0.0
  %2962 = vmatpush1.msra.mxu0 0.0
  %2963 = vmatprep.subr.mxu0 0.0
  %2964 = vmatpush1.msra.mxu0 0.0
  %2965 = vmatprep.subr.mxu0 0.0
  %2966 = vmatpush1.msra.mxu0 0.0
  %2967 = vmatprep.subr.mxu0 0.0
  %2968 = vmatpush1.msra.mxu0 0.0
  %2969 = vmatprep.subr.mxu0 0.0
  %2970 = vmatpush1.msra.mxu0 0.0
  %2971 = vmatprep.subr.mxu0 0.0
  %2972 = vmatpush1.msra.mxu0 0.0
  %2973 = vmatprep.subr.mxu0 0.0
  %2974 = vmatpush1.msra.mxu0 0.0
  %2975 = vmatprep.mubr.f32.mxu0 0.0
  %2976 = vmatmul.mubr.f32.gmra.mrb[0].mxu0 %v2906
  %v2977 = vpop.f32.mrb[0].mxu0
  %v2978 = vadd.f32 0.0, %v2977
  %v2979 = vpop.f32.mrb[0].mxu0
  %2980 = vmatprep.mubr.f32.mxu0 0.0
  %2981 = vmatmul.mubr.f32.gmra.mrb[0].mxu0 %v2909
  %v2982 = vpop.f32.mrb[0].mxu0
  %v2983 = vadd.f32 0.0, %v2982
  %v2984 = vpop.f32.mrb[0].mxu0
  %2985 = vdwg.mxu0
  %v2987 = vsel %vm2316, %v2978, 0
  %v2990 = vsel %vm2316, %v2983, 0
  %2992 = vmatprep.subr.mxu0 0.0
  %2993 = vmatpush1.msra.mxu0 %v2888
  %2994 = vmatprep.subr.mxu0 0.0
  %2995 = vmatpush1.msra.mxu0 %v2889
  %2996 = vmatprep.subr.mxu0 0.0
  %2997 = vmatpush1.msra.mxu0 %v2890
  %2998 = vmatprep.subr.mxu0 0.0
  %2999 = vmatpush1.msra.mxu0 %v2891
  %3000 = vmatprep.subr.mxu0 0.0
  %3001 = vmatpush1.msra.mxu0 %v2892
  %3002 = vmatprep.subr.mxu0 0.0
  %3003 = vmatpush1.msra.mxu0 %v2893
  %3004 = vmatprep.subr.mxu0 0.0
  %3005 = vmatpush1.msra.mxu0 %v2894
  %3006 = vmatprep.subr.mxu0 0.0
  %3007 = vmatpush1.msra.mxu0 %v2895
  %3008 = vmatprep.subr.mxu0 0.0
  %3009 = vmatpush1.msra.mxu0 0.0
  %3010 = vmatprep.subr.mxu0 0.0
  %3011 = vmatpush1.msra.mxu0 0.0
  %3012 = vmatprep.subr.mxu0 0.0
  %3013 = vmatpush1.msra.mxu0 0.0
  %3014 = vmatprep.subr.mxu0 0.0
  %3015 = vmatpush1.msra.mxu0 0.0
  %3016 = vmatprep.subr.mxu0 0.0
  %3017 = vmatpush1.msra.mxu0 0.0
  %3018 = vmatprep.subr.mxu0 0.0
  %3019 = vmatpush1.msra.mxu0 0.0
  %3020 = vmatprep.subr.mxu0 0.0
  %3021 = vmatpush1.msra.mxu0 0.0
  %3022 = vmatprep.subr.mxu0 0.0
  %3023 = vmatpush1.msra.mxu0 0.0
  %3024 = vmatprep.subr.mxu0 0.0
  %3025 = vmatpush1.msra.mxu0 0.0
  %3026 = vmatprep.subr.mxu0 0.0
  %3027 = vmatpush1.msra.mxu0 0.0
  %3028 = vmatprep.subr.mxu0 0.0
  %3029 = vmatpush1.msra.mxu0 0.0
  %3030 = vmatprep.subr.mxu0 0.0
  %3031 = vmatpush1.msra.mxu0 0.0
  %3032 = vmatprep.subr.mxu0 0.0
  %3033 = vmatpush1.msra.mxu0 0.0
  %3034 = vmatprep.subr.mxu0 0.0
  %3035 = vmatpush1.msra.mxu0 0.0
  %3036 = vmatprep.subr.mxu0 0.0
  %3037 = vmatpush1.msra.mxu0 0.0
  %3038 = vmatprep.subr.mxu0 0.0
  %3039 = vmatpush1.msra.mxu0 0.0
  %3040 = vmatprep.subr.mxu0 0.0
  %3041 = vmatpush1.msra.mxu0 0.0
  %3042 = vmatprep.subr.mxu0 0.0
  %3043 = vmatpush1.msra.mxu0 0.0
  %3044 = vmatprep.subr.mxu0 0.0
  %3045 = vmatpush1.msra.mxu0 0.0
  %3046 = vmatprep.subr.mxu0 0.0
  %3047 = vmatpush1.msra.mxu0 0.0
  %3048 = vmatprep.subr.mxu0 0.0
  %3049 = vmatpush1.msra.mxu0 0.0
  %3050 = vmatprep.subr.mxu0 0.0
  %3051 = vmatpush1.msra.mxu0 0.0
  %3052 = vmatprep.subr.mxu0 0.0
  %3053 = vmatpush1.msra.mxu0 0.0
  %3054 = vmatprep.subr.mxu0 0.0
  %3055 = vmatpush1.msra.mxu0 0.0
  %3056 = vmatprep.mubr.f32.mxu0 0.0
  %3057 = vmatmul.mubr.f32.gmra.mrb[0].mxu0 %v2987
  %v3058 = vpop.f32.mrb[0].mxu0
  %v3059 = vadd.f32 0.0, %v3058
  %v3060 = vpop.f32.mrb[0].mxu0
  %3061 = vmatprep.mubr.f32.mxu0 0.0
  %3062 = vmatmul.mubr.f32.gmra.mrb[0].mxu0 %v2990
  %v3063 = vpop.f32.mrb[0].mxu0
  %v3064 = vadd.f32 0.0, %v3063
  %v3065 = vpop.f32.mrb[0].mxu0
  %3066 = vdwg.mxu0
  %3067 = vmatprep.subr.mxu0 0.0
  %3068 = vmatpush1.msra.mxu0 %v2880
  %3069 = vmatprep.subr.mxu0 0.0
  %3070 = vmatpush1.msra.mxu0 %v2881
  %3071 = vmatprep.subr.mxu0 0.0
  %3072 = vmatpush1.msra.mxu0 %v2882
  %3073 = vmatprep.subr.mxu0 0.0
  %3074 = vmatpush1.msra.mxu0 %v2883
  %3075 = vmatprep.subr.mxu0 0.0
  %3076 = vmatpush1.msra.mxu0 %v2884
  %3077 = vmatprep.subr.mxu0 0.0
  %3078 = vmatpush1.msra.mxu0 %v2885
  %3079 = vmatprep.subr.mxu0 0.0
  %3080 = vmatpush1.msra.mxu0 %v2886
  %3081 = vmatprep.subr.mxu0 0.0
  %3082 = vmatpush1.msra.mxu0 %v2887
  %3083 = vmatprep.subr.mxu0 0.0
  %3084 = vmatpush1.msra.mxu0 0.0
  %3085 = vmatprep.subr.mxu0 0.0
  %3086 = vmatpush1.msra.mxu0 0.0
  %3087 = vmatprep.subr.mxu0 0.0
  %3088 = vmatpush1.msra.mxu0 0.0
  %3089 = vmatprep.subr.mxu0 0.0
  %3090 = vmatpush1.msra.mxu0 0.0
  %3091 = vmatprep.subr.mxu0 0.0
  %3092 = vmatpush1.msra.mxu0 0.0
  %3093 = vmatprep.subr.mxu0 0.0
  %3094 = vmatpush1.msra.mxu0 0.0
  %3095 = vmatprep.subr.mxu0 0.0
  %3096 = vmatpush1.msra.mxu0 0.0
  %3097 = vmatprep.subr.mxu0 0.0
  %3098 = vmatpush1.msra.mxu0 0.0
  %3099 = vmatprep.subr.mxu0 0.0
  %3100 = vmatpush1.msra.mxu0 0.0
  %3101 = vmatprep.subr.mxu0 0.0
  %3102 = vmatpush1.msra.mxu0 0.0
  %3103 = vmatprep.subr.mxu0 0.0
  %3104 = vmatpush1.msra.mxu0 0.0
  %3105 = vmatprep.subr.mxu0 0.0
  %3106 = vmatpush1.msra.mxu0 0.0
  %3107 = vmatprep.subr.mxu0 0.0
  %3108 = vmatpush1.msra.mxu0 0.0
  %3109 = vmatprep.subr.mxu0 0.0
  %3110 = vmatpush1.msra.mxu0 0.0
  %3111 = vmatprep.subr.mxu0 0.0
  %3112 = vmatpush1.msra.mxu0 0.0
  %3113 = vmatprep.subr.mxu0 0.0
  %3114 = vmatpush1.msra.mxu0 0.0
  %3115 = vmatprep.subr.mxu0 0.0
  %3116 = vmatpush1.msra.mxu0 0.0
  %3117 = vmatprep.subr.mxu0 0.0
  %3118 = vmatpush1.msra.mxu0 0.0
  %3119 = vmatprep.subr.mxu0 0.0
  %3120 = vmatpush1.msra.mxu0 0.0
  %3121 = vmatprep.subr.mxu0 0.0
  %3122 = vmatpush1.msra.mxu0 0.0
  %3123 = vmatprep.subr.mxu0 0.0
  %3124 = vmatpush1.msra.mxu0 0.0
  %3125 = vmatprep.subr.mxu0 0.0
  %3126 = vmatpush1.msra.mxu0 0.0
  %3127 = vmatprep.subr.mxu0 0.0
  %3128 = vmatpush1.msra.mxu0 0.0
  %3129 = vmatprep.subr.mxu0 0.0
  %3130 = vmatpush1.msra.mxu0 0.0
  %3131 = vmatprep.mubr.f32.mxu0 0.0
  %3132 = vmatmul.mubr.f32.gmra.mrb[0].mxu0 %v2987
  %v3133 = vpop.f32.mrb[0].mxu0
  %v3134 = vadd.f32 0.0, %v3133
  %v3135 = vpop.f32.mrb[0].mxu0
  %3136 = vmatprep.mubr.f32.mxu0 0.0
  %3137 = vmatmul.mubr.f32.gmra.mrb[0].mxu0 %v2990
  %v3138 = vpop.f32.mrb[0].mxu0
  %v3139 = vadd.f32 0.0, %v3138
  %v3140 = vpop.f32.mrb[0].mxu0
  %3141 = vdwg.mxu0
  %3142 = vxpose.xlu0.b32.start [1/16] %v3134, 128
  %3143 = vxpose.xlu0.b32.cont [2/16] %v3139, 128
  %3144 = vxpose.xlu0.b32.cont [3/16] 0.0, 128
  %3145 = vxpose.xlu0.b32.cont [4/16] 0.0, 128
  %3146 = vxpose.xlu0.b32.cont [5/16] 0.0, 128
  %3147 = vxpose.xlu0.b32.cont [6/16] 0.0, 128
  %3148 = vxpose.xlu0.b32.cont [7/16] 0.0, 128
  %3149 = vxpose.xlu0.b32.cont [8/16] 0.0, 128
  %3150 = vxpose.xlu0.b32.cont [9/16] 0.0, 128
  %3151 = vxpose.xlu0.b32.cont [10/16] 0.0, 128
  %3152 = vxpose.xlu0.b32.cont [11/16] 0.0, 128
  %3153 = vxpose.xlu0.b32.cont [12/16] 0.0, 128
  %3154 = vxpose.xlu0.b32.cont [13/16] 0.0, 128
  %3155 = vxpose.xlu0.b32.cont [14/16] 0.0, 128
  %3156 = vxpose.xlu0.b32.cont [15/16] 0.0, 128
  %3157 = vxpose.xlu0.b32.end [16/16] 0.0, 128
  %v3158 = vpop.trf.xlu0
  %v3159 = vpop.trf.xlu0
  %v3160 = vpop.trf.xlu0
  %v3161 = vpop.trf.xlu0
  %v3162 = vpop.trf.xlu0
  %v3163 = vpop.trf.xlu0
  %v3164 = vpop.trf.xlu0
  %v3165 = vpop.trf.xlu0
  %v3166 = vpop.trf.xlu0
  %v3167 = vpop.trf.xlu0
  %v3168 = vpop.trf.xlu0
  %v3169 = vpop.trf.xlu0
  %v3170 = vpop.trf.xlu0
  %v3171 = vpop.trf.xlu0
  %v3172 = vpop.trf.xlu0
  %v3173 = vpop.trf.xlu0
  %3176 = vrot.lane.b32.xlu0 %v3134, 127
  %v3177 = vpop.permute.xlu0 %3176
  %3178 = vrot.lane.b32.xlu0 %v3139, 127
  %v3179 = vpop.permute.xlu0 %3178
  %3182 = vxpose.xlu0.b32.start [1/16] %v3177, 128
  %3183 = vxpose.xlu0.b32.cont [2/16] %v3179, 128
  %3184 = vxpose.xlu0.b32.cont [3/16] 0.0, 128
  %3185 = vxpose.xlu0.b32.cont [4/16] 0.0, 128
  %3186 = vxpose.xlu0.b32.cont [5/16] 0.0, 128
  %3187 = vxpose.xlu0.b32.cont [6/16] 0.0, 128
  %3188 = vxpose.xlu0.b32.cont [7/16] 0.0, 128
  %3189 = vxpose.xlu0.b32.cont [8/16] 0.0, 128
  %3190 = vxpose.xlu0.b32.cont [9/16] 0.0, 128
  %3191 = vxpose.xlu0.b32.cont [10/16] 0.0, 128
  %3192 = vxpose.xlu0.b32.cont [11/16] 0.0, 128
  %3193 = vxpose.xlu0.b32.cont [12/16] 0.0, 128
  %3194 = vxpose.xlu0.b32.cont [13/16] 0.0, 128
  %3195 = vxpose.xlu0.b32.cont [14/16] 0.0, 128
  %3196 = vxpose.xlu0.b32.cont [15/16] 0.0, 128
  %3197 = vxpose.xlu0.b32.end [16/16] 0.0, 128
  %v3198 = vpop.trf.xlu0
  %v3199 = vpop.trf.xlu0
  %v3200 = vpop.trf.xlu0
  %v3201 = vpop.trf.xlu0
  %v3202 = vpop.trf.xlu0
  %v3203 = vpop.trf.xlu0
  %v3204 = vpop.trf.xlu0
  %v3205 = vpop.trf.xlu0
  %v3206 = vpop.trf.xlu0
  %v3207 = vpop.trf.xlu0
  %v3208 = vpop.trf.xlu0
  %v3209 = vpop.trf.xlu0
  %v3210 = vpop.trf.xlu0
  %v3211 = vpop.trf.xlu0
  %v3212 = vpop.trf.xlu0
  %v3213 = vpop.trf.xlu0
  %3214 = vrot.lane.b32.xlu0 %v3134, 126
  %v3215 = vpop.permute.xlu0 %3214
  %3216 = vrot.lane.b32.xlu0 %v3139, 126
  %v3217 = vpop.permute.xlu0 %3216
  %3220 = vxpose.xlu0.b32.start [1/16] %v3215, 128
  %3221 = vxpose.xlu0.b32.cont [2/16] %v3217, 128
  %3222 = vxpose.xlu0.b32.cont [3/16] 0.0, 128
  %3223 = vxpose.xlu0.b32.cont [4/16] 0.0, 128
  %3224 = vxpose.xlu0.b32.cont [5/16] 0.0, 128
  %3225 = vxpose.xlu0.b32.cont [6/16] 0.0, 128
  %3226 = vxpose.xlu0.b32.cont [7/16] 0.0, 128
  %3227 = vxpose.xlu0.b32.cont [8/16] 0.0, 128
  %3228 = vxpose.xlu0.b32.cont [9/16] 0.0, 128
  %3229 = vxpose.xlu0.b32.cont [10/16] 0.0, 128
  %3230 = vxpose.xlu0.b32.cont [11/16] 0.0, 128
  %3231 = vxpose.xlu0.b32.cont [12/16] 0.0, 128
  %3232 = vxpose.xlu0.b32.cont [13/16] 0.0, 128
  %3233 = vxpose.xlu0.b32.cont [14/16] 0.0, 128
  %3234 = vxpose.xlu0.b32.cont [15/16] 0.0, 128
  %3235 = vxpose.xlu0.b32.end [16/16] 0.0, 128
  %v3236 = vpop.trf.xlu0
  %v3237 = vpop.trf.xlu0
  %v3238 = vpop.trf.xlu0
  %v3239 = vpop.trf.xlu0
  %v3240 = vpop.trf.xlu0
  %v3241 = vpop.trf.xlu0
  %v3242 = vpop.trf.xlu0
  %v3243 = vpop.trf.xlu0
  %v3244 = vpop.trf.xlu0
  %v3245 = vpop.trf.xlu0
  %v3246 = vpop.trf.xlu0
  %v3247 = vpop.trf.xlu0
  %v3248 = vpop.trf.xlu0
  %v3249 = vpop.trf.xlu0
  %v3250 = vpop.trf.xlu0
  %v3251 = vpop.trf.xlu0
  %3252 = vrot.lane.b32.xlu0 %v3134, 125
  %v3253 = vpop.permute.xlu0 %3252
  %3254 = vrot.lane.b32.xlu0 %v3139, 125
  %v3255 = vpop.permute.xlu0 %3254
  %3258 = vxpose.xlu0.b32.start [1/16] %v3253, 128
  %3259 = vxpose.xlu0.b32.cont [2/16] %v3255, 128
  %3260 = vxpose.xlu0.b32.cont [3/16] 0.0, 128
  %3261 = vxpose.xlu0.b32.cont [4/16] 0.0, 128
  %3262 = vxpose.xlu0.b32.cont [5/16] 0.0, 128
  %3263 = vxpose.xlu0.b32.cont [6/16] 0.0, 128
  %3264 = vxpose.xlu0.b32.cont [7/16] 0.0, 128
  %3265 = vxpose.xlu0.b32.cont [8/16] 0.0, 128
  %3266 = vxpose.xlu0.b32.cont [9/16] 0.0, 128
  %3267 = vxpose.xlu0.b32.cont [10/16] 0.0, 128
  %3268 = vxpose.xlu0.b32.cont [11/16] 0.0, 128
  %3269 = vxpose.xlu0.b32.cont [12/16] 0.0, 128
  %3270 = vxpose.xlu0.b32.cont [13/16] 0.0, 128
  %3271 = vxpose.xlu0.b32.cont [14/16] 0.0, 128
  %3272 = vxpose.xlu0.b32.cont [15/16] 0.0, 128
  %3273 = vxpose.xlu0.b32.end [16/16] 0.0, 128
  %v3274 = vpop.trf.xlu0
  %v3275 = vpop.trf.xlu0
  %v3276 = vpop.trf.xlu0
  %v3277 = vpop.trf.xlu0
  %v3278 = vpop.trf.xlu0
  %v3279 = vpop.trf.xlu0
  %v3280 = vpop.trf.xlu0
  %v3281 = vpop.trf.xlu0
  %v3282 = vpop.trf.xlu0
  %v3283 = vpop.trf.xlu0
  %v3284 = vpop.trf.xlu0
  %v3285 = vpop.trf.xlu0
  %v3286 = vpop.trf.xlu0
  %v3287 = vpop.trf.xlu0
  %v3288 = vpop.trf.xlu0
  %v3289 = vpop.trf.xlu0
  %3290 = vrot.lane.b32.xlu0 %v3134, 124
  %v3291 = vpop.permute.xlu0 %3290
  %3292 = vrot.lane.b32.xlu0 %v3139, 124
  %v3293 = vpop.permute.xlu0 %3292
  %3296 = vxpose.xlu0.b32.start [1/16] %v3291, 128
  %3297 = vxpose.xlu0.b32.cont [2/16] %v3293, 128
  %3298 = vxpose.xlu0.b32.cont [3/16] 0.0, 128
  %3299 = vxpose.xlu0.b32.cont [4/16] 0.0, 128
  %3300 = vxpose.xlu0.b32.cont [5/16] 0.0, 128
  %3301 = vxpose.xlu0.b32.cont [6/16] 0.0, 128
  %3302 = vxpose.xlu0.b32.cont [7/16] 0.0, 128
  %3303 = vxpose.xlu0.b32.cont [8/16] 0.0, 128
  %3304 = vxpose.xlu0.b32.cont [9/16] 0.0, 128
  %3305 = vxpose.xlu0.b32.cont [10/16] 0.0, 128
  %3306 = vxpose.xlu0.b32.cont [11/16] 0.0, 128
  %3307 = vxpose.xlu0.b32.cont [12/16] 0.0, 128
  %3308 = vxpose.xlu0.b32.cont [13/16] 0.0, 128
  %3309 = vxpose.xlu0.b32.cont [14/16] 0.0, 128
  %3310 = vxpose.xlu0.b32.cont [15/16] 0.0, 128
  %3311 = vxpose.xlu0.b32.end [16/16] 0.0, 128
  %v3312 = vpop.trf.xlu0
  %v3313 = vpop.trf.xlu0
  %v3314 = vpop.trf.xlu0
  %v3315 = vpop.trf.xlu0
  %v3316 = vpop.trf.xlu0
  %v3317 = vpop.trf.xlu0
  %v3318 = vpop.trf.xlu0
  %v3319 = vpop.trf.xlu0
  %v3320 = vpop.trf.xlu0
  %v3321 = vpop.trf.xlu0
  %v3322 = vpop.trf.xlu0
  %v3323 = vpop.trf.xlu0
  %v3324 = vpop.trf.xlu0
  %v3325 = vpop.trf.xlu0
  %v3326 = vpop.trf.xlu0
  %v3327 = vpop.trf.xlu0
  %3328 = vrot.lane.b32.xlu0 %v3134, 123
  %v3329 = vpop.permute.xlu0 %3328
  %3330 = vrot.lane.b32.xlu0 %v3139, 123
  %v3331 = vpop.permute.xlu0 %3330
  %3334 = vxpose.xlu0.b32.start [1/16] %v3329, 128
  %3335 = vxpose.xlu0.b32.cont [2/16] %v3331, 128
  %3336 = vxpose.xlu0.b32.cont [3/16] 0.0, 128
  %3337 = vxpose.xlu0.b32.cont [4/16] 0.0, 128
  %3338 = vxpose.xlu0.b32.cont [5/16] 0.0, 128
  %3339 = vxpose.xlu0.b32.cont [6/16] 0.0, 128
  %3340 = vxpose.xlu0.b32.cont [7/16] 0.0, 128
  %3341 = vxpose.xlu0.b32.cont [8/16] 0.0, 128
  %3342 = vxpose.xlu0.b32.cont [9/16] 0.0, 128
  %3343 = vxpose.xlu0.b32.cont [10/16] 0.0, 128
  %3344 = vxpose.xlu0.b32.cont [11/16] 0.0, 128
  %3345 = vxpose.xlu0.b32.cont [12/16] 0.0, 128
  %3346 = vxpose.xlu0.b32.cont [13/16] 0.0, 128
  %3347 = vxpose.xlu0.b32.cont [14/16] 0.0, 128
  %3348 = vxpose.xlu0.b32.cont [15/16] 0.0, 128
  %3349 = vxpose.xlu0.b32.end [16/16] 0.0, 128
  %v3350 = vpop.trf.xlu0
  %v3351 = vpop.trf.xlu0
  %v3352 = vpop.trf.xlu0
  %v3353 = vpop.trf.xlu0
  %v3354 = vpop.trf.xlu0
  %v3355 = vpop.trf.xlu0
  %v3356 = vpop.trf.xlu0
  %v3357 = vpop.trf.xlu0
  %v3358 = vpop.trf.xlu0
  %v3359 = vpop.trf.xlu0
  %v3360 = vpop.trf.xlu0
  %v3361 = vpop.trf.xlu0
  %v3362 = vpop.trf.xlu0
  %v3363 = vpop.trf.xlu0
  %v3364 = vpop.trf.xlu0
  %v3365 = vpop.trf.xlu0
  %3366 = vrot.lane.b32.xlu0 %v3134, 122
  %v3367 = vpop.permute.xlu0 %3366
  %3368 = vrot.lane.b32.xlu0 %v3139, 122
  %v3369 = vpop.permute.xlu0 %3368
  %3372 = vxpose.xlu0.b32.start [1/16] %v3367, 128
  %3373 = vxpose.xlu0.b32.cont [2/16] %v3369, 128
  %3374 = vxpose.xlu0.b32.cont [3/16] 0.0, 128
  %3375 = vxpose.xlu0.b32.cont [4/16] 0.0, 128
  %3376 = vxpose.xlu0.b32.cont [5/16] 0.0, 128
  %3377 = vxpose.xlu0.b32.cont [6/16] 0.0, 128
  %3378 = vxpose.xlu0.b32.cont [7/16] 0.0, 128
  %3379 = vxpose.xlu0.b32.cont [8/16] 0.0, 128
  %3380 = vxpose.xlu0.b32.cont [9/16] 0.0, 128
  %3381 = vxpose.xlu0.b32.cont [10/16] 0.0, 128
  %3382 = vxpose.xlu0.b32.cont [11/16] 0.0, 128
  %3383 = vxpose.xlu0.b32.cont [12/16] 0.0, 128
  %3384 = vxpose.xlu0.b32.cont [13/16] 0.0, 128
  %3385 = vxpose.xlu0.b32.cont [14/16] 0.0, 128
  %3386 = vxpose.xlu0.b32.cont [15/16] 0.0, 128
  %3387 = vxpose.xlu0.b32.end [16/16] 0.0, 128
  %v3388 = vpop.trf.xlu0
  %v3389 = vpop.trf.xlu0
  %v3390 = vpop.trf.xlu0
  %v3391 = vpop.trf.xlu0
  %v3392 = vpop.trf.xlu0
  %v3393 = vpop.trf.xlu0
  %v3394 = vpop.trf.xlu0
  %v3395 = vpop.trf.xlu0
  %v3396 = vpop.trf.xlu0
  %v3397 = vpop.trf.xlu0
  %v3398 = vpop.trf.xlu0
  %v3399 = vpop.trf.xlu0
  %v3400 = vpop.trf.xlu0
  %v3401 = vpop.trf.xlu0
  %v3402 = vpop.trf.xlu0
  %v3403 = vpop.trf.xlu0
  %3404 = vrot.lane.b32.xlu0 %v3134, 121
  %v3405 = vpop.permute.xlu0 %3404
  %3406 = vrot.lane.b32.xlu0 %v3139, 121
  %v3407 = vpop.permute.xlu0 %3406
  %3410 = vxpose.xlu0.b32.start [1/16] %v3405, 128
  %3411 = vxpose.xlu0.b32.cont [2/16] %v3407, 128
  %3412 = vxpose.xlu0.b32.cont [3/16] 0.0, 128
  %3413 = vxpose.xlu0.b32.cont [4/16] 0.0, 128
  %3414 = vxpose.xlu0.b32.cont [5/16] 0.0, 128
  %3415 = vxpose.xlu0.b32.cont [6/16] 0.0, 128
  %3416 = vxpose.xlu0.b32.cont [7/16] 0.0, 128
  %3417 = vxpose.xlu0.b32.cont [8/16] 0.0, 128
  %3418 = vxpose.xlu0.b32.cont [9/16] 0.0, 128
  %3419 = vxpose.xlu0.b32.cont [10/16] 0.0, 128
  %3420 = vxpose.xlu0.b32.cont [11/16] 0.0, 128
  %3421 = vxpose.xlu0.b32.cont [12/16] 0.0, 128
  %3422 = vxpose.xlu0.b32.cont [13/16] 0.0, 128
  %3423 = vxpose.xlu0.b32.cont [14/16] 0.0, 128
  %3424 = vxpose.xlu0.b32.cont [15/16] 0.0, 128
  %3425 = vxpose.xlu0.b32.end [16/16] 0.0, 128
  %v3426 = vpop.trf.xlu0
  %v3427 = vpop.trf.xlu0
  %v3428 = vpop.trf.xlu0
  %v3429 = vpop.trf.xlu0
  %v3430 = vpop.trf.xlu0
  %v3431 = vpop.trf.xlu0
  %v3432 = vpop.trf.xlu0
  %v3433 = vpop.trf.xlu0
  %v3434 = vpop.trf.xlu0
  %v3435 = vpop.trf.xlu0
  %v3436 = vpop.trf.xlu0
  %v3437 = vpop.trf.xlu0
  %v3438 = vpop.trf.xlu0
  %v3439 = vpop.trf.xlu0
  %v3440 = vpop.trf.xlu0
  %v3441 = vpop.trf.xlu0
  %3443 = vrot.lane.b32.xlu0 %v3198, 16
  %v3444 = vpop.permute.xlu0 %3443
  %3447 = vrot.lane.b32.xlu0 %v3236, 32
  %v3448 = vpop.permute.xlu0 %3447
  %3451 = vrot.lane.b32.xlu0 %v3274, 48
  %v3452 = vpop.permute.xlu0 %3451
  %3455 = vrot.lane.b32.xlu0 %v3312, 64
  %v3456 = vpop.permute.xlu0 %3455
  %3459 = vrot.lane.b32.xlu0 %v3350, 80
  %v3460 = vpop.permute.xlu0 %3459
  %3463 = vrot.lane.b32.xlu0 %v3388, 96
  %v3464 = vpop.permute.xlu0 %3463
  %3467 = vrot.lane.b32.xlu0 %v3426, 112
  %v3468 = vpop.permute.xlu0 %3467
  %v3470 = vsel %vm117, %v3158, %v3444
  %v3471 = vsel %vm990, %v3470, %v3448
  %v3472 = vsel %vm2095, %v3471, %v3452
  %v3473 = vsel %vm2316, %v3472, %v3456
  %vm3474 = vcmask 654336
  %v3475 = vsel %vm3474, %v3473, %v3460
  %vm3476 = vcmask 785408
  %v3477 = vsel %vm3476, %v3475, %v3464
  %vm3478 = vcmask 916480
  %v3479 = vsel %vm3478, %v3477, %v3468
  %v3480 = vlaneseq
  %v3481 = vshrl.u32 %v3480, 7
  %v3482 = vsub.s32 0, %v3481
  %v3483 = vrot.slane %v3479, %v3482
  %v3485 = vsel %vm470, %v3059, 0
  %v3488 = vsel %vm470, %v3064, 0
  %3490 = vmatprep.subr.mxu0 0.0
  %3491 = vmatpush1.msra.mxu0 %v99
  %3492 = vmatprep.subr.mxu0 0.0
  %3493 = vmatpush1.msra.mxu0 0.0
  %3494 = vmatprep.subr.mxu0 0.0
  %3495 = vmatpush1.msra.mxu0 0.0
  %3496 = vmatprep.subr.mxu0 0.0
  %3497 = vmatpush1.msra.mxu0 0.0
  %3498 = vmatprep.subr.mxu0 0.0
  %3499 = vmatpush1.msra.mxu0 0.0
  %3500 = vmatprep.subr.mxu0 0.0
  %3501 = vmatpush1.msra.mxu0 0.0
  %3502 = vmatprep.subr.mxu0 0.0
  %3503 = vmatpush1.msra.mxu0 0.0
  %3504 = vmatprep.subr.mxu0 0.0
  %3505 = vmatpush1.msra.mxu0 0.0
  %3506 = vmatprep.subr.mxu0 0.0
  %3507 = vmatpush1.msra.mxu0 0.0
  %3508 = vmatprep.subr.mxu0 0.0
  %3509 = vmatpush1.msra.mxu0 0.0
  %3510 = vmatprep.subr.mxu0 0.0
  %3511 = vmatpush1.msra.mxu0 0.0
  %3512 = vmatprep.subr.mxu0 0.0
  %3513 = vmatpush1.msra.mxu0 0.0
  %3514 = vmatprep.subr.mxu0 0.0
  %3515 = vmatpush1.msra.mxu0 0.0
  %3516 = vmatprep.subr.mxu0 0.0
  %3517 = vmatpush1.msra.mxu0 0.0
  %3518 = vmatprep.subr.mxu0 0.0
  %3519 = vmatpush1.msra.mxu0 0.0
  %3520 = vmatprep.subr.mxu0 0.0
  %3521 = vmatpush1.msra.mxu0 0.0
  %3522 = vmatprep.subr.mxu0 0.0
  %3523 = vmatpush1.msra.mxu0 0.0
  %3524 = vmatprep.subr.mxu0 0.0
  %3525 = vmatpush1.msra.mxu0 0.0
  %3526 = vmatprep.subr.mxu0 0.0
  %3527 = vmatpush1.msra.mxu0 0.0
  %3528 = vmatprep.subr.mxu0 0.0
  %3529 = vmatpush1.msra.mxu0 0.0
  %3530 = vmatprep.subr.mxu0 0.0
  %3531 = vmatpush1.msra.mxu0 0.0
  %3532 = vmatprep.subr.mxu0 0.0
  %3533 = vmatpush1.msra.mxu0 0.0
  %3534 = vmatprep.subr.mxu0 0.0
  %3535 = vmatpush1.msra.mxu0 0.0
  %3536 = vmatprep.subr.mxu0 0.0
  %3537 = vmatpush1.msra.mxu0 0.0
  %3538 = vmatprep.subr.mxu0 0.0
  %3539 = vmatpush1.msra.mxu0 0.0
  %3540 = vmatprep.subr.mxu0 0.0
  %3541 = vmatpush1.msra.mxu0 0.0
  %3542 = vmatprep.subr.mxu0 0.0
  %3543 = vmatpush1.msra.mxu0 0.0
  %3544 = vmatprep.subr.mxu0 0.0
  %3545 = vmatpush1.msra.mxu0 0.0
  %3546 = vmatprep.subr.mxu0 0.0
  %3547 = vmatpush1.msra.mxu0 0.0
  %3548 = vmatprep.subr.mxu0 0.0
  %3549 = vmatpush1.msra.mxu0 0.0
  %3550 = vmatprep.subr.mxu0 0.0
  %3551 = vmatpush1.msra.mxu0 0.0
  %3552 = vmatprep.subr.mxu0 0.0
  %3553 = vmatpush1.msra.mxu0 0.0
  %3554 = vmatprep.mubr.f32.mxu0 0.0
  %3555 = vmatmul.mubr.f32.gmra.mrb[0].mxu0 %v3485
  %v3556 = vpop.f32.mrb[0].mxu0
  %v3557 = vadd.f32 %v3483, %v3556
  %v3558 = vpop.f32.mrb[0].mxu0
  %3559 = vmatprep.mubr.f32.mxu0 0.0
  %3560 = vmatmul.mubr.f32.gmra.mrb[0].mxu0 %v3488
  %v3561 = vpop.f32.mrb[0].mxu0
  %v3562 = vadd.f32 %v3483, %v3561
  %v3563 = vpop.f32.mrb[0].mxu0
  %3564 = vdwg.mxu0
  %vm3565 = vcmp.ge.f32.partialorder %v3557, 0.0
  %vm3566 = vcmp.ge.f32.partialorder %v3562, 0.0
  %v3567 = vmul.f32 %v3557, 0.2
  %v3568 = vmul.f32 %v3562, 0.2
  %v3569 = vsel %vm3565, %v3557, %v3567
  %v3570 = vsel %vm3566, %v3562, %v3568
  %v3571 = vsel %vm881, %v3569, -1e+30
  %v3572 = vsel %vm882, %v3570, -1e+30
  %v3573 = vsel %vm117, %v3571, -inf
  %3574 = vmax.xlane.f32.xlu0 %v3573
  %v3575 = vpop.xlane.xlu0 %3574
  %v3576 = vsel %vm117, %v3572, -inf
  %3577 = vmax.xlane.f32.xlu0 %v3576
  %v3578 = vpop.xlane.xlu0 %3577
  %v3579 = vsel %vm891, %v3571, -inf
  %3580 = vmax.xlane.f32.xlu0 %v3579
  %v3581 = vpop.xlane.xlu0 %3580
  %v3582 = vsel %vm891, %v3572, -inf
  %3583 = vmax.xlane.f32.xlu0 %v3582
  %v3584 = vpop.xlane.xlu0 %3583
  %v3585 = vsel %vm2206, %v3571, -inf
  %3586 = vmax.xlane.f32.xlu0 %v3585
  %v3587 = vpop.xlane.xlu0 %3586
  %v3588 = vsel %vm2206, %v3572, -inf
  %3589 = vmax.xlane.f32.xlu0 %v3588
  %v3590 = vpop.xlane.xlu0 %3589
  %v3591 = vsel %vm2213, %v3571, -inf
  %3592 = vmax.xlane.f32.xlu0 %v3591
  %v3593 = vpop.xlane.xlu0 %3592
  %v3594 = vsel %vm2213, %v3572, -inf
  %3595 = vmax.xlane.f32.xlu0 %v3594
  %v3596 = vpop.xlane.xlu0 %3595
  %vm3597 = vcmask 654848
  %v3598 = vsel %vm3597, %v3571, -inf
  %3599 = vmax.xlane.f32.xlu0 %v3598
  %v3600 = vpop.xlane.xlu0 %3599
  %v3601 = vsel %vm3597, %v3572, -inf
  %3602 = vmax.xlane.f32.xlu0 %v3601
  %v3603 = vpop.xlane.xlu0 %3602
  %vm3604 = vcmask 786048
  %v3605 = vsel %vm3604, %v3571, -inf
  %3606 = vmax.xlane.f32.xlu0 %v3605
  %v3607 = vpop.xlane.xlu0 %3606
  %v3608 = vsel %vm3604, %v3572, -inf
  %3609 = vmax.xlane.f32.xlu0 %v3608
  %v3610 = vpop.xlane.xlu0 %3609
  %vm3611 = vcmask 917248
  %v3612 = vsel %vm3611, %v3571, -inf
  %3613 = vmax.xlane.f32.xlu0 %v3612
  %v3614 = vpop.xlane.xlu0 %3613
  %v3615 = vsel %vm3611, %v3572, -inf
  %3616 = vmax.xlane.f32.xlu0 %v3615
  %v3617 = vpop.xlane.xlu0 %3616
  %vm3618 = vcmask 1048448
  %v3619 = vsel %vm3618, %v3571, -inf
  %3620 = vmax.xlane.f32.xlu0 %v3619
  %v3621 = vpop.xlane.xlu0 %3620
  %v3622 = vsel %vm3618, %v3572, -inf
  %3623 = vmax.xlane.f32.xlu0 %v3622
  %v3624 = vpop.xlane.xlu0 %3623
  %v3625 = vsel %vm898, %v3575, %v3581
  %v3626 = vsel %vm898, %v3578, %v3584
  %v3627 = vsel %vm789, %v3625, %v3587
  %v3628 = vsel %vm789, %v3626, %v3590
  %v3629 = vsel %vm2224, %v3627, %v3593
  %v3630 = vsel %vm2224, %v3628, %v3596
  %v3631 = vsel %vm2101, %v3629, %v3600
  %v3632 = vsel %vm2101, %v3630, %v3603
  %vm3633 = vcmask 39936
  %v3634 = vsel %vm3633, %v3631, %v3607
  %v3635 = vsel %vm3633, %v3632, %v3610
  %vm3636 = vcmask 48128
  %v3637 = vsel %vm3636, %v3634, %v3614
  %v3638 = vsel %vm3636, %v3635, %v3617
  %vm3639 = vcmask 56320
  %v3640 = vsel %vm3639, %v3637, %v3621
  %v3641 = vsel %vm3639, %v3638, %v3624
  %v3643 = vsel %vm470, %v3640, 0
  %v3646 = vsel %vm470, %v3641, 0
  %3648 = vmatprep.subr.mxu0 0.0
  %3649 = vmatpush1.msra.mxu0 %v99
  %3650 = vmatprep.subr.mxu0 0.0
  %3651 = vmatpush1.msra.mxu0 0.0
  %3652 = vmatprep.subr.mxu0 0.0
  %3653 = vmatpush1.msra.mxu0 0.0
  %3654 = vmatprep.subr.mxu0 0.0
  %3655 = vmatpush1.msra.mxu0 0.0
  %3656 = vmatprep.subr.mxu0 0.0
  %3657 = vmatpush1.msra.mxu0 0.0
  %3658 = vmatprep.subr.mxu0 0.0
  %3659 = vmatpush1.msra.mxu0 0.0
  %3660 = vmatprep.subr.mxu0 0.0
  %3661 = vmatpush1.msra.mxu0 0.0
  %3662 = vmatprep.subr.mxu0 0.0
  %3663 = vmatpush1.msra.mxu0 0.0
  %3664 = vmatprep.subr.mxu0 0.0
  %3665 = vmatpush1.msra.mxu0 0.0
  %3666 = vmatprep.subr.mxu0 0.0
  %3667 = vmatpush1.msra.mxu0 0.0
  %3668 = vmatprep.subr.mxu0 0.0
  %3669 = vmatpush1.msra.mxu0 0.0
  %3670 = vmatprep.subr.mxu0 0.0
  %3671 = vmatpush1.msra.mxu0 0.0
  %3672 = vmatprep.subr.mxu0 0.0
  %3673 = vmatpush1.msra.mxu0 0.0
  %3674 = vmatprep.subr.mxu0 0.0
  %3675 = vmatpush1.msra.mxu0 0.0
  %3676 = vmatprep.subr.mxu0 0.0
  %3677 = vmatpush1.msra.mxu0 0.0
  %3678 = vmatprep.subr.mxu0 0.0
  %3679 = vmatpush1.msra.mxu0 0.0
  %3680 = vmatprep.subr.mxu0 0.0
  %3681 = vmatpush1.msra.mxu0 0.0
  %3682 = vmatprep.subr.mxu0 0.0
  %3683 = vmatpush1.msra.mxu0 0.0
  %3684 = vmatprep.subr.mxu0 0.0
  %3685 = vmatpush1.msra.mxu0 0.0
  %3686 = vmatprep.subr.mxu0 0.0
  %3687 = vmatpush1.msra.mxu0 0.0
  %3688 = vmatprep.subr.mxu0 0.0
  %3689 = vmatpush1.msra.mxu0 0.0
  %3690 = vmatprep.subr.mxu0 0.0
  %3691 = vmatpush1.msra.mxu0 0.0
  %3692 = vmatprep.subr.mxu0 0.0
  %3693 = vmatpush1.msra.mxu0 0.0
  %3694 = vmatprep.subr.mxu0 0.0
  %3695 = vmatpush1.msra.mxu0 0.0
  %3696 = vmatprep.subr.mxu0 0.0
  %3697 = vmatpush1.msra.mxu0 0.0
  %3698 = vmatprep.subr.mxu0 0.0
  %3699 = vmatpush1.msra.mxu0 0.0
  %3700 = vmatprep.subr.mxu0 0.0
  %3701 = vmatpush1.msra.mxu0 0.0
  %3702 = vmatprep.subr.mxu0 0.0
  %3703 = vmatpush1.msra.mxu0 0.0
  %3704 = vmatprep.subr.mxu0 0.0
  %3705 = vmatpush1.msra.mxu0 0.0
  %3706 = vmatprep.subr.mxu0 0.0
  %3707 = vmatpush1.msra.mxu0 0.0
  %3708 = vmatprep.subr.mxu0 0.0
  %3709 = vmatpush1.msra.mxu0 0.0
  %3710 = vmatprep.subr.mxu0 0.0
  %3711 = vmatpush1.msra.mxu0 0.0
  %3712 = vmatprep.mubr.f32.mxu0 0.0
  %3713 = vmatmul.mubr.f32.gmra.mrb[0].mxu0 %v3643
  %v3714 = vpop.f32.mrb[0].mxu0
  %v3715 = vadd.f32 0.0, %v3714
  %v3716 = vpop.f32.mrb[0].mxu0
  %3717 = vmatprep.mubr.f32.mxu0 0.0
  %3718 = vmatmul.mubr.f32.gmra.mrb[0].mxu0 %v3646
  %v3719 = vpop.f32.mrb[0].mxu0
  %v3720 = vadd.f32 0.0, %v3719
  %v3721 = vpop.f32.mrb[0].mxu0
  %3722 = vdwg.mxu0
  %v3723 = vsub.f32 %v3571, %v3715
  %v3724 = vsub.f32 %v3572, %v3720
  %v3725 = vmul.f32 %v3723, 1.442695
  %v3726 = vpow.pop %v3725
  %v3727 = vmul.f32 %v3724, 1.442695
  %v3728 = vpow.pop %v3727
  %v3729 = vsel %vm881, %v3726, 0.0
  %v3730 = vsel %vm882, %v3728, 0.0
  %3731 = vmatprep.subr.mxu0 0.0
  %3732 = vmatpush1.msra.mxu0 %v100
  %3733 = vmatprep.subr.mxu0 0.0
  %3734 = vmatpush1.msra.mxu0 %v101
  %3735 = vmatprep.subr.mxu0 0.0
  %3736 = vmatpush1.msra.mxu0 %v102
  %3737 = vmatprep.subr.mxu0 0.0
  %3738 = vmatpush1.msra.mxu0 %v103
  %3739 = vmatprep.subr.mxu0 0.0
  %3740 = vmatpush1.msra.mxu0 %v104
  %3741 = vmatprep.subr.mxu0 0.0
  %3742 = vmatpush1.msra.mxu0 %v105
  %3743 = vmatprep.subr.mxu0 0.0
  %3744 = vmatpush1.msra.mxu0 %v106
  %3745 = vmatprep.subr.mxu0 0.0
  %3746 = vmatpush1.msra.mxu0 %v107
  %3747 = vmatprep.subr.mxu0 0.0
  %3748 = vmatpush1.msra.mxu0 %v108
  %3749 = vmatprep.subr.mxu0 0.0
  %3750 = vmatpush1.msra.mxu0 %v109
  %3751 = vmatprep.subr.mxu0 0.0
  %3752 = vmatpush1.msra.mxu0 %v110
  %3753 = vmatprep.subr.mxu0 0.0
  %3754 = vmatpush1.msra.mxu0 %v111
  %3755 = vmatprep.subr.mxu0 0.0
  %3756 = vmatpush1.msra.mxu0 %v112
  %3757 = vmatprep.subr.mxu0 0.0
  %3758 = vmatpush1.msra.mxu0 %v113
  %3759 = vmatprep.subr.mxu0 0.0
  %3760 = vmatpush1.msra.mxu0 %v114
  %3761 = vmatprep.subr.mxu0 0.0
  %3762 = vmatpush1.msra.mxu0 %v115
  %3763 = vmatprep.subr.mxu0 0.0
  %3764 = vmatpush1.msra.mxu0 0.0
  %3765 = vmatprep.subr.mxu0 0.0
  %3766 = vmatpush1.msra.mxu0 0.0
  %3767 = vmatprep.subr.mxu0 0.0
  %3768 = vmatpush1.msra.mxu0 0.0
  %3769 = vmatprep.subr.mxu0 0.0
  %3770 = vmatpush1.msra.mxu0 0.0
  %3771 = vmatprep.subr.mxu0 0.0
  %3772 = vmatpush1.msra.mxu0 0.0
  %3773 = vmatprep.subr.mxu0 0.0
  %3774 = vmatpush1.msra.mxu0 0.0
  %3775 = vmatprep.subr.mxu0 0.0
  %3776 = vmatpush1.msra.mxu0 0.0
  %3777 = vmatprep.subr.mxu0 0.0
  %3778 = vmatpush1.msra.mxu0 0.0
  %3779 = vmatprep.subr.mxu0 0.0
  %3780 = vmatpush1.msra.mxu0 0.0
  %3781 = vmatprep.subr.mxu0 0.0
  %3782 = vmatpush1.msra.mxu0 0.0
  %3783 = vmatprep.subr.mxu0 0.0
  %3784 = vmatpush1.msra.mxu0 0.0
  %3785 = vmatprep.subr.mxu0 0.0
  %3786 = vmatpush1.msra.mxu0 0.0
  %3787 = vmatprep.subr.mxu0 0.0
  %3788 = vmatpush1.msra.mxu0 0.0
  %3789 = vmatprep.subr.mxu0 0.0
  %3790 = vmatpush1.msra.mxu0 0.0
  %3791 = vmatprep.subr.mxu0 0.0
  %3792 = vmatpush1.msra.mxu0 0.0
  %3793 = vmatprep.subr.mxu0 0.0
  %3794 = vmatpush1.msra.mxu0 0.0
  %3795 = vmatprep.mubr.f32.mxu0 0.0
  %3796 = vmatmul.mubr.f32.gmra.mrb[0].mxu0 %v3729
  %v3797 = vpop.f32.mrb[0].mxu0
  %v3798 = vadd.f32 0.0, %v3797
  %v3799 = vpop.f32.mrb[0].mxu0
  %3800 = vmatprep.mubr.f32.mxu0 0.0
  %3801 = vmatmul.mubr.f32.gmra.mrb[0].mxu0 %v3730
  %v3802 = vpop.f32.mrb[0].mxu0
  %v3803 = vadd.f32 0.0, %v3802
  %v3804 = vpop.f32.mrb[0].mxu0
  %3805 = vdwg.mxu0
  %v3806 = vrcp.pop %v3798
  %v3807 = vrcp.pop %v3803
  %v3809 = vsel %vm470, %v3806, 0
  %v3812 = vsel %vm470, %v3807, 0
  %3814 = vmatprep.subr.mxu0 0.0
  %3815 = vmatpush1.msra.mxu0 %v99
  %3816 = vmatprep.subr.mxu0 0.0
  %3817 = vmatpush1.msra.mxu0 0.0
  %3818 = vmatprep.subr.mxu0 0.0
  %3819 = vmatpush1.msra.mxu0 0.0
  %3820 = vmatprep.subr.mxu0 0.0
  %3821 = vmatpush1.msra.mxu0 0.0
  %3822 = vmatprep.subr.mxu0 0.0
  %3823 = vmatpush1.msra.mxu0 0.0
  %3824 = vmatprep.subr.mxu0 0.0
  %3825 = vmatpush1.msra.mxu0 0.0
  %3826 = vmatprep.subr.mxu0 0.0
  %3827 = vmatpush1.msra.mxu0 0.0
  %3828 = vmatprep.subr.mxu0 0.0
  %3829 = vmatpush1.msra.mxu0 0.0
  %3830 = vmatprep.subr.mxu0 0.0
  %3831 = vmatpush1.msra.mxu0 0.0
  %3832 = vmatprep.subr.mxu0 0.0
  %3833 = vmatpush1.msra.mxu0 0.0
  %3834 = vmatprep.subr.mxu0 0.0
  %3835 = vmatpush1.msra.mxu0 0.0
  %3836 = vmatprep.subr.mxu0 0.0
  %3837 = vmatpush1.msra.mxu0 0.0
  %3838 = vmatprep.subr.mxu0 0.0
  %3839 = vmatpush1.msra.mxu0 0.0
  %3840 = vmatprep.subr.mxu0 0.0
  %3841 = vmatpush1.msra.mxu0 0.0
  %3842 = vmatprep.subr.mxu0 0.0
  %3843 = vmatpush1.msra.mxu0 0.0
  %3844 = vmatprep.subr.mxu0 0.0
  %3845 = vmatpush1.msra.mxu0 0.0
  %3846 = vmatprep.subr.mxu0 0.0
  %3847 = vmatpush1.msra.mxu0 0.0
  %3848 = vmatprep.subr.mxu0 0.0
  %3849 = vmatpush1.msra.mxu0 0.0
  %3850 = vmatprep.subr.mxu0 0.0
  %3851 = vmatpush1.msra.mxu0 0.0
  %3852 = vmatprep.subr.mxu0 0.0
  %3853 = vmatpush1.msra.mxu0 0.0
  %3854 = vmatprep.subr.mxu0 0.0
  %3855 = vmatpush1.msra.mxu0 0.0
  %3856 = vmatprep.subr.mxu0 0.0
  %3857 = vmatpush1.msra.mxu0 0.0
  %3858 = vmatprep.subr.mxu0 0.0
  %3859 = vmatpush1.msra.mxu0 0.0
  %3860 = vmatprep.subr.mxu0 0.0
  %3861 = vmatpush1.msra.mxu0 0.0
  %3862 = vmatprep.subr.mxu0 0.0
  %3863 = vmatpush1.msra.mxu0 0.0
  %3864 = vmatprep.subr.mxu0 0.0
  %3865 = vmatpush1.msra.mxu0 0.0
  %3866 = vmatprep.subr.mxu0 0.0
  %3867 = vmatpush1.msra.mxu0 0.0
  %3868 = vmatprep.subr.mxu0 0.0
  %3869 = vmatpush1.msra.mxu0 0.0
  %3870 = vmatprep.subr.mxu0 0.0
  %3871 = vmatpush1.msra.mxu0 0.0
  %3872 = vmatprep.subr.mxu0 0.0
  %3873 = vmatpush1.msra.mxu0 0.0
  %3874 = vmatprep.subr.mxu0 0.0
  %3875 = vmatpush1.msra.mxu0 0.0
  %3876 = vmatprep.subr.mxu0 0.0
  %3877 = vmatpush1.msra.mxu0 0.0
  %3878 = vmatprep.mubr.f32.mxu0 0.0
  %3879 = vmatmul.mubr.f32.gmra.mrb[0].mxu0 %v3809
  %v3880 = vpop.f32.mrb[0].mxu0
  %v3881 = vadd.f32 0.0, %v3880
  %v3882 = vpop.f32.mrb[0].mxu0
  %3883 = vmatprep.mubr.f32.mxu0 0.0
  %3884 = vmatmul.mubr.f32.gmra.mrb[0].mxu0 %v3812
  %v3885 = vpop.f32.mrb[0].mxu0
  %v3886 = vadd.f32 0.0, %v3885
  %v3887 = vpop.f32.mrb[0].mxu0
  %3888 = vdwg.mxu0
  %v3889 = vmul.f32 %v3729, %v3881
  %v3890 = vmul.f32 %v3730, %v3886
  %v3891 = vmul.f32 %v2978, %v1160
  %v3892 = vmul.f32 %v2983, %v1160
  %v3893 = vmul.f32 %v2978, %v1166
  %v3894 = vmul.f32 %v2983, %v1166
  %v3895 = vmul.f32 %v2978, %v2490
  %v3896 = vmul.f32 %v2983, %v2490
  %v3897 = vmul.f32 %v2978, %v2496
  %v3898 = vmul.f32 %v2983, %v2496
  %v3899 = vlaneseq
  %v3900 = vshrl.u32 %v3899, 7
  %v3901 = vsub.s32 4, %v3900
  %v3902 = vrot.slane %v116, %v3901
  %v3903 = vmul.f32 %v2978, %v3902
  %v3904 = vmul.f32 %v2983, %v3902
  %v3905 = vlaneseq
  %v3906 = vshrl.u32 %v3905, 7
  %v3907 = vsub.s32 5, %v3906
  %v3908 = vrot.slane %v116, %v3907
  %v3909 = vmul.f32 %v2978, %v3908
  %v3910 = vmul.f32 %v2983, %v3908
  %v3911 = vlaneseq
  %v3912 = vshrl.u32 %v3911, 7
  %v3913 = vsub.s32 6, %v3912
  %v3914 = vrot.slane %v116, %v3913
  %v3915 = vmul.f32 %v2978, %v3914
  %v3916 = vmul.f32 %v2983, %v3914
  %v3917 = vlaneseq
  %v3918 = vshrl.u32 %v3917, 7
  %v3919 = vsub.s32 7, %v3918
  %v3920 = vrot.slane %v116, %v3919
  %v3921 = vmul.f32 %v2978, %v3920
  %v3922 = vmul.f32 %v2983, %v3920
  %v3923 = vlaneseq
  %v3924 = vshrl.u32 %v3923, 7
  %v3925 = vsub.s32 0, %v3924
  %v3926 = vrot.slane %v2904, %v3925
  %3927 = vmatprep.subr.mxu0 0.0
  %3928 = vmatpush1.msra.mxu0 %v3891
  %3929 = vmatprep.subr.mxu0 0.0
  %3930 = vmatpush1.msra.mxu0 %v3892
  %3931 = vmatprep.subr.mxu0 0.0
  %3932 = vmatpush1.msra.mxu0 %v3893
  %3933 = vmatprep.subr.mxu0 0.0
  %3934 = vmatpush1.msra.mxu0 %v3894
  %3935 = vmatprep.subr.mxu0 0.0
  %3936 = vmatpush1.msra.mxu0 %v3895
  %3937 = vmatprep.subr.mxu0 0.0
  %3938 = vmatpush1.msra.mxu0 %v3896
  %3939 = vmatprep.subr.mxu0 0.0
  %3940 = vmatpush1.msra.mxu0 %v3897
  %3941 = vmatprep.subr.mxu0 0.0
  %3942 = vmatpush1.msra.mxu0 %v3898
  %3943 = vmatprep.subr.mxu0 0.0
  %3944 = vmatpush1.msra.mxu0 %v3903
  %3945 = vmatprep.subr.mxu0 0.0
  %3946 = vmatpush1.msra.mxu0 %v3904
  %3947 = vmatprep.subr.mxu0 0.0
  %3948 = vmatpush1.msra.mxu0 %v3909
  %3949 = vmatprep.subr.mxu0 0.0
  %3950 = vmatpush1.msra.mxu0 %v3910
  %3951 = vmatprep.subr.mxu0 0.0
  %3952 = vmatpush1.msra.mxu0 %v3915
  %3953 = vmatprep.subr.mxu0 0.0
  %3954 = vmatpush1.msra.mxu0 %v3916
  %3955 = vmatprep.subr.mxu0 0.0
  %3956 = vmatpush1.msra.mxu0 %v3921
  %3957 = vmatprep.subr.mxu0 0.0
  %3958 = vmatpush1.msra.mxu0 %v3922
  %3959 = vmatprep.subr.mxu0 0.0
  %3960 = vmatpush1.msra.mxu0 0.0
  %3961 = vmatprep.subr.mxu0 0.0
  %3962 = vmatpush1.msra.mxu0 0.0
  %3963 = vmatprep.subr.mxu0 0.0
  %3964 = vmatpush1.msra.mxu0 0.0
  %3965 = vmatprep.subr.mxu0 0.0
  %3966 = vmatpush1.msra.mxu0 0.0
  %3967 = vmatprep.subr.mxu0 0.0
  %3968 = vmatpush1.msra.mxu0 0.0
  %3969 = vmatprep.subr.mxu0 0.0
  %3970 = vmatpush1.msra.mxu0 0.0
  %3971 = vmatprep.subr.mxu0 0.0
  %3972 = vmatpush1.msra.mxu0 0.0
  %3973 = vmatprep.subr.mxu0 0.0
  %3974 = vmatpush1.msra.mxu0 0.0
  %3975 = vmatprep.subr.mxu0 0.0
  %3976 = vmatpush1.msra.mxu0 0.0
  %3977 = vmatprep.subr.mxu0 0.0
  %3978 = vmatpush1.msra.mxu0 0.0
  %3979 = vmatprep.subr.mxu0 0.0
  %3980 = vmatpush1.msra.mxu0 0.0
  %3981 = vmatprep.subr.mxu0 0.0
  %3982 = vmatpush1.msra.mxu0 0.0
  %3983 = vmatprep.subr.mxu0 0.0
  %3984 = vmatpush1.msra.mxu0 0.0
  %3985 = vmatprep.subr.mxu0 0.0
  %3986 = vmatpush1.msra.mxu0 0.0
  %3987 = vmatprep.subr.mxu0 0.0
  %3988 = vmatpush1.msra.mxu0 0.0
  %3989 = vmatprep.subr.mxu0 0.0
  %3990 = vmatpush1.msra.mxu0 0.0
  %3991 = vmatprep.mubr.f32.mxu0 0.0
  %3992 = vmatmul.mubr.f32.gmra.mrb[0].mxu0 %v3889
  %v3993 = vpop.f32.mrb[0].mxu0
  %v3994 = vadd.f32 %v3926, %v3993
  %v3995 = vpop.f32.mrb[0].mxu0
  %3996 = vmatprep.mubr.f32.mxu0 0.0
  %3997 = vmatmul.mubr.f32.gmra.mrb[0].mxu0 %v3890
  %v3998 = vpop.f32.mrb[0].mxu0
  %v3999 = vadd.f32 %v3926, %v3998
  %v4000 = vpop.f32.mrb[0].mxu0
  %4001 = vdwg.mxu0
  %v4002 = vlaneseq
  %v4003 = vshrl.u32 %v4002, 7
  %v4004 = vsub.s32 1, %v4003
  %v4005 = vrot.slane %v2904, %v4004
  %v4006 = vmul.f32 %v3994, %v4005
  %v4007 = vmul.f32 %v3999, %v4005
  %v4008 = vlaneseq
  %v4009 = vshrl.u32 %v4008, 7
  %v4010 = vsub.s32 2, %v4009
  %v4011 = vrot.slane %v2904, %v4010
  %v4012 = vadd.f32 %v4006, %v4011
  %v4013 = vadd.f32 %v4007, %v4011
  %vm4014 = vcmp.gt.f32.partialorder %v4012, 0.0
  %vm4015 = vcmp.gt.f32.partialorder %v4013, 0.0
  %v4016 = vmin.f32 %v4012, 0.0
  %v4017 = vmin.f32 %v4013, 0.0
  %v4018 = vmul.f32 %v4016, 1.442695
  %v4019 = vpow.pop %v4018
  %v4020 = vmul.f32 %v4017, 1.442695
  %v4021 = vpow.pop %v4020
  %v4022 = vsub.f32 %v4019, 1.0
  %v4023 = vsub.f32 %v4021, 1.0
  %v4024 = vsel %vm4014, %v4012, %v4022
  %v4025 = vsel %vm4015, %v4013, %v4023
  %v4026 = vlaneseq
  %v4027 = vshrl.u32 %v4026, 7
  %v4028 = vsub.s32 3, %v4027
  %v4029 = vrot.slane %v2904, %v4028
  %v4031 = vsel %vm2316, %v4024, 0
  %v4034 = vsel %vm2316, %v4025, 0
  %4036 = vmatprep.subr.mxu0 0.0
  %4037 = vmatpush1.msra.mxu0 %v2896
  %4038 = vmatprep.subr.mxu0 0.0
  %4039 = vmatpush1.msra.mxu0 %v2897
  %4040 = vmatprep.subr.mxu0 0.0
  %4041 = vmatpush1.msra.mxu0 %v2898
  %4042 = vmatprep.subr.mxu0 0.0
  %4043 = vmatpush1.msra.mxu0 %v2899
  %4044 = vmatprep.subr.mxu0 0.0
  %4045 = vmatpush1.msra.mxu0 %v2900
  %4046 = vmatprep.subr.mxu0 0.0
  %4047 = vmatpush1.msra.mxu0 %v2901
  %4048 = vmatprep.subr.mxu0 0.0
  %4049 = vmatpush1.msra.mxu0 %v2902
  %4050 = vmatprep.subr.mxu0 0.0
  %4051 = vmatpush1.msra.mxu0 %v2903
  %4052 = vmatprep.subr.mxu0 0.0
  %4053 = vmatpush1.msra.mxu0 0.0
  %4054 = vmatprep.subr.mxu0 0.0
  %4055 = vmatpush1.msra.mxu0 0.0
  %4056 = vmatprep.subr.mxu0 0.0
  %4057 = vmatpush1.msra.mxu0 0.0
  %4058 = vmatprep.subr.mxu0 0.0
  %4059 = vmatpush1.msra.mxu0 0.0
  %4060 = vmatprep.subr.mxu0 0.0
  %4061 = vmatpush1.msra.mxu0 0.0
  %4062 = vmatprep.subr.mxu0 0.0
  %4063 = vmatpush1.msra.mxu0 0.0
  %4064 = vmatprep.subr.mxu0 0.0
  %4065 = vmatpush1.msra.mxu0 0.0
  %4066 = vmatprep.subr.mxu0 0.0
  %4067 = vmatpush1.msra.mxu0 0.0
  %4068 = vmatprep.subr.mxu0 0.0
  %4069 = vmatpush1.msra.mxu0 0.0
  %4070 = vmatprep.subr.mxu0 0.0
  %4071 = vmatpush1.msra.mxu0 0.0
  %4072 = vmatprep.subr.mxu0 0.0
  %4073 = vmatpush1.msra.mxu0 0.0
  %4074 = vmatprep.subr.mxu0 0.0
  %4075 = vmatpush1.msra.mxu0 0.0
  %4076 = vmatprep.subr.mxu0 0.0
  %4077 = vmatpush1.msra.mxu0 0.0
  %4078 = vmatprep.subr.mxu0 0.0
  %4079 = vmatpush1.msra.mxu0 0.0
  %4080 = vmatprep.subr.mxu0 0.0
  %4081 = vmatpush1.msra.mxu0 0.0
  %4082 = vmatprep.subr.mxu0 0.0
  %4083 = vmatpush1.msra.mxu0 0.0
  %4084 = vmatprep.subr.mxu0 0.0
  %4085 = vmatpush1.msra.mxu0 0.0
  %4086 = vmatprep.subr.mxu0 0.0
  %4087 = vmatpush1.msra.mxu0 0.0
  %4088 = vmatprep.subr.mxu0 0.0
  %4089 = vmatpush1.msra.mxu0 0.0
  %4090 = vmatprep.subr.mxu0 0.0
  %4091 = vmatpush1.msra.mxu0 0.0
  %4092 = vmatprep.subr.mxu0 0.0
  %4093 = vmatpush1.msra.mxu0 0.0
  %4094 = vmatprep.subr.mxu0 0.0
  %4095 = vmatpush1.msra.mxu0 0.0
  %4096 = vmatprep.subr.mxu0 0.0
  %4097 = vmatpush1.msra.mxu0 0.0
  %4098 = vmatprep.subr.mxu0 0.0
  %4099 = vmatpush1.msra.mxu0 0.0
  %4100 = vmatprep.mubr.f32.mxu0 0.0
  %4101 = vmatmul.mubr.f32.gmra.mrb[0].mxu0 %v4031
  %v4102 = vpop.f32.mrb[0].mxu0
  %v4103 = vadd.f32 %v4029, %v4102
  %v4104 = vpop.f32.mrb[0].mxu0
  %4105 = vmatprep.mubr.f32.mxu0 0.0
  %4106 = vmatmul.mubr.f32.gmra.mrb[0].mxu0 %v4034
  %v4107 = vpop.f32.mrb[0].mxu0
  %v4108 = vadd.f32 %v4029, %v4107
  %v4109 = vpop.f32.mrb[0].mxu0
  %4110 = vdwg.mxu0
  %4113 = vrot.lane.b32.xlu0 %v2685, 8
  %v4114 = vpop.permute.xlu0 %4113
  %4115 = vrot.lane.b32.xlu0 %v2690, 8
  %v4116 = vpop.permute.xlu0 %4115
  %4121 = vrot.lane.b32.xlu0 %v4103, 24
  %v4122 = vpop.permute.xlu0 %4121
  %4123 = vrot.lane.b32.xlu0 %v4108, 24
  %v4124 = vpop.permute.xlu0 %4123
  %v4127 = vsel %vm470, %v1355, %v4114
  %v4128 = vsel %vm470, %v1360, %v4116
  %v4129 = vsel %vm2719, %v4127, %v4122
  %v4130 = vsel %vm2719, %v4128, %v4124
  %v4131 = vld [vmem:[%s23] sm:$0x3]
  %v4132 = vld [vmem:[%s26] sm:$0x1f]
  %v4133 = vlaneseq
  %v4134 = vshrl.u32 %v4133, 7
  %v4135 = vsub.s32 0, %v4134
  %v4136 = vrot.slane %v4131, %v4135
  %v4137 = vmul.f32 %v4129, %v4136
  %v4138 = vmul.f32 %v4130, %v4136
  %v4139 = vlaneseq
  %v4140 = vshrl.u32 %v4139, 7
  %v4141 = vsub.s32 1, %v4140
  %v4142 = vrot.slane %v4131, %v4141
  %v4143 = vadd.f32 %v4137, %v4142
  %v4144 = vadd.f32 %v4138, %v4142
  %vm4145 = vcmp.gt.f32.partialorder %v4143, 0.0
  %vm4146 = vcmp.gt.f32.partialorder %v4144, 0.0
  %v4147 = vmin.f32 %v4143, 0.0
  %v4148 = vmin.f32 %v4144, 0.0
  %v4149 = vmul.f32 %v4147, 1.442695
  %v4150 = vpow.pop %v4149
  %v4151 = vmul.f32 %v4148, 1.442695
  %v4152 = vpow.pop %v4151
  %v4153 = vsub.f32 %v4150, 1.0
  %v4154 = vsub.f32 %v4152, 1.0
  %v4155 = vsel %vm4145, %v4143, %v4153
  %v4156 = vsel %vm4146, %v4144, %v4154
  %v4157 = vld [vmem:[%s24] sm:$0xff]
  %v4158 = vld [vmem:[%s24 + $0x8] sm:$0xff]
  %v4159 = vld [vmem:[%s24 + $0x10] sm:$0xff]
  %v4160 = vld [vmem:[%s24 + $0x18] sm:$0xff]
  %v4161 = vld [vmem:[%s24 + $0x20] sm:$0xff]
  %v4162 = vld [vmem:[%s24 + $0x28] sm:$0xff]
  %v4163 = vld [vmem:[%s24 + $0x30] sm:$0xff]
  %v4164 = vlaneseq
  %v4165 = vshrl.u32 %v4164, 7
  %v4166 = vsub.s32 0, %v4165
  %v4167 = vrot.slane %v4132, %v4166
  %vm4168 = vcmask 457728
  %v4170 = vsel %vm4168, %v4155, 0
  %v4173 = vsel %vm4168, %v4156, 0
  %4175 = vmatprep.subr.mxu0 0.0
  %4176 = vmatpush1.msra.mxu0 %v4157
  %4177 = vmatprep.subr.mxu0 0.0
  %4178 = vmatpush1.msra.mxu0 %v4158
  %4179 = vmatprep.subr.mxu0 0.0
  %4180 = vmatpush1.msra.mxu0 %v4159
  %4181 = vmatprep.subr.mxu0 0.0
  %4182 = vmatpush1.msra.mxu0 %v4160
  %4183 = vmatprep.subr.mxu0 0.0
  %4184 = vmatpush1.msra.mxu0 %v4161
  %4185 = vmatprep.subr.mxu0 0.0
  %4186 = vmatpush1.msra.mxu0 %v4162
  %4187 = vmatprep.subr.mxu0 0.0
  %4188 = vmatpush1.msra.mxu0 %v4163
  %4189 = vmatprep.subr.mxu0 0.0
  %4190 = vmatpush1.msra.mxu0 0.0
  %4191 = vmatprep.subr.mxu0 0.0
  %4192 = vmatpush1.msra.mxu0 0.0
  %4193 = vmatprep.subr.mxu0 0.0
  %4194 = vmatpush1.msra.mxu0 0.0
  %4195 = vmatprep.subr.mxu0 0.0
  %4196 = vmatpush1.msra.mxu0 0.0
  %4197 = vmatprep.subr.mxu0 0.0
  %4198 = vmatpush1.msra.mxu0 0.0
  %4199 = vmatprep.subr.mxu0 0.0
  %4200 = vmatpush1.msra.mxu0 0.0
  %4201 = vmatprep.subr.mxu0 0.0
  %4202 = vmatpush1.msra.mxu0 0.0
  %4203 = vmatprep.subr.mxu0 0.0
  %4204 = vmatpush1.msra.mxu0 0.0
  %4205 = vmatprep.subr.mxu0 0.0
  %4206 = vmatpush1.msra.mxu0 0.0
  %4207 = vmatprep.subr.mxu0 0.0
  %4208 = vmatpush1.msra.mxu0 0.0
  %4209 = vmatprep.subr.mxu0 0.0
  %4210 = vmatpush1.msra.mxu0 0.0
  %4211 = vmatprep.subr.mxu0 0.0
  %4212 = vmatpush1.msra.mxu0 0.0
  %4213 = vmatprep.subr.mxu0 0.0
  %4214 = vmatpush1.msra.mxu0 0.0
  %4215 = vmatprep.subr.mxu0 0.0
  %4216 = vmatpush1.msra.mxu0 0.0
  %4217 = vmatprep.subr.mxu0 0.0
  %4218 = vmatpush1.msra.mxu0 0.0
  %4219 = vmatprep.subr.mxu0 0.0
  %4220 = vmatpush1.msra.mxu0 0.0
  %4221 = vmatprep.subr.mxu0 0.0
  %4222 = vmatpush1.msra.mxu0 0.0
  %4223 = vmatprep.subr.mxu0 0.0
  %4224 = vmatpush1.msra.mxu0 0.0
  %4225 = vmatprep.subr.mxu0 0.0
  %4226 = vmatpush1.msra.mxu0 0.0
  %4227 = vmatprep.subr.mxu0 0.0
  %4228 = vmatpush1.msra.mxu0 0.0
  %4229 = vmatprep.subr.mxu0 0.0
  %4230 = vmatpush1.msra.mxu0 0.0
  %4231 = vmatprep.subr.mxu0 0.0
  %4232 = vmatpush1.msra.mxu0 0.0
  %4233 = vmatprep.subr.mxu0 0.0
  %4234 = vmatpush1.msra.mxu0 0.0
  %4235 = vmatprep.subr.mxu0 0.0
  %4236 = vmatpush1.msra.mxu0 0.0
  %4237 = vmatprep.subr.mxu0 0.0
  %4238 = vmatpush1.msra.mxu0 0.0
  %4239 = vmatprep.mubr.f32.mxu0 0.0
  %4240 = vmatmul.mubr.f32.gmra.mrb[0].mxu0 %v4170
  %v4241 = vpop.f32.mrb[0].mxu0
  %v4242 = vadd.f32 %v4167, %v4241
  %v4243 = vpop.f32.mrb[0].mxu0
  %4244 = vmatprep.mubr.f32.mxu0 0.0
  %4245 = vmatmul.mubr.f32.gmra.mrb[0].mxu0 %v4173
  %v4246 = vpop.f32.mrb[0].mxu0
  %v4247 = vadd.f32 %v4167, %v4246
  %v4248 = vpop.f32.mrb[0].mxu0
  %4249 = vdwg.mxu0
  %v4250 = vld [vmem:[%s25] sm:$0xff]
  %v4252 = vsel %vm470, %v89, 0
  %v4255 = vsel %vm470, %v90, 0
  %4257 = vmatprep.subr.mxu0 0.0
  %4258 = vmatpush1.msra.mxu0 %v4250
  %4259 = vmatprep.subr.mxu0 0.0
  %4260 = vmatpush1.msra.mxu0 0.0
  %4261 = vmatprep.subr.mxu0 0.0
  %4262 = vmatpush1.msra.mxu0 0.0
  %4263 = vmatprep.subr.mxu0 0.0
  %4264 = vmatpush1.msra.mxu0 0.0
  %4265 = vmatprep.subr.mxu0 0.0
  %4266 = vmatpush1.msra.mxu0 0.0
  %4267 = vmatprep.subr.mxu0 0.0
  %4268 = vmatpush1.msra.mxu0 0.0
  %4269 = vmatprep.subr.mxu0 0.0
  %4270 = vmatpush1.msra.mxu0 0.0
  %4271 = vmatprep.subr.mxu0 0.0
  %4272 = vmatpush1.msra.mxu0 0.0
  %4273 = vmatprep.subr.mxu0 0.0
  %4274 = vmatpush1.msra.mxu0 0.0
  %4275 = vmatprep.subr.mxu0 0.0
  %4276 = vmatpush1.msra.mxu0 0.0
  %4277 = vmatprep.subr.mxu0 0.0
  %4278 = vmatpush1.msra.mxu0 0.0
  %4279 = vmatprep.subr.mxu0 0.0
  %4280 = vmatpush1.msra.mxu0 0.0
  %4281 = vmatprep.subr.mxu0 0.0
  %4282 = vmatpush1.msra.mxu0 0.0
  %4283 = vmatprep.subr.mxu0 0.0
  %4284 = vmatpush1.msra.mxu0 0.0
  %4285 = vmatprep.subr.mxu0 0.0
  %4286 = vmatpush1.msra.mxu0 0.0
  %4287 = vmatprep.subr.mxu0 0.0
  %4288 = vmatpush1.msra.mxu0 0.0
  %4289 = vmatprep.subr.mxu0 0.0
  %4290 = vmatpush1.msra.mxu0 0.0
  %4291 = vmatprep.subr.mxu0 0.0
  %4292 = vmatpush1.msra.mxu0 0.0
  %4293 = vmatprep.subr.mxu0 0.0
  %4294 = vmatpush1.msra.mxu0 0.0
  %4295 = vmatprep.subr.mxu0 0.0
  %4296 = vmatpush1.msra.mxu0 0.0
  %4297 = vmatprep.subr.mxu0 0.0
  %4298 = vmatpush1.msra.mxu0 0.0
  %4299 = vmatprep.subr.mxu0 0.0
  %4300 = vmatpush1.msra.mxu0 0.0
  %4301 = vmatprep.subr.mxu0 0.0
  %4302 = vmatpush1.msra.mxu0 0.0
  %4303 = vmatprep.subr.mxu0 0.0
  %4304 = vmatpush1.msra.mxu0 0.0
  %4305 = vmatprep.subr.mxu0 0.0
  %4306 = vmatpush1.msra.mxu0 0.0
  %4307 = vmatprep.subr.mxu0 0.0
  %4308 = vmatpush1.msra.mxu0 0.0
  %4309 = vmatprep.subr.mxu0 0.0
  %4310 = vmatpush1.msra.mxu0 0.0
  %4311 = vmatprep.subr.mxu0 0.0
  %4312 = vmatpush1.msra.mxu0 0.0
  %4313 = vmatprep.subr.mxu0 0.0
  %4314 = vmatpush1.msra.mxu0 0.0
  %4315 = vmatprep.subr.mxu0 0.0
  %4316 = vmatpush1.msra.mxu0 0.0
  %4317 = vmatprep.subr.mxu0 0.0
  %4318 = vmatpush1.msra.mxu0 0.0
  %4319 = vmatprep.subr.mxu0 0.0
  %4320 = vmatpush1.msra.mxu0 0.0
  %4321 = vmatprep.mubr.f32.mxu0 0.0
  %4322 = vmatmul.mubr.f32.gmra.mrb[0].mxu0 %v4252
  %v4323 = vpop.f32.mrb[0].mxu0
  %v4324 = vadd.f32 0.0, %v4323
  %v4325 = vpop.f32.mrb[0].mxu0
  %4326 = vmatprep.mubr.f32.mxu0 0.0
  %4327 = vmatmul.mubr.f32.gmra.mrb[0].mxu0 %v4255
  %v4328 = vpop.f32.mrb[0].mxu0
  %v4329 = vadd.f32 0.0, %v4328
  %v4330 = vpop.f32.mrb[0].mxu0
  %4331 = vdwg.mxu0
  %v4332 = vadd.f32 %v4242, %v4324
  %v4333 = vadd.f32 %v4247, %v4329
  %v4334 = vlaneseq
  %v4335 = vshrl.u32 %v4334, 7
  %v4336 = vsub.s32 1, %v4335
  %v4337 = vrot.slane %v4132, %v4336
  %v4338 = vadd.f32 %v4332, %v4337
  %v4339 = vadd.f32 %v4333, %v4337
  %v4340 = vlaneseq
  %v4341 = vshrl.u32 %v4340, 7
  %v4342 = vsub.s32 2, %v4341
  %v4343 = vrot.slane %v4132, %v4342
  %v4344 = vmul.f32 %v4338, %v4343
  %v4345 = vmul.f32 %v4339, %v4343
  %v4346 = vlaneseq
  %v4347 = vshrl.u32 %v4346, 7
  %v4348 = vsub.s32 3, %v4347
  %v4349 = vrot.slane %v4132, %v4348
  %v4350 = vadd.f32 %v4344, %v4349
  %v4351 = vadd.f32 %v4345, %v4349
  %vm4352 = vcmp.gt.f32.partialorder %v4350, 0.0
  %vm4353 = vcmp.gt.f32.partialorder %v4351, 0.0
  %v4354 = vmin.f32 %v4350, 0.0
  %v4355 = vmin.f32 %v4351, 0.0
  %v4356 = vmul.f32 %v4354, 1.442695
  %v4357 = vpow.pop %v4356
  %v4358 = vmul.f32 %v4355, 1.442695
  %v4359 = vpow.pop %v4358
  %v4360 = vsub.f32 %v4357, 1.0
  %v4361 = vsub.f32 %v4359, 1.0
  %v4362 = vsel %vm4352, %v4350, %v4360
  %v4363 = vsel %vm4353, %v4351, %v4361
  %v4364 = vld [vmem:[%s27] sm:$0xff]
  %v4365 = vlaneseq
  %v4366 = vshrl.u32 %v4365, 7
  %v4367 = vsub.s32 4, %v4366
  %v4368 = vrot.slane %v4132, %v4367
  %v4370 = vsel %vm470, %v4362, 0
  %v4373 = vsel %vm470, %v4363, 0
  %4375 = vmatprep.subr.mxu0 0.0
  %4376 = vmatpush1.msra.mxu0 %v4364
  %4377 = vmatprep.subr.mxu0 0.0
  %4378 = vmatpush1.msra.mxu0 0.0
  %4379 = vmatprep.subr.mxu0 0.0
  %4380 = vmatpush1.msra.mxu0 0.0
  %4381 = vmatprep.subr.mxu0 0.0
  %4382 = vmatpush1.msra.mxu0 0.0
  %4383 = vmatprep.subr.mxu0 0.0
  %4384 = vmatpush1.msra.mxu0 0.0
  %4385 = vmatprep.subr.mxu0 0.0
  %4386 = vmatpush1.msra.mxu0 0.0
  %4387 = vmatprep.subr.mxu0 0.0
  %4388 = vmatpush1.msra.mxu0 0.0
  %4389 = vmatprep.subr.mxu0 0.0
  %4390 = vmatpush1.msra.mxu0 0.0
  %4391 = vmatprep.subr.mxu0 0.0
  %4392 = vmatpush1.msra.mxu0 0.0
  %4393 = vmatprep.subr.mxu0 0.0
  %4394 = vmatpush1.msra.mxu0 0.0
  %4395 = vmatprep.subr.mxu0 0.0
  %4396 = vmatpush1.msra.mxu0 0.0
  %4397 = vmatprep.subr.mxu0 0.0
  %4398 = vmatpush1.msra.mxu0 0.0
  %4399 = vmatprep.subr.mxu0 0.0
  %4400 = vmatpush1.msra.mxu0 0.0
  %4401 = vmatprep.subr.mxu0 0.0
  %4402 = vmatpush1.msra.mxu0 0.0
  %4403 = vmatprep.subr.mxu0 0.0
  %4404 = vmatpush1.msra.mxu0 0.0
  %4405 = vmatprep.subr.mxu0 0.0
  %4406 = vmatpush1.msra.mxu0 0.0
  %4407 = vmatprep.subr.mxu0 0.0
  %4408 = vmatpush1.msra.mxu0 0.0
  %4409 = vmatprep.subr.mxu0 0.0
  %4410 = vmatpush1.msra.mxu0 0.0
  %4411 = vmatprep.subr.mxu0 0.0
  %4412 = vmatpush1.msra.mxu0 0.0
  %4413 = vmatprep.subr.mxu0 0.0
  %4414 = vmatpush1.msra.mxu0 0.0
  %4415 = vmatprep.subr.mxu0 0.0
  %4416 = vmatpush1.msra.mxu0 0.0
  %4417 = vmatprep.subr.mxu0 0.0
  %4418 = vmatpush1.msra.mxu0 0.0
  %4419 = vmatprep.subr.mxu0 0.0
  %4420 = vmatpush1.msra.mxu0 0.0
  %4421 = vmatprep.subr.mxu0 0.0
  %4422 = vmatpush1.msra.mxu0 0.0
  %4423 = vmatprep.subr.mxu0 0.0
  %4424 = vmatpush1.msra.mxu0 0.0
  %4425 = vmatprep.subr.mxu0 0.0
  %4426 = vmatpush1.msra.mxu0 0.0
  %4427 = vmatprep.subr.mxu0 0.0
  %4428 = vmatpush1.msra.mxu0 0.0
  %4429 = vmatprep.subr.mxu0 0.0
  %4430 = vmatpush1.msra.mxu0 0.0
  %4431 = vmatprep.subr.mxu0 0.0
  %4432 = vmatpush1.msra.mxu0 0.0
  %4433 = vmatprep.subr.mxu0 0.0
  %4434 = vmatpush1.msra.mxu0 0.0
  %4435 = vmatprep.subr.mxu0 0.0
  %4436 = vmatpush1.msra.mxu0 0.0
  %4437 = vmatprep.subr.mxu0 0.0
  %4438 = vmatpush1.msra.mxu0 0.0
  %4439 = vmatprep.mubr.f32.mxu0 0.0
  %4440 = vmatmul.mubr.f32.gmra.mrb[0].mxu0 %v4370
  %v4441 = vpop.f32.mrb[0].mxu0
  %v4442 = vadd.f32 %v4368, %v4441
  %v4443 = vpop.f32.mrb[0].mxu0
  %4444 = vmatprep.mubr.f32.mxu0 0.0
  %4445 = vmatmul.mubr.f32.gmra.mrb[0].mxu0 %v4373
  %v4446 = vpop.f32.mrb[0].mxu0
  %v4447 = vadd.f32 %v4368, %v4446
  %v4448 = vpop.f32.mrb[0].mxu0
  %4449 = vdwg.mxu0
  %v4450 = vsel %vm2101, %v4442, -inf
  %4451 = vmax.xlane.f32.xlu0 %v4450
  %v4452 = vpop.xlane.xlu0 %4451
  %v4453 = vsel %vm2101, %v4447, -inf
  %4454 = vmax.xlane.f32.xlu0 %v4453
  %v4455 = vpop.xlane.xlu0 %4454
  %v4456 = vsub.f32 %v4442, %v4452
  %v4457 = vsub.f32 %v4447, %v4455
  %v4458 = vmul.f32 %v4456, 1.442695
  %v4459 = vpow.pop %v4458
  %v4460 = vmul.f32 %v4457, 1.442695
  %v4461 = vpow.pop %v4460
  %v4462 = vsel %vm2101, %v4459, 0.0
  %4463 = vadd.xlane.f32.xlu0 %v4462
  %v4464 = vpop.xlane.xlu0 %4463
  %v4465 = vsel %vm2101, %v4461, 0.0
  %4466 = vadd.xlane.f32.xlu0 %v4465
  %v4467 = vpop.xlane.xlu0 %4466
  %v4468 = vlog2.pop %v4464
  %v4469 = vmul.f32 %v4468, 0.6931472
  %v4470 = vlog2.pop %v4467
  %v4471 = vmul.f32 %v4470, 0.6931472
  %v4472 = vsub.f32 %v4456, %v4469
  %v4473 = vsub.f32 %v4457, %v4471
  %4474 = vst.msk [vmem:[%s28] sm:$0xff] %vm2101, %v4472
  %4475 = vst.msk [vmem:[%s28 + $0x8] sm:$0xff] %vm2101, %v4473
  // Predicated region
  $region114: #{net_forward.1} parent=0 // pred_check
    _
  $region115: #{net_forward.1} parent=0 // pred_check_branch
    %4477 = sbr.rel (0) target = $region117
  $region116: #{net_forward.1} parent=0 // pred_region
    _
  $region117: #{net_forward.1} parent=0 // pred_fallthru
    _
  // Predicated region
  $region118: #{net_forward.1} parent=0 // pred_check
    _
  $region119: #{net_forward.1} parent=0 // pred_check_branch
    %4479 = sbr.rel (0) target = $region121
  $region120: #{net_forward.1} parent=0 // pred_region
    _
  $region121: #{net_forward.1} parent=0 // pred_fallthru
    _

</llo_original>
